<compile_context>
chip_gen: v6e
topology: v6e:2x2x1
jax: 0.10.0
libtpu: 0.0.40
codegen_flags: <defaults>
</compile_context>

<pallas_src>
import functools

import jax
import jax.numpy as jnp
from jax.experimental import pallas as pl
from jax.experimental.pallas import tpu as pltpu


def _round_up(x, m):
    return ((x + m - 1) // m) * m


# -----------------------------------------------------------------------------
# Kernel 1: conv(9->64->128->1024) + relu stack and running global max-pool.
# Grid: (B, N_pad // TN).  The pooled result is written only on the last point
# tile of each batch element (output block index is constant along n).
# -----------------------------------------------------------------------------
def _conv_pool_kernel(x_ref,
                      w1_ref, b1_ref,
                      w2_ref, b2_ref,
                      w3_ref, b3_ref,
                      out_ref,
                      acc_ref,
                      *, sublane_acc):
    n = pl.program_id(1)

    @pl.when(n == 0)
    def _():
        acc_ref[...] = jnp.full_like(acc_ref, -jnp.inf)

    x = x_ref[0]  # (TN, 9) bf16 (cast once in the wrapper)

    # 1x1 conv == per-point channel matmul.  bf16 operands, f32 accumulation;
    # bias / relu / max stay in f32.
    h = jnp.dot(x, w1_ref[...], preferred_element_type=jnp.float32) + b1_ref[...]
    h = jnp.maximum(h, 0.0)                                        # (TN, 64)
    h = jnp.dot(h.astype(jnp.bfloat16), w2_ref[...],
                preferred_element_type=jnp.float32) + b2_ref[...]
    h = jnp.maximum(h, 0.0)                                        # (TN, 128)
    # conv3: raw matmul only -- its bias + ReLU are hoisted to the epilogue.
    h = jnp.dot(h.astype(jnp.bfloat16), w3_ref[...],
                preferred_element_type=jnp.float32)                # (TN, 1024)

    if sublane_acc:
        # (8, 1024) accumulator: per tile only elementwise VPU maxes (reduce
        # over the leading, sublane-tile-grouping axis); the cross-sublane XLU
        # collapse is deferred to the epilogue.
        tn, c = h.shape
        h8 = h.reshape(tn // 8, 8, c)      # groups whole (8,128) tiles: no relayout
        acc_ref[...] = jnp.maximum(acc_ref[...], jnp.max(h8, axis=0))
    else:
        acc_ref[...] = jnp.maximum(acc_ref[...],
                                   jnp.max(h, axis=0, keepdims=True))

    @pl.when(n == pl.num_programs(1) - 1)
    def _():
        pooled = acc_ref[...]
        if sublane_acc:
            pooled = jnp.max(pooled, axis=0, keepdims=True)        # (1, 1024)
        # Hoisted conv3 bias + ReLU, applied exactly once.
        out_ref[0] = jnp.maximum(pooled + b3_ref[...], 0.0)


def _conv_pool_call(x, w1b, b1, w2b, b2, w3b, b3, *, tn, sublane_acc,
                    single_buffer_weights, vmem_limit_bytes):
    B, n_pad, _ = x.shape
    const = lambda b, n: (0, 0)
    if single_buffer_weights:
        # Resident operands (constant index_map): double-buffering them is pure
        # VMEM waste -- relevant headroom on v7x's 64 MiB VMEM.
        wspec = lambda a: pl.BlockSpec(a.shape, const, pipeline_mode=pl.Buffered(1))
    else:
        wspec = lambda a: pl.BlockSpec(a.shape, const)
    acc_shape = (8, 1024) if sublane_acc else (1, 1024)

    return pl.pallas_call(
        functools.partial(_conv_pool_kernel, sublane_acc=sublane_acc),
        out_shape=jax.ShapeDtypeStruct((B, 1, 1024), jnp.float32),
        grid_spec=pltpu.PrefetchScalarGridSpec(
            num_scalar_prefetch=0,
            grid=(B, n_pad // tn),
            in_specs=[
                pl.BlockSpec((1, tn, 9), lambda b, n: (b, n, 0)),
                wspec(w1b), wspec(b1),
                wspec(w2b), wspec(b2),
                wspec(w3b), wspec(b3),
            ],
            out_specs=pl.BlockSpec((1, 1, 1024), lambda b, n: (b, 0, 0)),
            scratch_shapes=[pltpu.VMEM(acc_shape, jnp.float32)],
        ),
        compiler_params=pltpu.CompilerParams(
            dimension_semantics=("parallel", "arbitrary"),
            vmem_limit_bytes=vmem_limit_bytes,
        ),
    )(x, w1b, b1, w2b, b2, w3b, b3)


# -----------------------------------------------------------------------------
# Kernel 2: FC head 1024 -> 512 -> 256 -> 81 (padded to 128 lanes), batched at
# M = B_pad (multiple of 8) so the MXU sees the whole batch and stores are
# unmasked.  Single grid step.
# -----------------------------------------------------------------------------
def _fc_head_kernel(g_ref,
                    wf1_ref, bf1_ref,
                    wf2_ref, bf2_ref,
                    wf3_ref, bf3_ref,
                    out_ref):
    g = g_ref[...].astype(jnp.bfloat16)                            # (B_pad, 1024)
    f = jnp.dot(g, wf1_ref[...], preferred_element_type=jnp.float32) + bf1_ref[...]
    f = jnp.maximum(f, 0.0)                                        # (B_pad, 512)
    f = jnp.dot(f.astype(jnp.bfloat16), wf2_ref[...],
                preferred_element_type=jnp.float32) + bf2_ref[...]
    f = jnp.maximum(f, 0.0)                                        # (B_pad, 256)
    f = jnp.dot(f.astype(jnp.bfloat16), wf3_ref[...],
                preferred_element_type=jnp.float32) + bf3_ref[...]
    out_ref[...] = f                                               # (B_pad, 128)


def stn3d_forward(x_ncl, params, *, tn=1024):
    """x_ncl: (B, 9, N) float32 (PyTorch NCL layout). Returns (B, 9, 9).

    Eager-only wrapper (it compiles a couple of Pallas configs with a fallback
    chain); do not wrap in jax.jit.
    """
    B, c_in, N = x_ncl.shape
    assert c_in == 9
    assert N >= 1, "empty point cloud not supported (edge padding needs >= 1 point)"

    (w1, b1, w2, b2, w3, b3, wf1, bf1, wf2, bf2, wf3, bf3) = params

    # Channels-last so the channel axis lands on the TPU lane axis and
    # Conv1d(k=1) becomes `points @ W`.  Cast to bf16 once here.
    x = jnp.transpose(x_ncl, (0, 2, 1)).astype(jnp.bfloat16)       # (B, N, 9)

    # Point-tile size, always a multiple of 8 (sublane constraint), capped near
    # N so tiny inputs don't over-pad.
    tn = _round_up(max(8, min(tn, _round_up(N, 8))), 8)
    n_pad = _round_up(N, tn)
    if n_pad != N:
        # Edge-replicate real points so padded rows can never win the max.
        x = jnp.pad(x, ((0, 0), (0, n_pad - N), (0, 0)), mode="edge")

    # Only needed for very large point tiles (v5e's scoped-VMEM default is only
    # 16 MiB); the default tn=1024 stays well under every chip's default.
    vmem_limit = 48 * 1024 * 1024 if tn >= 1536 else None

    # bf16 matmul operands for the MXU; biases stay f32.
    w1b, w2b, w3b = (w.astype(jnp.bfloat16) for w in (w1, w2, w3))
    conv_args = (x, w1b, b1, w2b, b2, w3b, b3)

    # Try the fully optimized config first; fall back to progressively more
    # conservative (previously validated) configs if the local chip / jax
    # version rejects a feature (e.g. single-buffered operands).
    configs = (
        dict(sublane_acc=True,  single_buffer_weights=True),
        dict(sublane_acc=True,  single_buffer_weights=False),
        dict(sublane_acc=False, single_buffer_weights=False),
    )
    pooled = None
    last_err = None
    for cfg in configs:
        try:
            pooled = jax.block_until_ready(
                _conv_pool_call(*conv_args, tn=tn,
                                vmem_limit_bytes=vmem_limit, **cfg))
            break
        except Exception as e:  # pragma: no cover - depends on chip/jax version
            last_err = e
            pooled = None
    if pooled is None:
        raise last_err

    pooled = pooled.reshape(B, 1024)

    # FC head, batched at B padded to a multiple of 8 (unmasked, sublane-dense
    # stores).  Final layer padded 81 -> 128 for lane-dense stores; both pads
    # are sliced back outside the kernel.
    b_pad = _round_up(B, 8)
    if b_pad != B:
        pooled = jnp.pad(pooled, ((0, b_pad - B), (0, 0)))

    wf1b, wf2b = wf1.astype(jnp.bfloat16), wf2.astype(jnp.bfloat16)
    wf3p = jnp.pad(wf3.astype(jnp.bfloat16), ((0, 0), (0, 128 - 81)))
    bf3p = jnp.pad(bf3, ((0, 0), (0, 128 - 81)))

    const1 = lambda i: (0, 0)
    head = pl.pallas_call(
        _fc_head_kernel,
        out_shape=jax.ShapeDtypeStruct((b_pad, 128), jnp.float32),
        grid_spec=pltpu.PrefetchScalarGridSpec(
            num_scalar_prefetch=0,
            grid=(1,),
            in_specs=[
                pl.BlockSpec((b_pad, 1024), const1),
                pl.BlockSpec(wf1b.shape, const1), pl.BlockSpec(bf1.shape, const1),
                pl.BlockSpec(wf2b.shape, const1), pl.BlockSpec(bf2.shape, const1),
                pl.BlockSpec(wf3p.shape, const1), pl.BlockSpec(bf3p.shape, const1),
            ],
            out_specs=pl.BlockSpec((b_pad, 128), const1),
        ),
    )(pooled, wf1b, bf1, wf2b, bf2, wf3p, bf3p)

    return head[:B, :81].reshape(B, 9, 9)


def init_params(key):
    """Deterministic synthetic parameters with the STN3d shapes.
    Weights are stored pre-transposed as (Cin, Cout); biases as (1, Cout)."""
    dims = [
        (9, 64),      # conv1
        (64, 128),    # conv2
        (128, 1024),  # conv3
        (1024, 512),  # fc1
        (512, 256),   # fc2
        (256, 81),    # fc3
    ]
    params = []
    for cin, cout in dims:
        kw, kb, key = jax.random.split(key, 3)
        scale = 1.0 / jnp.sqrt(jnp.float32(cin))
        w = jax.random.uniform(kw, (cin, cout), jnp.float32, -scale, scale)
        b = jax.random.uniform(kb, (1, cout), jnp.float32, -scale, scale)
        params.extend([w, b])
    return tuple(params)


def stn3d_reference(x_ncl, params):
    """Pure-JAX reference using the same bf16-operand / f32-accumulate matmuls."""
    (w1, b1, w2, b2, w3, b3, wf1, bf1, wf2, bf2, wf3, bf3) = params

    def mm(a, w):
        return jnp.dot(a.astype(jnp.bfloat16), w.astype(jnp.bfloat16),
                       preferred_element_type=jnp.float32)

    x = jnp.transpose(x_ncl, (0, 2, 1)).astype(jnp.float32)        # (B, N, 9)
    h = jax.nn.relu(mm(x, w1) + b1)
    h = jax.nn.relu(mm(h, w2) + b2)
    h = jax.nn.relu(mm(h, w3) + b3)                                # (B, N, 1024)
    g = jnp.max(h, axis=1)                                         # (B, 1024)
    f = jax.nn.relu(mm(g, wf1) + bf1)
    f = jax.nn.relu(mm(f, wf2) + bf2)
    f = mm(f, wf3) + bf3                                           # (B, 81)
    return f.reshape(-1, 9, 9)


if __name__ == "__main__":
    key = jax.random.PRNGKey(0)
    kx, kp = jax.random.split(key)

    # N deliberately not a multiple of the tile -> exercises edge padding.
    B, N = 2, 20
    x = jax.random.normal(kx, (B, 9, N), jnp.float32)   # PyTorch NCL input
    params = init_params(kp)

    ref = stn3d_reference(x, params)

    # Multi-tile path (tn=8 -> 3 point tiles): exercises the running-max
    # accumulation and the hoisted bias/relu epilogue.
    out_small = jax.block_until_ready(stn3d_forward(x, params, tn=8))
    # Default-tile path (tn clamps to n_pad -> single tile).
    out_default = jax.block_until_ready(stn3d_forward(x, params))

    assert out_small.shape == (B, 9, 9)
    assert out_default.shape == (B, 9, 9)
    assert jnp.allclose(out_small, ref, atol=1e-3, rtol=1e-3), "mismatch (tn=8)"
    assert jnp.allclose(out_default, ref, atol=1e-3, rtol=1e-3), "mismatch (default tn)"

    print("KERNEL_OK")
</pallas_src>

<mosaic_0001>
module attributes {stable_mosaic.version = 11 : i64} {
  func.func @_conv_pool_kernel(%arg0: i32, %arg1: i32, %arg2: memref<1x8x9xbf16, #tpu.memory_space<vmem>>, %arg3: memref<9x64xbf16, #tpu.memory_space<vmem>>, %arg4: memref<1x64xf32, #tpu.memory_space<vmem>>, %arg5: memref<64x128xbf16, #tpu.memory_space<vmem>>, %arg6: memref<1x128xf32, #tpu.memory_space<vmem>>, %arg7: memref<128x1024xbf16, #tpu.memory_space<vmem>>, %arg8: memref<1x1024xf32, #tpu.memory_space<vmem>>, %arg9: memref<1x1x1024xf32, #tpu.memory_space<vmem>>, %arg10: memref<8x1024xf32, #tpu.memory_space<vmem>>) attributes {dimension_semantics = [#tpu.dimension_semantics<parallel>, #tpu.dimension_semantics<arbitrary>], iteration_bounds = array<i64: 2, 3>, scalar_prefetch = 0 : i64, scratch_operands = 1 : i64, tpu.core_type = #tpu.core_type<tc>, window_params = [{transform_indices = @transform_0, window_bounds = array<i64: 1, 8, 9>}, {pipeline_mode = #tpu.pipeline_mode<synchronous>, transform_indices = @transform_1, window_bounds = array<i64: 9, 64>}, {pipeline_mode = #tpu.pipeline_mode<synchronous>, transform_indices = @transform_2, window_bounds = array<i64: 1, 64>}, {pipeline_mode = #tpu.pipeline_mode<synchronous>, transform_indices = @transform_3, window_bounds = array<i64: 64, 128>}, {pipeline_mode = #tpu.pipeline_mode<synchronous>, transform_indices = @transform_4, window_bounds = array<i64: 1, 128>}, {pipeline_mode = #tpu.pipeline_mode<synchronous>, transform_indices = @transform_5, window_bounds = array<i64: 128, 1024>}, {pipeline_mode = #tpu.pipeline_mode<synchronous>, transform_indices = @transform_6, window_bounds = array<i64: 1, 1024>}, {transform_indices = @transform_7, window_bounds = array<i64: 1, 1, 1024>}]} {
    %c0_i32 = arith.constant 0 : i32
    %0 = arith.cmpi eq, %arg1, %c0_i32 : i32
    %1 = arith.extui %0 : i1 to i32
    %c0_i32_0 = arith.constant 0 : i32
    %2 = arith.cmpi ne, %1, %c0_i32_0 : i32
    scf.if %2 {
      %cst_23 = arith.constant 0xFF800000 : f32
      %31 = vector.broadcast %cst_23 : f32 to vector<8x1024xf32>
      %c0_24 = arith.constant 0 : index
      %c0_25 = arith.constant 0 : index
      %32 = vector.load %arg10[%c0_24, %c0_25] : memref<8x1024xf32, #tpu.memory_space<vmem>>, vector<8x1024xf32>
      tpu.vector_store %arg10[%c0_24, %c0_25], %31 {strides = array<i32>} : memref<8x1024xf32, #tpu.memory_space<vmem>>, vector<8x1024xf32>,
    } else {
    }
    %c0 = arith.constant 0 : index
    %c0_1 = arith.constant 0 : index
    %c0_2 = arith.constant 0 : index
    %3 = vector.load %arg2[%c0, %c0_1, %c0_2] : memref<1x8x9xbf16, #tpu.memory_space<vmem>>, vector<1x8x9xbf16>
    %4 = vector.shape_cast %3 : vector<1x8x9xbf16> to vector<8x9xbf16>
    %c0_3 = arith.constant 0 : index
    %c0_4 = arith.constant 0 : index
    %5 = vector.load %arg3[%c0_3, %c0_4] : memref<9x64xbf16, #tpu.memory_space<vmem>>, vector<9x64xbf16>
    %cst = arith.constant dense<0.000000e+00> : vector<8x64xf32>
    %6 = tpu.matmul %4, %5, %cst {dimension_numbers = #tpu.dot_dimension_numbers<[1], [0], [0], [1], [0, 0, 1, 1], [], []>} : vector<8x9xbf16>, vector<9x64xbf16>, vector<8x64xf32> -> vector<8x64xf32>
    %c0_5 = arith.constant 0 : index
    %c0_6 = arith.constant 0 : index
    %7 = vector.load %arg4[%c0_5, %c0_6] : memref<1x64xf32, #tpu.memory_space<vmem>>, vector<1x64xf32>
    %8 = vector.broadcast %7 : vector<1x64xf32> to vector<8x64xf32>
    %9 = arith.addf %6, %8 : vector<8x64xf32>
    %cst_7 = arith.constant 0.000000e+00 : f32
    %10 = vector.broadcast %cst_7 : f32 to vector<8x64xf32>
    %11 = arith.maximumf %9, %10 : vector<8x64xf32>
    %12 = arith.truncf %11 : vector<8x64xf32> to vector<8x64xbf16>
    %c0_8 = arith.constant 0 : index
    %c0_9 = arith.constant 0 : index
    %13 = vector.load %arg5[%c0_8, %c0_9] : memref<64x128xbf16, #tpu.memory_space<vmem>>, vector<64x128xbf16>
    %cst_10 = arith.constant dense<0.000000e+00> : vector<8x128xf32>
    %14 = tpu.matmul %12, %13, %cst_10 {dimension_numbers = #tpu.dot_dimension_numbers<[1], [0], [0], [1], [0, 0, 1, 1], [], []>} : vector<8x64xbf16>, vector<64x128xbf16>, vector<8x128xf32> -> vector<8x128xf32>
    %c0_11 = arith.constant 0 : index
    %c0_12 = arith.constant 0 : index
    %15 = vector.load %arg6[%c0_11, %c0_12] : memref<1x128xf32, #tpu.memory_space<vmem>>, vector<1x128xf32>
    %16 = vector.broadcast %15 : vector<1x128xf32> to vector<8x128xf32>
    %17 = arith.addf %14, %16 : vector<8x128xf32>
    %cst_13 = arith.constant 0.000000e+00 : f32
    %18 = vector.broadcast %cst_13 : f32 to vector<8x128xf32>
    %19 = arith.maximumf %17, %18 : vector<8x128xf32>
    %20 = arith.truncf %19 : vector<8x128xf32> to vector<8x128xbf16>
    %c0_14 = arith.constant 0 : index
    %c0_15 = arith.constant 0 : index
    %21 = vector.load %arg7[%c0_14, %c0_15] : memref<128x1024xbf16, #tpu.memory_space<vmem>>, vector<128x1024xbf16>
    %cst_16 = arith.constant dense<0.000000e+00> : vector<8x1024xf32>
    %22 = tpu.matmul %20, %21, %cst_16 {dimension_numbers = #tpu.dot_dimension_numbers<[1], [0], [0], [1], [0, 0, 1, 1], [], []>} : vector<8x128xbf16>, vector<128x1024xbf16>, vector<8x1024xf32> -> vector<8x1024xf32>
    %23 = vector.shape_cast %22 : vector<8x1024xf32> to vector<1x8x1024xf32>
    %c0_17 = arith.constant 0 : index
    %c0_18 = arith.constant 0 : index
    %24 = vector.load %arg10[%c0_17, %c0_18] : memref<8x1024xf32, #tpu.memory_space<vmem>>, vector<8x1024xf32>
    %cst_19 = arith.constant dense<0xFF800000> : vector<8x1024xf32>
    %25 = vector.multi_reduction <maximumf>, %23, %cst_19 [0] : vector<1x8x1024xf32> to vector<8x1024xf32>
    %26 = arith.maximumf %24, %25 : vector<8x1024xf32>
    %c0_20 = arith.constant 0 : index
    %c0_21 = arith.constant 0 : index
    %27 = vector.load %arg10[%c0_20, %c0_21] : memref<8x1024xf32, #tpu.memory_space<vmem>>, vector<8x1024xf32>
    tpu.vector_store %arg10[%c0_20, %c0_21], %26 {strides = array<i32>} : memref<8x1024xf32, #tpu.memory_space<vmem>>, vector<8x1024xf32>,
    %c2_i32 = arith.constant 2 : i32
    %28 = arith.cmpi eq, %arg1, %c2_i32 : i32
    %29 = arith.extui %28 : i1 to i32
    %c0_i32_22 = arith.constant 0 : i32
    %30 = arith.cmpi ne, %29, %c0_i32_22 : i32
    scf.if %30 {
      %c0_23 = arith.constant 0 : index
      %c0_24 = arith.constant 0 : index
      %31 = vector.load %arg10[%c0_23, %c0_24] : memref<8x1024xf32, #tpu.memory_space<vmem>>, vector<8x1024xf32>
      %cst_25 = arith.constant dense<0xFF800000> : vector<1024xf32>
      %32 = vector.multi_reduction <maximumf>, %31, %cst_25 [0] : vector<8x1024xf32> to vector<1024xf32>
      %33 = vector.shape_cast %32 : vector<1024xf32> to vector<1x1024xf32>
      %c0_26 = arith.constant 0 : index
      %c0_27 = arith.constant 0 : index
      %34 = vector.load %arg8[%c0_26, %c0_27] : memref<1x1024xf32, #tpu.memory_space<vmem>>, vector<1x1024xf32>
      %35 = arith.addf %33, %34 : vector<1x1024xf32>
      %cst_28 = arith.constant 0.000000e+00 : f32
      %36 = vector.broadcast %cst_28 : f32 to vector<1x1024xf32>
      %37 = arith.maximumf %35, %36 : vector<1x1024xf32>
      %c0_29 = arith.constant 0 : index
      %c0_30 = arith.constant 0 : index
      %c0_31 = arith.constant 0 : index
      %38 = vector.load %arg9[%c0_29, %c0_30, %c0_31] : memref<1x1x1024xf32, #tpu.memory_space<vmem>>, vector<1x1x1024xf32>
      %39 = vector.shape_cast %38 : vector<1x1x1024xf32> to vector<1x1024xf32>
      %40 = vector.shape_cast %37 : vector<1x1024xf32> to vector<1x1x1024xf32>
      tpu.vector_store %arg9[%c0_29, %c0_30, %c0_31], %40 {strides = array<i32>} : memref<1x1x1024xf32, #tpu.memory_space<vmem>>, vector<1x1x1024xf32>,
    } else {
    }
    return
  }
  func.func @transform_0(%arg0: i32, %arg1: i32) -> (i32, i32, i32) {
    %c0_i32 = arith.constant 0 : i32
    %c0_i32_0 = arith.constant 0 : i32
    return %arg0, %arg1, %c0_i32 : i32, i32, i32
  }
  func.func @transform_1(%arg0: i32, %arg1: i32) -> (i32, i32) {
    %c0_i32 = arith.constant 0 : i32
    %c0_i32_0 = arith.constant 0 : i32
    %c0_i32_1 = arith.constant 0 : i32
    return %c0_i32, %c0_i32_0 : i32, i32
  }
  func.func @transform_2(%arg0: i32, %arg1: i32) -> (i32, i32) {
    %c0_i32 = arith.constant 0 : i32
    %c0_i32_0 = arith.constant 0 : i32
    %c0_i32_1 = arith.constant 0 : i32
    return %c0_i32, %c0_i32_0 : i32, i32
  }
  func.func @transform_3(%arg0: i32, %arg1: i32) -> (i32, i32) {
    %c0_i32 = arith.constant 0 : i32
    %c0_i32_0 = arith.constant 0 : i32
    %c0_i32_1 = arith.constant 0 : i32
    return %c0_i32, %c0_i32_0 : i32, i32
  }
  func.func @transform_4(%arg0: i32, %arg1: i32) -> (i32, i32) {
    %c0_i32 = arith.constant 0 : i32
    %c0_i32_0 = arith.constant 0 : i32
    %c0_i32_1 = arith.constant 0 : i32
    return %c0_i32, %c0_i32_0 : i32, i32
  }
  func.func @transform_5(%arg0: i32, %arg1: i32) -> (i32, i32) {
    %c0_i32 = arith.constant 0 : i32
    %c0_i32_0 = arith.constant 0 : i32
    %c0_i32_1 = arith.constant 0 : i32
    return %c0_i32, %c0_i32_0 : i32, i32
  }
  func.func @transform_6(%arg0: i32, %arg1: i32) -> (i32, i32) {
    %c0_i32 = arith.constant 0 : i32
    %c0_i32_0 = arith.constant 0 : i32
    %c0_i32_1 = arith.constant 0 : i32
    return %c0_i32, %c0_i32_0 : i32, i32
  }
  func.func @transform_7(%arg0: i32, %arg1: i32) -> (i32, i32, i32) {
    %c0_i32 = arith.constant 0 : i32
    %c0_i32_0 = arith.constant 0 : i32
    %c0_i32_1 = arith.constant 0 : i32
    return %arg0, %c0_i32, %c0_i32_0 : i32, i32, i32
  }
}

module attributes {stable_mosaic.version = 11 : i64} {
  func.func @_conv_pool_kernel(%arg0: i32, %arg1: i32, %arg2: memref<1x8x9xbf16, #tpu.memory_space<vmem>>, %arg3: memref<9x64xbf16, #tpu.memory_space<vmem>>, %arg4: memref<1x64xf32, #tpu.memory_space<vmem>>, %arg5: memref<64x128xbf16, #tpu.memory_space<vmem>>, %arg6: memref<1x128xf32, #tpu.memory_space<vmem>>, %arg7: memref<128x1024xbf16, #tpu.memory_space<vmem>>, %arg8: memref<1x1024xf32, #tpu.memory_space<vmem>>, %arg9: memref<1x1x1024xf32, #tpu.memory_space<vmem>>, %arg10: memref<8x1024xf32, #tpu.memory_space<vmem>>) attributes {dimension_semantics = [#tpu.dimension_semantics<parallel>, #tpu.dimension_semantics<arbitrary>], iteration_bounds = array<i64: 2, 3>, scalar_prefetch = 0 : i64, scratch_operands = 1 : i64, tpu.core_type = #tpu.core_type<tc>, window_params = [{transform_indices = @transform_0, window_bounds = array<i64: 1, 8, 9>}, {pipeline_mode = #tpu.pipeline_mode<synchronous>, transform_indices = @transform_1, window_bounds = array<i64: 9, 64>}, {pipeline_mode = #tpu.pipeline_mode<synchronous>, transform_indices = @transform_2, window_bounds = array<i64: 1, 64>}, {pipeline_mode = #tpu.pipeline_mode<synchronous>, transform_indices = @transform_3, window_bounds = array<i64: 64, 128>}, {pipeline_mode = #tpu.pipeline_mode<synchronous>, transform_indices = @transform_4, window_bounds = array<i64: 1, 128>}, {pipeline_mode = #tpu.pipeline_mode<synchronous>, transform_indices = @transform_5, window_bounds = array<i64: 128, 1024>}, {pipeline_mode = #tpu.pipeline_mode<synchronous>, transform_indices = @transform_6, window_bounds = array<i64: 1, 1024>}, {transform_indices = @transform_7, window_bounds = array<i64: 1, 1, 1024>}]} {
    %c0_i32 = arith.constant 0 : i32
    %0 = arith.cmpi eq, %arg1, %c0_i32 : i32
    %1 = arith.extui %0 : i1 to i32
    %c0_i32_0 = arith.constant 0 : i32
    %2 = arith.cmpi ne, %1, %c0_i32_0 : i32
    scf.if %2 {
      %cst_23 = arith.constant 0xFF800000 : f32
      %31 = vector.broadcast %cst_23 : f32 to vector<8x1024xf32>
      %c0_24 = arith.constant 0 : index
      %c0_25 = arith.constant 0 : index
      %32 = vector.load %arg10[%c0_24, %c0_25] : memref<8x1024xf32, #tpu.memory_space<vmem>>, vector<8x1024xf32>
      tpu.vector_store %arg10[%c0_24, %c0_25], %31 {strides = array<i32>} : memref<8x1024xf32, #tpu.memory_space<vmem>>, vector<8x1024xf32>,
    } else {
    }
    %c0 = arith.constant 0 : index
    %c0_1 = arith.constant 0 : index
    %c0_2 = arith.constant 0 : index
    %3 = vector.load %arg2[%c0, %c0_1, %c0_2] : memref<1x8x9xbf16, #tpu.memory_space<vmem>>, vector<1x8x9xbf16>
    %4 = vector.shape_cast %3 : vector<1x8x9xbf16> to vector<8x9xbf16>
    %c0_3 = arith.constant 0 : index
    %c0_4 = arith.constant 0 : index
    %5 = vector.load %arg3[%c0_3, %c0_4] : memref<9x64xbf16, #tpu.memory_space<vmem>>, vector<9x64xbf16>
    %cst = arith.constant dense<0.000000e+00> : vector<8x64xf32>
    %6 = tpu.matmul %4, %5, %cst {dimension_numbers = #tpu.dot_dimension_numbers<[1], [0], [0], [1], [0, 0, 1, 1], [], []>} : vector<8x9xbf16>, vector<9x64xbf16>, vector<8x64xf32> -> vector<8x64xf32>
    %c0_5 = arith.constant 0 : index
    %c0_6 = arith.constant 0 : index
    %7 = vector.load %arg4[%c0_5, %c0_6] : memref<1x64xf32, #tpu.memory_space<vmem>>, vector<1x64xf32>
    %8 = vector.broadcast %7 : vector<1x64xf32> to vector<8x64xf32>
    %9 = arith.addf %6, %8 : vector<8x64xf32>
    %cst_7 = arith.constant 0.000000e+00 : f32
    %10 = vector.broadcast %cst_7 : f32 to vector<8x64xf32>
    %11 = arith.maximumf %9, %10 : vector<8x64xf32>
    %12 = arith.truncf %11 : vector<8x64xf32> to vector<8x64xbf16>
    %c0_8 = arith.constant 0 : index
    %c0_9 = arith.constant 0 : index
    %13 = vector.load %arg5[%c0_8, %c0_9] : memref<64x128xbf16, #tpu.memory_space<vmem>>, vector<64x128xbf16>
    %cst_10 = arith.constant dense<0.000000e+00> : vector<8x128xf32>
    %14 = tpu.matmul %12, %13, %cst_10 {dimension_numbers = #tpu.dot_dimension_numbers<[1], [0], [0], [1], [0, 0, 1, 1], [], []>} : vector<8x64xbf16>, vector<64x128xbf16>, vector<8x128xf32> -> vector<8x128xf32>
    %c0_11 = arith.constant 0 : index
    %c0_12 = arith.constant 0 : index
    %15 = vector.load %arg6[%c0_11, %c0_12] : memref<1x128xf32, #tpu.memory_space<vmem>>, vector<1x128xf32>
    %16 = vector.broadcast %15 : vector<1x128xf32> to vector<8x128xf32>
    %17 = arith.addf %14, %16 : vector<8x128xf32>
    %cst_13 = arith.constant 0.000000e+00 : f32
    %18 = vector.broadcast %cst_13 : f32 to vector<8x128xf32>
    %19 = arith.maximumf %17, %18 : vector<8x128xf32>
    %20 = arith.truncf %19 : vector<8x128xf32> to vector<8x128xbf16>
    %c0_14 = arith.constant 0 : index
    %c0_15 = arith.constant 0 : index
    %21 = vector.load %arg7[%c0_14, %c0_15] : memref<128x1024xbf16, #tpu.memory_space<vmem>>, vector<128x1024xbf16>
    %cst_16 = arith.constant dense<0.000000e+00> : vector<8x1024xf32>
    %22 = tpu.matmul %20, %21, %cst_16 {dimension_numbers = #tpu.dot_dimension_numbers<[1], [0], [0], [1], [0, 0, 1, 1], [], []>} : vector<8x128xbf16>, vector<128x1024xbf16>, vector<8x1024xf32> -> vector<8x1024xf32>
    %23 = vector.shape_cast %22 : vector<8x1024xf32> to vector<1x8x1024xf32>
    %c0_17 = arith.constant 0 : index
    %c0_18 = arith.constant 0 : index
    %24 = vector.load %arg10[%c0_17, %c0_18] : memref<8x1024xf32, #tpu.memory_space<vmem>>, vector<8x1024xf32>
    %cst_19 = arith.constant dense<0xFF800000> : vector<8x1024xf32>
    %25 = vector.multi_reduction <maximumf>, %23, %cst_19 [0] : vector<1x8x1024xf32> to vector<8x1024xf32>
    %26 = arith.maximumf %24, %25 : vector<8x1024xf32>
    %c0_20 = arith.constant 0 : index
    %c0_21 = arith.constant 0 : index
    %27 = vector.load %arg10[%c0_20, %c0_21] : memref<8x1024xf32, #tpu.memory_space<vmem>>, vector<8x1024xf32>
    tpu.vector_store %arg10[%c0_20, %c0_21], %26 {strides = array<i32>} : memref<8x1024xf32, #tpu.memory_space<vmem>>, vector<8x1024xf32>,
    %c2_i32 = arith.constant 2 : i32
    %28 = arith.cmpi eq, %arg1, %c2_i32 : i32
    %29 = arith.extui %28 : i1 to i32
    %c0_i32_22 = arith.constant 0 : i32
    %30 = arith.cmpi ne, %29, %c0_i32_22 : i32
    scf.if %30 {
      %c0_23 = arith.constant 0 : index
      %c0_24 = arith.constant 0 : index
      %31 = vector.load %arg10[%c0_23, %c0_24] : memref<8x1024xf32, #tpu.memory_space<vmem>>, vector<8x1024xf32>
      %cst_25 = arith.constant dense<0xFF800000> : vector<1024xf32>
      %32 = vector.multi_reduction <maximumf>, %31, %cst_25 [0] : vector<8x1024xf32> to vector<1024xf32>
      %33 = vector.shape_cast %32 : vector<1024xf32> to vector<1x1024xf32>
      %c0_26 = arith.constant 0 : index
      %c0_27 = arith.constant 0 : index
      %34 = vector.load %arg8[%c0_26, %c0_27] : memref<1x1024xf32, #tpu.memory_space<vmem>>, vector<1x1024xf32>
      %35 = arith.addf %33, %34 : vector<1x1024xf32>
      %cst_28 = arith.constant 0.000000e+00 : f32
      %36 = vector.broadcast %cst_28 : f32 to vector<1x1024xf32>
      %37 = arith.maximumf %35, %36 : vector<1x1024xf32>
      %c0_29 = arith.constant 0 : index
      %c0_30 = arith.constant 0 : index
      %c0_31 = arith.constant 0 : index
      %38 = vector.load %arg9[%c0_29, %c0_30, %c0_31] : memref<1x1x1024xf32, #tpu.memory_space<vmem>>, vector<1x1x1024xf32>
      %39 = vector.shape_cast %38 : vector<1x1x1024xf32> to vector<1x1024xf32>
      %40 = vector.shape_cast %37 : vector<1x1024xf32> to vector<1x1x1024xf32>
      tpu.vector_store %arg9[%c0_29, %c0_30, %c0_31], %40 {strides = array<i32>} : memref<1x1x1024xf32, #tpu.memory_space<vmem>>, vector<1x1x1024xf32>,
    } else {
    }
    return
  }
  func.func @transform_0(%arg0: i32, %arg1: i32) -> (i32, i32, i32) {
    %c0_i32 = arith.constant 0 : i32
    %c0_i32_0 = arith.constant 0 : i32
    return %arg0, %arg1, %c0_i32 : i32, i32, i32
  }
  func.func @transform_1(%arg0: i32, %arg1: i32) -> (i32, i32) {
    %c0_i32 = arith.constant 0 : i32
    %c0_i32_0 = arith.constant 0 : i32
    %c0_i32_1 = arith.constant 0 : i32
    return %c0_i32, %c0_i32_0 : i32, i32
  }
  func.func @transform_2(%arg0: i32, %arg1: i32) -> (i32, i32) {
    %c0_i32 = arith.constant 0 : i32
    %c0_i32_0 = arith.constant 0 : i32
    %c0_i32_1 = arith.constant 0 : i32
    return %c0_i32, %c0_i32_0 : i32, i32
  }
  func.func @transform_3(%arg0: i32, %arg1: i32) -> (i32, i32) {
    %c0_i32 = arith.constant 0 : i32
    %c0_i32_0 = arith.constant 0 : i32
    %c0_i32_1 = arith.constant 0 : i32
    return %c0_i32, %c0_i32_0 : i32, i32
  }
  func.func @transform_4(%arg0: i32, %arg1: i32) -> (i32, i32) {
    %c0_i32 = arith.constant 0 : i32
    %c0_i32_0 = arith.constant 0 : i32
    %c0_i32_1 = arith.constant 0 : i32
    return %c0_i32, %c0_i32_0 : i32, i32
  }
  func.func @transform_5(%arg0: i32, %arg1: i32) -> (i32, i32) {
    %c0_i32 = arith.constant 0 : i32
    %c0_i32_0 = arith.constant 0 : i32
    %c0_i32_1 = arith.constant 0 : i32
    return %c0_i32, %c0_i32_0 : i32, i32
  }
  func.func @transform_6(%arg0: i32, %arg1: i32) -> (i32, i32) {
    %c0_i32 = arith.constant 0 : i32
    %c0_i32_0 = arith.constant 0 : i32
    %c0_i32_1 = arith.constant 0 : i32
    return %c0_i32, %c0_i32_0 : i32, i32
  }
  func.func @transform_7(%arg0: i32, %arg1: i32) -> (i32, i32, i32) {
    %c0_i32 = arith.constant 0 : i32
    %c0_i32_0 = arith.constant 0 : i32
    %c0_i32_1 = arith.constant 0 : i32
    return %arg0, %c0_i32, %c0_i32_0 : i32, i32, i32
  }
}

module attributes {stable_mosaic.version = 11 : i64} {
  func.func @_conv_pool_kernel(%arg0: i32, %arg1: i32, %arg2: memref<1x8x9xbf16, #tpu.memory_space<vmem>>, %arg3: memref<9x64xbf16, #tpu.memory_space<vmem>>, %arg4: memref<1x64xf32, #tpu.memory_space<vmem>>, %arg5: memref<64x128xbf16, #tpu.memory_space<vmem>>, %arg6: memref<1x128xf32, #tpu.memory_space<vmem>>, %arg7: memref<128x1024xbf16, #tpu.memory_space<vmem>>, %arg8: memref<1x1024xf32, #tpu.memory_space<vmem>>, %arg9: memref<1x1x1024xf32, #tpu.memory_space<vmem>>, %arg10: memref<1x1024xf32, #tpu.memory_space<vmem>>) attributes {dimension_semantics = [#tpu.dimension_semantics<parallel>, #tpu.dimension_semantics<arbitrary>], iteration_bounds = array<i64: 2, 3>, scalar_prefetch = 0 : i64, scratch_operands = 1 : i64, tpu.core_type = #tpu.core_type<tc>, window_params = [{transform_indices = @transform_0, window_bounds = array<i64: 1, 8, 9>}, {pipeline_mode = #tpu.pipeline_mode<synchronous>, transform_indices = @transform_1, window_bounds = array<i64: 9, 64>}, {pipeline_mode = #tpu.pipeline_mode<synchronous>, transform_indices = @transform_2, window_bounds = array<i64: 1, 64>}, {pipeline_mode = #tpu.pipeline_mode<synchronous>, transform_indices = @transform_3, window_bounds = array<i64: 64, 128>}, {pipeline_mode = #tpu.pipeline_mode<synchronous>, transform_indices = @transform_4, window_bounds = array<i64: 1, 128>}, {pipeline_mode = #tpu.pipeline_mode<synchronous>, transform_indices = @transform_5, window_bounds = array<i64: 128, 1024>}, {pipeline_mode = #tpu.pipeline_mode<synchronous>, transform_indices = @transform_6, window_bounds = array<i64: 1, 1024>}, {transform_indices = @transform_7, window_bounds = array<i64: 1, 1, 1024>}]} {
    %c0_i32 = arith.constant 0 : i32
    %0 = arith.cmpi eq, %arg1, %c0_i32 : i32
    %1 = arith.extui %0 : i1 to i32
    %c0_i32_0 = arith.constant 0 : i32
    %2 = arith.cmpi ne, %1, %c0_i32_0 : i32
    scf.if %2 {
      %cst_23 = arith.constant 0xFF800000 : f32
      %31 = vector.broadcast %cst_23 : f32 to vector<1x1024xf32>
      %c0_24 = arith.constant 0 : index
      %c0_25 = arith.constant 0 : index
      %32 = vector.load %arg10[%c0_24, %c0_25] : memref<1x1024xf32, #tpu.memory_space<vmem>>, vector<1x1024xf32>
      tpu.vector_store %arg10[%c0_24, %c0_25], %31 {strides = array<i32>} : memref<1x1024xf32, #tpu.memory_space<vmem>>, vector<1x1024xf32>,
    } else {
    }
    %c0 = arith.constant 0 : index
    %c0_1 = arith.constant 0 : index
    %c0_2 = arith.constant 0 : index
    %3 = vector.load %arg2[%c0, %c0_1, %c0_2] : memref<1x8x9xbf16, #tpu.memory_space<vmem>>, vector<1x8x9xbf16>
    %4 = vector.shape_cast %3 : vector<1x8x9xbf16> to vector<8x9xbf16>
    %c0_3 = arith.constant 0 : index
    %c0_4 = arith.constant 0 : index
    %5 = vector.load %arg3[%c0_3, %c0_4] : memref<9x64xbf16, #tpu.memory_space<vmem>>, vector<9x64xbf16>
    %cst = arith.constant dense<0.000000e+00> : vector<8x64xf32>
    %6 = tpu.matmul %4, %5, %cst {dimension_numbers = #tpu.dot_dimension_numbers<[1], [0], [0], [1], [0, 0, 1, 1], [], []>} : vector<8x9xbf16>, vector<9x64xbf16>, vector<8x64xf32> -> vector<8x64xf32>
    %c0_5 = arith.constant 0 : index
    %c0_6 = arith.constant 0 : index
    %7 = vector.load %arg4[%c0_5, %c0_6] : memref<1x64xf32, #tpu.memory_space<vmem>>, vector<1x64xf32>
    %8 = vector.broadcast %7 : vector<1x64xf32> to vector<8x64xf32>
    %9 = arith.addf %6, %8 : vector<8x64xf32>
    %cst_7 = arith.constant 0.000000e+00 : f32
    %10 = vector.broadcast %cst_7 : f32 to vector<8x64xf32>
    %11 = arith.maximumf %9, %10 : vector<8x64xf32>
    %12 = arith.truncf %11 : vector<8x64xf32> to vector<8x64xbf16>
    %c0_8 = arith.constant 0 : index
    %c0_9 = arith.constant 0 : index
    %13 = vector.load %arg5[%c0_8, %c0_9] : memref<64x128xbf16, #tpu.memory_space<vmem>>, vector<64x128xbf16>
    %cst_10 = arith.constant dense<0.000000e+00> : vector<8x128xf32>
    %14 = tpu.matmul %12, %13, %cst_10 {dimension_numbers = #tpu.dot_dimension_numbers<[1], [0], [0], [1], [0, 0, 1, 1], [], []>} : vector<8x64xbf16>, vector<64x128xbf16>, vector<8x128xf32> -> vector<8x128xf32>
    %c0_11 = arith.constant 0 : index
    %c0_12 = arith.constant 0 : index
    %15 = vector.load %arg6[%c0_11, %c0_12] : memref<1x128xf32, #tpu.memory_space<vmem>>, vector<1x128xf32>
    %16 = vector.broadcast %15 : vector<1x128xf32> to vector<8x128xf32>
    %17 = arith.addf %14, %16 : vector<8x128xf32>
    %cst_13 = arith.constant 0.000000e+00 : f32
    %18 = vector.broadcast %cst_13 : f32 to vector<8x128xf32>
    %19 = arith.maximumf %17, %18 : vector<8x128xf32>
    %20 = arith.truncf %19 : vector<8x128xf32> to vector<8x128xbf16>
    %c0_14 = arith.constant 0 : index
    %c0_15 = arith.constant 0 : index
    %21 = vector.load %arg7[%c0_14, %c0_15] : memref<128x1024xbf16, #tpu.memory_space<vmem>>, vector<128x1024xbf16>
    %cst_16 = arith.constant dense<0.000000e+00> : vector<8x1024xf32>
    %22 = tpu.matmul %20, %21, %cst_16 {dimension_numbers = #tpu.dot_dimension_numbers<[1], [0], [0], [1], [0, 0, 1, 1], [], []>} : vector<8x128xbf16>, vector<128x1024xbf16>, vector<8x1024xf32> -> vector<8x1024xf32>
    %c0_17 = arith.constant 0 : index
    %c0_18 = arith.constant 0 : index
    %23 = vector.load %arg10[%c0_17, %c0_18] : memref<1x1024xf32, #tpu.memory_space<vmem>>, vector<1x1024xf32>
    %cst_19 = arith.constant dense<0xFF800000> : vector<1024xf32>
    %24 = vector.multi_reduction <maximumf>, %22, %cst_19 [0] : vector<8x1024xf32> to vector<1024xf32>
    %25 = vector.shape_cast %24 : vector<1024xf32> to vector<1x1024xf32>
    %26 = arith.maximumf %23, %25 : vector<1x1024xf32>
    %c0_20 = arith.constant 0 : index
    %c0_21 = arith.constant 0 : index
    %27 = vector.load %arg10[%c0_20, %c0_21] : memref<1x1024xf32, #tpu.memory_space<vmem>>, vector<1x1024xf32>
    tpu.vector_store %arg10[%c0_20, %c0_21], %26 {strides = array<i32>} : memref<1x1024xf32, #tpu.memory_space<vmem>>, vector<1x1024xf32>,
    %c2_i32 = arith.constant 2 : i32
    %28 = arith.cmpi eq, %arg1, %c2_i32 : i32
    %29 = arith.extui %28 : i1 to i32
    %c0_i32_22 = arith.constant 0 : i32
    %30 = arith.cmpi ne, %29, %c0_i32_22 : i32
    scf.if %30 {
      %c0_23 = arith.constant 0 : index
      %c0_24 = arith.constant 0 : index
      %31 = vector.load %arg10[%c0_23, %c0_24] : memref<1x1024xf32, #tpu.memory_space<vmem>>, vector<1x1024xf32>
      %c0_25 = arith.constant 0 : index
      %c0_26 = arith.constant 0 : index
      %32 = vector.load %arg8[%c0_25, %c0_26] : memref<1x1024xf32, #tpu.memory_space<vmem>>, vector<1x1024xf32>
      %33 = arith.addf %31, %32 : vector<1x1024xf32>
      %cst_27 = arith.constant 0.000000e+00 : f32
      %34 = vector.broadcast %cst_27 : f32 to vector<1x1024xf32>
      %35 = arith.maximumf %33, %34 : vector<1x1024xf32>
      %c0_28 = arith.constant 0 : index
      %c0_29 = arith.constant 0 : index
      %c0_30 = arith.constant 0 : index
      %36 = vector.load %arg9[%c0_28, %c0_29, %c0_30] : memref<1x1x1024xf32, #tpu.memory_space<vmem>>, vector<1x1x1024xf32>
      %37 = vector.shape_cast %36 : vector<1x1x1024xf32> to vector<1x1024xf32>
      %38 = vector.shape_cast %35 : vector<1x1024xf32> to vector<1x1x1024xf32>
      tpu.vector_store %arg9[%c0_28, %c0_29, %c0_30], %38 {strides = array<i32>} : memref<1x1x1024xf32, #tpu.memory_space<vmem>>, vector<1x1x1024xf32>,
    } else {
    }
    return
  }
  func.func @transform_0(%arg0: i32, %arg1: i32) -> (i32, i32, i32) {
    %c0_i32 = arith.constant 0 : i32
    %c0_i32_0 = arith.constant 0 : i32
    return %arg0, %arg1, %c0_i32 : i32, i32, i32
  }
  func.func @transform_1(%arg0: i32, %arg1: i32) -> (i32, i32) {
    %c0_i32 = arith.constant 0 : i32
    %c0_i32_0 = arith.constant 0 : i32
    %c0_i32_1 = arith.constant 0 : i32
    return %c0_i32, %c0_i32_0 : i32, i32
  }
  func.func @transform_2(%arg0: i32, %arg1: i32) -> (i32, i32) {
    %c0_i32 = arith.constant 0 : i32
    %c0_i32_0 = arith.constant 0 : i32
    %c0_i32_1 = arith.constant 0 : i32
    return %c0_i32, %c0_i32_0 : i32, i32
  }
  func.func @transform_3(%arg0: i32, %arg1: i32) -> (i32, i32) {
    %c0_i32 = arith.constant 0 : i32
    %c0_i32_0 = arith.constant 0 : i32
    %c0_i32_1 = arith.constant 0 : i32
    return %c0_i32, %c0_i32_0 : i32, i32
  }
  func.func @transform_4(%arg0: i32, %arg1: i32) -> (i32, i32) {
    %c0_i32 = arith.constant 0 : i32
    %c0_i32_0 = arith.constant 0 : i32
    %c0_i32_1 = arith.constant 0 : i32
    return %c0_i32, %c0_i32_0 : i32, i32
  }
  func.func @transform_5(%arg0: i32, %arg1: i32) -> (i32, i32) {
    %c0_i32 = arith.constant 0 : i32
    %c0_i32_0 = arith.constant 0 : i32
    %c0_i32_1 = arith.constant 0 : i32
    return %c0_i32, %c0_i32_0 : i32, i32
  }
  func.func @transform_6(%arg0: i32, %arg1: i32) -> (i32, i32) {
    %c0_i32 = arith.constant 0 : i32
    %c0_i32_0 = arith.constant 0 : i32
    %c0_i32_1 = arith.constant 0 : i32
    return %c0_i32, %c0_i32_0 : i32, i32
  }
  func.func @transform_7(%arg0: i32, %arg1: i32) -> (i32, i32, i32) {
    %c0_i32 = arith.constant 0 : i32
    %c0_i32_0 = arith.constant 0 : i32
    %c0_i32_1 = arith.constant 0 : i32
    return %arg0, %c0_i32, %c0_i32_0 : i32, i32, i32
  }
}

</mosaic_0001>

<llo_original>
// kernel: tpu_custom_call.1
$region0: #{tpu_custom_call.1}
  #allocation0 [shape = 'u32[]', space=smem, size = 0x4, offset = 0x4, fixed_abs, tag = 'smem constant byte address 0x4 - core index']
  #allocation1 [shape = 'u32[144,128]{1,0:T(1,128)}', space=vmem, size = 0x12000, scoped, tag = 'internal scratch']
  #allocation2 [shape = 'f32[8,1024]{1,0:T(8,128)}', space=vmem, size = 0x8000, scoped, tag = 'scratch operand']
  %s0 = inlined_call_operand.vmem [shape: bf16[2,24,9], index: 0, kind: input, shape index: {}]
  %s1 = inlined_call_operand.hbm [shape: bf16[9,64], index: 1, kind: input, shape index: {}]
  %s2 = inlined_call_operand.hbm [shape: f32[1,64], index: 2, kind: input, shape index: {}]
  %s3 = inlined_call_operand.vmem [shape: bf16[64,128], index: 3, kind: input, shape index: {}]
  %s4 = inlined_call_operand.hbm [shape: f32[1,128], index: 4, kind: input, shape index: {}]
  %s5 = inlined_call_operand.hbm [shape: bf16[128,1024], index: 5, kind: input, shape index: {}]
  %s6 = inlined_call_operand.vmem [shape: f32[1,1024], index: 6, kind: input, shape index: {}]
  %s7 = inlined_call_operand.hbm [shape: f32[2,1,1024], index: 7, kind: output, shape index: {}]
  %s8 = sld [smem:[#allocation0]]
  $region85: #{tpu_custom_call.1} parent=0
    _
  %s10 = ssub.s32 1, %s8
  %s11 = scalar_select 0, %s10, %s8
  $region1: #{tpu_custom_call.1} parent=0
    #allocation3 [shape = 'u8[4096]{0}', space=vmem, size = 0x1000, scoped, tag = 'input window, operand 1, single buffered']
    #allocation4 [shape = 's32[2]{0}', space=sflag, size = 0x8, scoped, tag = 'scoped memory for tpu_custom_call.1']
    #allocation5 [shape = 's32[2]{0}', space=sflag, size = 0x8, scoped, tag = 'scoped memory for tpu_custom_call.1']
    #allocation6 [shape = 'u8[512]{0}', space=vmem, size = 0x400, scoped, tag = 'input window, operand 2, single buffered']
    #allocation7 [shape = 's32[1]{0}', space=sflag, size = 0x4, scoped, tag = 'scoped memory for tpu_custom_call.1']
    #allocation8 [shape = 'u8[512]{0}', space=vmem, size = 0x400, scoped, tag = 'input window, operand 4, single buffered']
    #allocation9 [shape = 'u8[262144]{0}', space=vmem, size = 0x40000, scoped, tag = 'input window, operand 5, single buffered']
    #allocation10 [shape = 's32[1]{0}', space=sflag, size = 0x4, scoped, tag = 'scoped memory for tpu_custom_call.1']
    #allocation11 [shape = 'u8[8192]{0}', space=vmem, size = 0x2000, scoped, tag = 'output window, operand 0']
    %12 = vsyncpa [#allocation4], 0
    %13 = vsyncpa [#allocation7], 0
    %14 = vsyncpa [#allocation10], 0
    %15 = vsyncpa [#allocation5], 0
    %s16 = scalar_lea.sflag [#allocation5], 1
    %17 = vsyncpa %s16, 0
    loop: start=0, step=1, limit=8
    $region2: #{tpu_custom_call.1} parent=1 // loop_pre_header
      _
    $region3: #{tpu_custom_call.1} parent=1 // loop_header
      %s19 = sphi 0, %s23
      %p20 = scmp.ge.s32.totalorder %s19, 8
      %s26 = sphi 0, %s38
      %s27 = sphi 0, %s34
      %s28 = sphi 0, %s26
      %s29 = sphi 0, %s27
      %s30 = sphi 0, %s28
      %s31 = sphi 0, %s29
      %s43 = sphi 0, %s45
      %s46 = sphi 0, %s43
      %s47 = sphi 0, %s46
      %s63 = sphi 0, %s47
      %s67 = sphi 0, %s67
      %s69 = sphi 0, %s67
      %s70 = sphi 0, %s69
      %s84 = sphi 0, %s70
      %s88 = sphi 0, %s88
      %s90 = sphi 0, %s88
      %s91 = sphi 0, %s90
      %s105 = sphi 0, %s91
      %s109 = sphi 0, %s109
      %s111 = sphi 0, %s109
      %s112 = sphi 0, %s111
      %s126 = sphi 0, %s112
      %s130 = sphi 0, %s130
      %s132 = sphi 0, %s130
      %s133 = sphi 0, %s132
      %s147 = sphi 0, %s133
      %s151 = sphi 0, %s151
      %s153 = sphi 0, %s151
      %s154 = sphi 0, %s153
      %s168 = sphi 0, %s154
      %s172 = sphi 0, %s172
      %s174 = sphi 0, %s172
      %s175 = sphi 0, %s174
      %s189 = sphi 0, %s175
      %s195 = sphi 0, %s197
      %s198 = sphi 0, %s195
      %s199 = sphi 0, %s198
      %s215 = sphi 0, %s199
    $region4: #{tpu_custom_call.1} parent=1 // loop_header_branch
      %22 = sbr.rel (%p20) target = $region8
    $region5: #{tpu_custom_call.1} parent=1 // loop_body
      %s24 = ssub.s32 %s19, 1
      %s25 = ssub.s32 %s19, 2
      %s32 = sadd.s32 1, %s27
      %p33 = scmp.ge.s32.totalorder %s32, 3
      %s34 = scalar_select %p33, 0, %s32
      %s35 = sadd.s32 1, %s26
      %s36 = scalar_select %p33, %s35, %s26
      %p37 = scmp.ge.s32.totalorder %s36, 2
      %s38 = scalar_select %p37, 0, %s36
      %s39 = ssub.s32 %s26, %s38
      %s40 = ssub.s32 %s27, %s34
      %s41 = sor.u32 %s39, %s40
      %p42 = scmp.eq.s32.totalorder %s41, 0
      %s44 = sadd.s32 %s43, 1
      %s45 = scalar_select %p42, %s43, %s44
      %p48 = pneg %p42
      %p49 = scmp.eq.s32.totalorder %s19, 5
      %p50 = por %p48, %p49
      %p51 = scmp.ne.s32.totalorder %s43, %s46
      %p52 = scmp.eq.s32.totalorder %s19, 0
      %p53 = por %p51, %p52
      %p54 = scmp.ne.s32.totalorder %s43, %s46
      %p55 = scmp.eq.s32.totalorder %s24, 5
      %p56 = por %p54, %p55
      %p57 = scmp.ne.s32.totalorder %s46, %s47
      %p58 = scmp.eq.s32.totalorder %s24, 0
      %p59 = por %p57, %p58
      %p60 = scmp.ne.s32.totalorder %s46, %s47
      %p61 = scmp.eq.s32.totalorder %s25, 5
      %p62 = por %p60, %p61
      %p64 = scmp.ne.s32.totalorder %s47, %s63
      %p65 = scmp.eq.s32.totalorder %s25, 0
      %p66 = por %p64, %p65
      %s68 = sadd.s32 %s67, 1
      %p71 = scmp.eq.s32.totalorder %s19, 5
      %p72 = scmp.ne.s32.totalorder %s67, %s69
      %p73 = scmp.eq.s32.totalorder %s19, 0
      %p74 = por %p72, %p73
      %p75 = scmp.ne.s32.totalorder %s67, %s69
      %p76 = scmp.eq.s32.totalorder %s24, 5
      %p77 = por %p75, %p76
      %p78 = scmp.ne.s32.totalorder %s69, %s70
      %p79 = scmp.eq.s32.totalorder %s24, 0
      %p80 = por %p78, %p79
      %p81 = scmp.ne.s32.totalorder %s69, %s70
      %p82 = scmp.eq.s32.totalorder %s25, 5
      %p83 = por %p81, %p82
      %p85 = scmp.ne.s32.totalorder %s70, %s84
      %p86 = scmp.eq.s32.totalorder %s25, 0
      %p87 = por %p85, %p86
      %s89 = sadd.s32 %s88, 1
      %p92 = scmp.eq.s32.totalorder %s19, 5
      %p93 = scmp.ne.s32.totalorder %s88, %s90
      %p94 = scmp.eq.s32.totalorder %s19, 0
      %p95 = por %p93, %p94
      %p96 = scmp.ne.s32.totalorder %s88, %s90
      %p97 = scmp.eq.s32.totalorder %s24, 5
      %p98 = por %p96, %p97
      %p99 = scmp.ne.s32.totalorder %s90, %s91
      %p100 = scmp.eq.s32.totalorder %s24, 0
      %p101 = por %p99, %p100
      %p102 = scmp.ne.s32.totalorder %s90, %s91
      %p103 = scmp.eq.s32.totalorder %s25, 5
      %p104 = por %p102, %p103
      %p106 = scmp.ne.s32.totalorder %s91, %s105
      %p107 = scmp.eq.s32.totalorder %s25, 0
      %p108 = por %p106, %p107
      %s110 = sadd.s32 %s109, 1
      %p113 = scmp.eq.s32.totalorder %s19, 5
      %p114 = scmp.ne.s32.totalorder %s109, %s111
      %p115 = scmp.eq.s32.totalorder %s19, 0
      %p116 = por %p114, %p115
      %p117 = scmp.ne.s32.totalorder %s109, %s111
      %p118 = scmp.eq.s32.totalorder %s24, 5
      %p119 = por %p117, %p118
      %p120 = scmp.ne.s32.totalorder %s111, %s112
      %p121 = scmp.eq.s32.totalorder %s24, 0
      %p122 = por %p120, %p121
      %p123 = scmp.ne.s32.totalorder %s111, %s112
      %p124 = scmp.eq.s32.totalorder %s25, 5
      %p125 = por %p123, %p124
      %p127 = scmp.ne.s32.totalorder %s112, %s126
      %p128 = scmp.eq.s32.totalorder %s25, 0
      %p129 = por %p127, %p128
      %s131 = sadd.s32 %s130, 1
      %p134 = scmp.eq.s32.totalorder %s19, 5
      %p135 = scmp.ne.s32.totalorder %s130, %s132
      %p136 = scmp.eq.s32.totalorder %s19, 0
      %p137 = por %p135, %p136
      %p138 = scmp.ne.s32.totalorder %s130, %s132
      %p139 = scmp.eq.s32.totalorder %s24, 5
      %p140 = por %p138, %p139
      %p141 = scmp.ne.s32.totalorder %s132, %s133
      %p142 = scmp.eq.s32.totalorder %s24, 0
      %p143 = por %p141, %p142
      %p144 = scmp.ne.s32.totalorder %s132, %s133
      %p145 = scmp.eq.s32.totalorder %s25, 5
      %p146 = por %p144, %p145
      %p148 = scmp.ne.s32.totalorder %s133, %s147
      %p149 = scmp.eq.s32.totalorder %s25, 0
      %p150 = por %p148, %p149
      %s152 = sadd.s32 %s151, 1
      %p155 = scmp.eq.s32.totalorder %s19, 5
      %p156 = scmp.ne.s32.totalorder %s151, %s153
      %p157 = scmp.eq.s32.totalorder %s19, 0
      %p158 = por %p156, %p157
      %p159 = scmp.ne.s32.totalorder %s151, %s153
      %p160 = scmp.eq.s32.totalorder %s24, 5
      %p161 = por %p159, %p160
      %p162 = scmp.ne.s32.totalorder %s153, %s154
      %p163 = scmp.eq.s32.totalorder %s24, 0
      %p164 = por %p162, %p163
      %p165 = scmp.ne.s32.totalorder %s153, %s154
      %p166 = scmp.eq.s32.totalorder %s25, 5
      %p167 = por %p165, %p166
      %p169 = scmp.ne.s32.totalorder %s154, %s168
      %p170 = scmp.eq.s32.totalorder %s25, 0
      %p171 = por %p169, %p170
      %s173 = sadd.s32 %s172, 1
      %p176 = scmp.eq.s32.totalorder %s19, 5
      %p177 = scmp.ne.s32.totalorder %s172, %s174
      %p178 = scmp.eq.s32.totalorder %s19, 0
      %p179 = por %p177, %p178
      %p180 = scmp.ne.s32.totalorder %s172, %s174
      %p181 = scmp.eq.s32.totalorder %s24, 5
      %p182 = por %p180, %p181
      %p183 = scmp.ne.s32.totalorder %s174, %s175
      %p184 = scmp.eq.s32.totalorder %s24, 0
      %p185 = por %p183, %p184
      %p186 = scmp.ne.s32.totalorder %s174, %s175
      %p187 = scmp.eq.s32.totalorder %s25, 5
      %p188 = por %p186, %p187
      %p190 = scmp.ne.s32.totalorder %s175, %s189
      %p191 = scmp.eq.s32.totalorder %s25, 0
      %p192 = por %p190, %p191
      %s193 = ssub.s32 %s26, %s38
      %p194 = scmp.eq.s32.totalorder %s193, 0
      %s196 = sadd.s32 %s195, 1
      %s197 = scalar_select %p194, %s195, %s196
      %p200 = pneg %p194
      %p201 = scmp.eq.s32.totalorder %s19, 5
      %p202 = por %p200, %p201
      %p203 = scmp.ne.s32.totalorder %s195, %s198
      %p204 = scmp.eq.s32.totalorder %s19, 0
      %p205 = por %p203, %p204
      %p206 = scmp.ne.s32.totalorder %s195, %s198
      %p207 = scmp.eq.s32.totalorder %s24, 5
      %p208 = por %p206, %p207
      %p209 = scmp.ne.s32.totalorder %s198, %s199
      %p210 = scmp.eq.s32.totalorder %s24, 0
      %p211 = por %p209, %p210
      %p212 = scmp.ne.s32.totalorder %s198, %s199
      %p213 = scmp.eq.s32.totalorder %s25, 5
      %p214 = por %p212, %p213
      %p216 = scmp.ne.s32.totalorder %s199, %s215
      %p217 = scmp.eq.s32.totalorder %s25, 0
      %p218 = por %p216, %p217
      %p219 = scmp.le.s32.totalorder 1, %s19
      %p220 = scmp.lt.s32.totalorder %s19, 7
      %p221 = pnand %p219, %p220
      %p222 = pneg %p221
      // Predicated region
      $region9: #{tpu_custom_call.1} parent=5 // pred_check
        _
      $region10: #{tpu_custom_call.1} parent=5 // pred_check_branch
        %224 = sbr.rel (%p221) target = $region12
      $region11: #{tpu_custom_call.1} parent=5 // pred_region
        %s225 = ssub.s32 %s19, 1
        // Predicated region
        $region13: #{tpu_custom_call.1} parent=11 // pred_check
          %p226 = pneg %p80
        $region14: #{tpu_custom_call.1} parent=11 // pred_check_branch
          %228 = sbr.rel (%p226) target = $region16
        $region15: #{tpu_custom_call.1} parent=11 // pred_region
          %s230 = ssub.s32 128, 128
          %231 = vsyncadd [#allocation4], %s230
          %s232 = sshll.u32 [#allocation3], 4
          %s233 = int_to_ptr.vmem [resolvable:$true] %s232
          %238 = dma.hbm_to_vmem [thread:$0]  %s1, 128, %s233, [#allocation4], 64, 64, 4
        $region16: #{tpu_custom_call.1} parent=11 // pred_fallthru
          _
        // Predicated region
        $region17: #{tpu_custom_call.1} parent=11 // pred_check
          %p239 = pneg %p101
        $region18: #{tpu_custom_call.1} parent=11 // pred_check_branch
          %241 = sbr.rel (%p239) target = $region20
        $region19: #{tpu_custom_call.1} parent=11 // pred_region
          %s243 = ssub.s32 16, 16
          %244 = vsyncadd [#allocation7], %s243
          %s246 = sshll.u32 [#allocation6], 4
          %s247 = int_to_ptr.vmem [resolvable:$true] %s246
          %249 = dma.hbm_to_vmem [thread:$0]  %s2, 16, %s247, [#allocation7]
        $region20: #{tpu_custom_call.1} parent=11 // pred_fallthru
          _
        // Predicated region
        $region21: #{tpu_custom_call.1} parent=11 // pred_check
          %p250 = pneg %p122
        $region22: #{tpu_custom_call.1} parent=11 // pred_check_branch
          %252 = sbr.rel (%p250) target = $region24
        $region23: #{tpu_custom_call.1} parent=11 // pred_region
          _
        $region24: #{tpu_custom_call.1} parent=11 // pred_fallthru
          _
        // Predicated region
        $region25: #{tpu_custom_call.1} parent=11 // pred_check
          %p253 = pneg %p143
        $region26: #{tpu_custom_call.1} parent=11 // pred_check_branch
          %255 = sbr.rel (%p253) target = $region28
        $region27: #{tpu_custom_call.1} parent=11 // pred_region
          %s257 = ssub.s32 16, 16
          %258 = vsyncadd [#allocation7], %s257
          %s260 = sshll.u32 [#allocation8], 4
          %s261 = int_to_ptr.vmem [resolvable:$true] %s260
          %263 = dma.hbm_to_vmem [thread:$0]  %s4, 16, %s261, [#allocation7]
        $region28: #{tpu_custom_call.1} parent=11 // pred_fallthru
          _
        // Predicated region
        $region29: #{tpu_custom_call.1} parent=11 // pred_check
          %p264 = pneg %p164
        $region30: #{tpu_custom_call.1} parent=11 // pred_check_branch
          %266 = sbr.rel (%p264) target = $region32
        $region31: #{tpu_custom_call.1} parent=11 // pred_region
          %s268 = ssub.s32 8192, 8192
          %269 = vsyncadd [#allocation10], %s268
          %s270 = sshll.u32 [#allocation9], 4
          %s271 = int_to_ptr.vmem [resolvable:$true] %s270
          %276 = dma.hbm_to_vmem [thread:$0]  %s5, 8192, %s271, [#allocation10], 512, 512, 32
        $region32: #{tpu_custom_call.1} parent=11 // pred_fallthru
          _
        // Predicated region
        $region33: #{tpu_custom_call.1} parent=11 // pred_check
          %p277 = pneg %p185
        $region34: #{tpu_custom_call.1} parent=11 // pred_check_branch
          %279 = sbr.rel (%p277) target = $region36
        $region35: #{tpu_custom_call.1} parent=11 // pred_region
          _
        $region36: #{tpu_custom_call.1} parent=11 // pred_fallthru
          _
      $region12: #{tpu_custom_call.1} parent=5 // pred_fallthru
        _
      %p280 = scmp.lt.s32.totalorder %s19, 6
      // Predicated region
      $region37: #{tpu_custom_call.1} parent=5 // pred_check
        %p281 = pneg %p280
      $region38: #{tpu_custom_call.1} parent=5 // pred_check_branch
        %283 = sbr.rel (%p281) target = $region40
      $region39: #{tpu_custom_call.1} parent=5 // pred_region
        // Predicated region
        $region41: #{tpu_custom_call.1} parent=39 // pred_check
          %p284 = pneg %p53
        $region42: #{tpu_custom_call.1} parent=39 // pred_check_branch
          %286 = sbr.rel (%p284) target = $region44
        $region43: #{tpu_custom_call.1} parent=39 // pred_region
          %p287 = scmp.lt.s32.totalorder %s26, 1
          %s288 = scalar_select %p287, %s26, 1
          %p289 = scmp.lt.s32.totalorder %s27, 2
          %s290 = scalar_select %p289, %s27, 2
          %s291 = smul.addr %s288, 3
          %s292 = sadd.s32 %s290, %s291
          %s293 = smul.addr %s292, 4
          %s294 = scalar_lea.vmem %s0, %s293
        $region44: #{tpu_custom_call.1} parent=39 // pred_fallthru
          _
      $region40: #{tpu_custom_call.1} parent=5 // pred_fallthru
        _
      %p295 = scmp.le.s32.totalorder 1, %s19
      %p296 = scmp.lt.s32.totalorder %s19, 7
      %p297 = pnand %p295, %p296
      %p298 = pneg %p297
      // Predicated region
      $region45: #{tpu_custom_call.1} parent=5 // pred_check
        _
      $region46: #{tpu_custom_call.1} parent=5 // pred_check_branch
        %300 = sbr.rel (%p297) target = $region48
      $region47: #{tpu_custom_call.1} parent=5 // pred_region
        %s301 = ssub.s32 %s19, 1
        // Predicated region
        $region49: #{tpu_custom_call.1} parent=47 // pred_check
          %p302 = pneg %p80
        $region50: #{tpu_custom_call.1} parent=47 // pred_check_branch
          %304 = sbr.rel (%p302) target = $region52
        $region51: #{tpu_custom_call.1} parent=47 // pred_region
          %305 = dma.done [#allocation4], 128
        $region52: #{tpu_custom_call.1} parent=47 // pred_fallthru
          _
        // Predicated region
        $region53: #{tpu_custom_call.1} parent=47 // pred_check
          %p306 = pneg %p101
        $region54: #{tpu_custom_call.1} parent=47 // pred_check_branch
          %308 = sbr.rel (%p306) target = $region56
        $region55: #{tpu_custom_call.1} parent=47 // pred_region
          %309 = dma.done [#allocation7], 16
        $region56: #{tpu_custom_call.1} parent=47 // pred_fallthru
          _
        // Predicated region
        $region57: #{tpu_custom_call.1} parent=47 // pred_check
          %p310 = pneg %p143
        $region58: #{tpu_custom_call.1} parent=47 // pred_check_branch
          %312 = sbr.rel (%p310) target = $region60
        $region59: #{tpu_custom_call.1} parent=47 // pred_region
          %313 = dma.done [#allocation7], 16
        $region60: #{tpu_custom_call.1} parent=47 // pred_fallthru
          _
        // Predicated region
        $region61: #{tpu_custom_call.1} parent=47 // pred_check
          %p314 = pneg %p164
        $region62: #{tpu_custom_call.1} parent=47 // pred_check_branch
          %316 = sbr.rel (%p314) target = $region64
        $region63: #{tpu_custom_call.1} parent=47 // pred_region
          %317 = dma.done [#allocation10], 8192
        $region64: #{tpu_custom_call.1} parent=47 // pred_fallthru
          _
        %p318 = scmp.lt.s32.totalorder %s28, 1
        %s319 = scalar_select %p318, %s28, 1
        %p320 = scmp.lt.s32.totalorder %s29, 2
        %s321 = scalar_select %p320, %s29, 2
        %s322 = smul.addr %s319, 3
        %s323 = sadd.s32 %s321, %s322
        %s324 = smul.addr %s323, 4
        %s325 = scalar_lea.vmem %s0, %s324
        %p326 = pneg %p59
        %p327 = pneg %p56
        %p328 = pneg %p80
        %p329 = pneg %p77
        %p330 = pneg %p101
        %p331 = pneg %p98
        %p332 = pneg %p122
        %p333 = pneg %p119
        %p334 = pneg %p143
        %p335 = pneg %p140
        %p336 = pneg %p164
        %p337 = pneg %p161
        %p338 = pneg %p185
        %p339 = pneg %p182
        %p340 = pneg %p211
        %p341 = pneg %p208
        %s342 = sand.u32 %s198, 1
        %s343 = scalar_lea.sflag [#allocation5], %s342
        %s344 = sand.u32 %s198, 1
        %s345 = smul.addr %s344, 8
        %s346 = scalar_lea.vmem [#allocation11], %s345
        %p347 = scmp.lt.s32.totalorder %s28, 1
        %s348 = scalar_select %p347, %s28, 1
        %p349 = scmp.lt.s32.totalorder %s29, 2
        %s350 = scalar_select %p349, %s29, 2
        %s351 = smul.addr %s348, 3
        %s352 = sadd.s32 %s350, %s351
        %s353 = smul.addr %s352, 4
        %s354 = scalar_lea.vmem %s0, %s353
        %p356 = scmp.eq.s32.totalorder %s29, 0
        // Predicated region
        $region65: #{tpu_custom_call.1} parent=47 // pred_check
          %p357 = pneg %p356
        $region66: #{tpu_custom_call.1} parent=47 // pred_check_branch
          %359 = sbr.rel (%p357) target = $region68
        $region67: #{tpu_custom_call.1} parent=47 // pred_region
          %360 = vst [vmem:[#allocation2] sm:$0xff] -inf
          %361 = vst [vmem:[#allocation2 + $0x8] sm:$0xff] -inf
          %362 = vst [vmem:[#allocation2 + $0x10] sm:$0xff] -inf
          %363 = vst [vmem:[#allocation2 + $0x18] sm:$0xff] -inf
          %364 = vst [vmem:[#allocation2 + $0x20] sm:$0xff] -inf
          %365 = vst [vmem:[#allocation2 + $0x28] sm:$0xff] -inf
          %366 = vst [vmem:[#allocation2 + $0x30] sm:$0xff] -inf
          %367 = vst [vmem:[#allocation2 + $0x38] sm:$0xff] -inf
        $region68: #{tpu_custom_call.1} parent=47 // pred_fallthru
          _
        %v368 = vld [vmem:[%s354] sm:$0xf]
        %v369 = vld [vmem:[#allocation3] sm:$0xf]
        %v370 = vld [vmem:[#allocation3 + $0x4] sm:$0x1]
        %v371 = vld [vmem:[#allocation6] sm:$0x1]
        %v373 = vlaneseq
        %v374 = vshrl.u32 %v373, 7
        %v375 = vsub.s32 0, %v374
        %v376 = vrot.slane %v371, %v375
        %v380 = vunpack.c.l.b16 %v369
        %v381 = vunpack.c.l.b16 %v370
        %v382 = vpack.c.b16 %v381, %v380
        %vm383 = vcmask 72704
        %v385 = vsel %vm383, %v368, 0
        %vm387 = vcmask 1043456
        %vm388 = vcmask 1044480
        %v389 = vsel %vm387, 4294967295, 65535
        %v390 = vsel %vm388, %v389, 0
        %v392 = vand.u32 %v382, %v390
        %394 = vmatprep.subr.bf16.mxu0 0
        %395 = vmatpush1.bf16.msra.mxu0 0
        %396 = vmatprep.subr.bf16.mxu0 0
        %397 = vmatpush1.bf16.msra.mxu0 0
        %398 = vmatprep.subr.bf16.mxu0 0
        %399 = vmatpush1.bf16.msra.mxu0 0
        %400 = vmatprep.subr.bf16.mxu0 0
        %401 = vmatpush1.bf16.msra.mxu0 0
        %402 = vmatprep.subr.bf16.mxu0 0
        %403 = vmatpush1.bf16.msra.mxu0 0
        %404 = vmatprep.subr.bf16.mxu0 0
        %405 = vmatpush1.bf16.msra.mxu0 0
        %406 = vmatprep.subr.bf16.mxu0 0
        %407 = vmatpush1.bf16.msra.mxu0 0
        %408 = vmatprep.subr.bf16.mxu0 0
        %409 = vmatpush1.bf16.msra.mxu0 %v392
        %410 = vmatprep.subr.bf16.mxu0 0
        %411 = vmatpush2.bf16.msra.mxu0 0
        %412 = vmatprep.subr.bf16.mxu0 0
        %413 = vmatpush2.bf16.msra.mxu0 0
        %414 = vmatprep.subr.bf16.mxu0 0
        %415 = vmatpush2.bf16.msra.mxu0 0
        %416 = vmatprep.subr.bf16.mxu0 0
        %417 = vmatpush2.bf16.msra.mxu0 0
        %418 = vmatprep.subr.bf16.mxu0 0
        %419 = vmatpush2.bf16.msra.mxu0 0
        %420 = vmatprep.subr.bf16.mxu0 0
        %421 = vmatpush2.bf16.msra.mxu0 0
        %422 = vmatprep.subr.bf16.mxu0 0
        %423 = vmatpush2.bf16.msra.mxu0 0
        %424 = vmatprep.subr.bf16.mxu0 0
        %425 = vmatpush2.bf16.msra.mxu0 0
        %426 = vmatprep.mubr.bf16.mxu0 0
        %427 = vmatmul.mubr.bf16.gmra.mxu0 %v385
        %v428 = vpop.f32.mrf.mxu0
        %v429 = vadd.f32 %v376, %v428
        %v430 = vpop.f32.mrf.mxu0
        %v431 = vpop.f32.mrf.mxu0
        %v432 = vpop.f32.mrf.mxu0
        %433 = vdwg.mxu0
        %v434 = vmax.f32 %v429, 0.0
        %v435 = vpack.c.bf16 %v434, %v434
        %v436 = vld [vmem:[%s3] sm:$0xf]
        %v437 = vld [vmem:[%s3 + $0x4] sm:$0xf]
        %v438 = vld [vmem:[%s3 + $0x8] sm:$0xf]
        %v439 = vld [vmem:[%s3 + $0xc] sm:$0xf]
        %v440 = vld [vmem:[%s3 + $0x10] sm:$0xf]
        %v441 = vld [vmem:[%s3 + $0x14] sm:$0xf]
        %v442 = vld [vmem:[%s3 + $0x18] sm:$0xf]
        %v443 = vld [vmem:[%s3 + $0x1c] sm:$0xf]
        %v444 = vld [vmem:[#allocation8] sm:$0x1]
        %v446 = vlaneseq
        %v447 = vshrl.u32 %v446, 7
        %v448 = vsub.s32 0, %v447
        %v449 = vrot.slane %v444, %v448
        %v459 = vunpack.c.l.b16 %v436
        %v460 = vunpack.c.l.b16 %v437
        %v461 = vunpack.c.l.b16 %v438
        %v462 = vunpack.c.l.b16 %v439
        %v463 = vunpack.c.l.b16 %v440
        %v464 = vunpack.c.l.b16 %v441
        %v465 = vunpack.c.l.b16 %v442
        %v466 = vunpack.c.l.b16 %v443
        %v467 = vpack.c.b16 %v460, %v459
        %v468 = vpack.c.b16 %v462, %v461
        %v469 = vpack.c.b16 %v464, %v463
        %v470 = vpack.c.b16 %v466, %v465
        %vm475 = vcmask 523264
        %v477 = vsel %vm475, %v435, 0
        %479 = vmatprep.subr.bf16.mxu0 0
        %480 = vmatpush1.bf16.msra.mxu0 0
        %481 = vmatprep.subr.bf16.mxu0 0
        %482 = vmatpush1.bf16.msra.mxu0 0
        %483 = vmatprep.subr.bf16.mxu0 0
        %484 = vmatpush1.bf16.msra.mxu0 0
        %485 = vmatprep.subr.bf16.mxu0 0
        %486 = vmatpush1.bf16.msra.mxu0 0
        %487 = vmatprep.subr.bf16.mxu0 0
        %488 = vmatpush1.bf16.msra.mxu0 %v470
        %489 = vmatprep.subr.bf16.mxu0 0
        %490 = vmatpush1.bf16.msra.mxu0 %v469
        %491 = vmatprep.subr.bf16.mxu0 0
        %492 = vmatpush1.bf16.msra.mxu0 %v468
        %493 = vmatprep.subr.bf16.mxu0 0
        %494 = vmatpush1.bf16.msra.mxu0 %v467
        %495 = vmatprep.subr.bf16.mxu0 0
        %496 = vmatpush2.bf16.msra.mxu0 0
        %497 = vmatprep.subr.bf16.mxu0 0
        %498 = vmatpush2.bf16.msra.mxu0 0
        %499 = vmatprep.subr.bf16.mxu0 0
        %500 = vmatpush2.bf16.msra.mxu0 0
        %501 = vmatprep.subr.bf16.mxu0 0
        %502 = vmatpush2.bf16.msra.mxu0 0
        %503 = vmatprep.subr.bf16.mxu0 0
        %504 = vmatpush2.bf16.msra.mxu0 0
        %505 = vmatprep.subr.bf16.mxu0 0
        %506 = vmatpush2.bf16.msra.mxu0 0
        %507 = vmatprep.subr.bf16.mxu0 0
        %508 = vmatpush2.bf16.msra.mxu0 0
        %509 = vmatprep.subr.bf16.mxu0 0
        %510 = vmatpush2.bf16.msra.mxu0 0
        %511 = vmatprep.mubr.bf16.mxu0 0
        %512 = vmatmul.mubr.bf16.gmra.mxu0 %v477
        %v513 = vpop.f32.mrf.mxu0
        %v514 = vadd.f32 %v449, %v513
        %v515 = vpop.f32.mrf.mxu0
        %v516 = vpop.f32.mrf.mxu0
        %v517 = vpop.f32.mrf.mxu0
        %518 = vdwg.mxu0
        %v519 = vmax.f32 %v514, 0.0
        %v520 = vpack.c.bf16 %v519, %v519
        %v521 = vld [vmem:[#allocation9] sm:$0xff]
        %v522 = vld [vmem:[#allocation9 + $0x8] sm:$0xff]
        %v523 = vld [vmem:[#allocation9 + $0x10] sm:$0xff]
        %v524 = vld [vmem:[#allocation9 + $0x18] sm:$0xff]
        %v525 = vld [vmem:[#allocation9 + $0x20] sm:$0xff]
        %v526 = vld [vmem:[#allocation9 + $0x28] sm:$0xff]
        %v527 = vld [vmem:[#allocation9 + $0x30] sm:$0xff]
        %v528 = vld [vmem:[#allocation9 + $0x38] sm:$0xff]
        %v529 = vld [vmem:[#allocation9 + $0x40] sm:$0xff]
        %v530 = vld [vmem:[#allocation9 + $0x48] sm:$0xff]
        %v531 = vld [vmem:[#allocation9 + $0x50] sm:$0xff]
        %v532 = vld [vmem:[#allocation9 + $0x58] sm:$0xff]
        %v533 = vld [vmem:[#allocation9 + $0x60] sm:$0xff]
        %v534 = vld [vmem:[#allocation9 + $0x68] sm:$0xff]
        %v535 = vld [vmem:[#allocation9 + $0x70] sm:$0xff]
        %v536 = vld [vmem:[#allocation9 + $0x78] sm:$0xff]
        %v537 = vld [vmem:[#allocation9 + $0x80] sm:$0xff]
        %v538 = vld [vmem:[#allocation9 + $0x88] sm:$0xff]
        %v539 = vld [vmem:[#allocation9 + $0x90] sm:$0xff]
        %v540 = vld [vmem:[#allocation9 + $0x98] sm:$0xff]
        %v541 = vld [vmem:[#allocation9 + $0xa0] sm:$0xff]
        %v542 = vld [vmem:[#allocation9 + $0xa8] sm:$0xff]
        %v543 = vld [vmem:[#allocation9 + $0xb0] sm:$0xff]
        %v544 = vld [vmem:[#allocation9 + $0xb8] sm:$0xff]
        %v545 = vld [vmem:[#allocation9 + $0xc0] sm:$0xff]
        %v546 = vld [vmem:[#allocation9 + $0xc8] sm:$0xff]
        %v547 = vld [vmem:[#allocation9 + $0xd0] sm:$0xff]
        %v548 = vld [vmem:[#allocation9 + $0xd8] sm:$0xff]
        %v549 = vld [vmem:[#allocation9 + $0xe0] sm:$0xff]
        %v550 = vld [vmem:[#allocation9 + $0xe8] sm:$0xff]
        %v551 = vld [vmem:[#allocation9 + $0xf0] sm:$0xff]
        %v552 = vld [vmem:[#allocation9 + $0xf8] sm:$0xff]
        %v553 = vld [vmem:[#allocation9 + $0x100] sm:$0xff]
        %v554 = vld [vmem:[#allocation9 + $0x108] sm:$0xff]
        %v555 = vld [vmem:[#allocation9 + $0x110] sm:$0xff]
        %v556 = vld [vmem:[#allocation9 + $0x118] sm:$0xff]
        %v557 = vld [vmem:[#allocation9 + $0x120] sm:$0xff]
        %v558 = vld [vmem:[#allocation9 + $0x128] sm:$0xff]
        %v559 = vld [vmem:[#allocation9 + $0x130] sm:$0xff]
        %v560 = vld [vmem:[#allocation9 + $0x138] sm:$0xff]
        %v561 = vld [vmem:[#allocation9 + $0x140] sm:$0xff]
        %v562 = vld [vmem:[#allocation9 + $0x148] sm:$0xff]
        %v563 = vld [vmem:[#allocation9 + $0x150] sm:$0xff]
        %v564 = vld [vmem:[#allocation9 + $0x158] sm:$0xff]
        %v565 = vld [vmem:[#allocation9 + $0x160] sm:$0xff]
        %v566 = vld [vmem:[#allocation9 + $0x168] sm:$0xff]
        %v567 = vld [vmem:[#allocation9 + $0x170] sm:$0xff]
        %v568 = vld [vmem:[#allocation9 + $0x178] sm:$0xff]
        %v569 = vld [vmem:[#allocation9 + $0x180] sm:$0xff]
        %v570 = vld [vmem:[#allocation9 + $0x188] sm:$0xff]
        %v571 = vld [vmem:[#allocation9 + $0x190] sm:$0xff]
        %v572 = vld [vmem:[#allocation9 + $0x198] sm:$0xff]
        %v573 = vld [vmem:[#allocation9 + $0x1a0] sm:$0xff]
        %v574 = vld [vmem:[#allocation9 + $0x1a8] sm:$0xff]
        %v575 = vld [vmem:[#allocation9 + $0x1b0] sm:$0xff]
        %v576 = vld [vmem:[#allocation9 + $0x1b8] sm:$0xff]
        %v577 = vld [vmem:[#allocation9 + $0x1c0] sm:$0xff]
        %v578 = vld [vmem:[#allocation9 + $0x1c8] sm:$0xff]
        %v579 = vld [vmem:[#allocation9 + $0x1d0] sm:$0xff]
        %v580 = vld [vmem:[#allocation9 + $0x1d8] sm:$0xff]
        %v581 = vld [vmem:[#allocation9 + $0x1e0] sm:$0xff]
        %v582 = vld [vmem:[#allocation9 + $0x1e8] sm:$0xff]
        %v583 = vld [vmem:[#allocation9 + $0x1f0] sm:$0xff]
        %v584 = vld [vmem:[#allocation9 + $0x1f8] sm:$0xff]
        %v649 = vunpack.c.l.b16 %v521
        %v650 = vunpack.c.h.b16 %v521
        %v651 = vunpack.c.l.b16 %v522
        %v652 = vunpack.c.h.b16 %v522
        %v653 = vunpack.c.l.b16 %v523
        %v654 = vunpack.c.h.b16 %v523
        %v655 = vunpack.c.l.b16 %v524
        %v656 = vunpack.c.h.b16 %v524
        %v657 = vunpack.c.l.b16 %v525
        %v658 = vunpack.c.h.b16 %v525
        %v659 = vunpack.c.l.b16 %v526
        %v660 = vunpack.c.h.b16 %v526
        %v661 = vunpack.c.l.b16 %v527
        %v662 = vunpack.c.h.b16 %v527
        %v663 = vunpack.c.l.b16 %v528
        %v664 = vunpack.c.h.b16 %v528
        %v665 = vunpack.c.l.b16 %v529
        %v666 = vunpack.c.h.b16 %v529
        %v667 = vunpack.c.l.b16 %v530
        %v668 = vunpack.c.h.b16 %v530
        %v669 = vunpack.c.l.b16 %v531
        %v670 = vunpack.c.h.b16 %v531
        %v671 = vunpack.c.l.b16 %v532
        %v672 = vunpack.c.h.b16 %v532
        %v673 = vunpack.c.l.b16 %v533
        %v674 = vunpack.c.h.b16 %v533
        %v675 = vunpack.c.l.b16 %v534
        %v676 = vunpack.c.h.b16 %v534
        %v677 = vunpack.c.l.b16 %v535
        %v678 = vunpack.c.h.b16 %v535
        %v679 = vunpack.c.l.b16 %v536
        %v680 = vunpack.c.h.b16 %v536
        %v681 = vunpack.c.l.b16 %v537
        %v682 = vunpack.c.h.b16 %v537
        %v683 = vunpack.c.l.b16 %v538
        %v684 = vunpack.c.h.b16 %v538
        %v685 = vunpack.c.l.b16 %v539
        %v686 = vunpack.c.h.b16 %v539
        %v687 = vunpack.c.l.b16 %v540
        %v688 = vunpack.c.h.b16 %v540
        %v689 = vunpack.c.l.b16 %v541
        %v690 = vunpack.c.h.b16 %v541
        %v691 = vunpack.c.l.b16 %v542
        %v692 = vunpack.c.h.b16 %v542
        %v693 = vunpack.c.l.b16 %v543
        %v694 = vunpack.c.h.b16 %v543
        %v695 = vunpack.c.l.b16 %v544
        %v696 = vunpack.c.h.b16 %v544
        %v697 = vunpack.c.l.b16 %v545
        %v698 = vunpack.c.h.b16 %v545
        %v699 = vunpack.c.l.b16 %v546
        %v700 = vunpack.c.h.b16 %v546
        %v701 = vunpack.c.l.b16 %v547
        %v702 = vunpack.c.h.b16 %v547
        %v703 = vunpack.c.l.b16 %v548
        %v704 = vunpack.c.h.b16 %v548
        %v705 = vunpack.c.l.b16 %v549
        %v706 = vunpack.c.h.b16 %v549
        %v707 = vunpack.c.l.b16 %v550
        %v708 = vunpack.c.h.b16 %v550
        %v709 = vunpack.c.l.b16 %v551
        %v710 = vunpack.c.h.b16 %v551
        %v711 = vunpack.c.l.b16 %v552
        %v712 = vunpack.c.h.b16 %v552
        %v713 = vunpack.c.l.b16 %v553
        %v714 = vunpack.c.h.b16 %v553
        %v715 = vunpack.c.l.b16 %v554
        %v716 = vunpack.c.h.b16 %v554
        %v717 = vunpack.c.l.b16 %v555
        %v718 = vunpack.c.h.b16 %v555
        %v719 = vunpack.c.l.b16 %v556
        %v720 = vunpack.c.h.b16 %v556
        %v721 = vunpack.c.l.b16 %v557
        %v722 = vunpack.c.h.b16 %v557
        %v723 = vunpack.c.l.b16 %v558
        %v724 = vunpack.c.h.b16 %v558
        %v725 = vunpack.c.l.b16 %v559
        %v726 = vunpack.c.h.b16 %v559
        %v727 = vunpack.c.l.b16 %v560
        %v728 = vunpack.c.h.b16 %v560
        %v729 = vunpack.c.l.b16 %v561
        %v730 = vunpack.c.h.b16 %v561
        %v731 = vunpack.c.l.b16 %v562
        %v732 = vunpack.c.h.b16 %v562
        %v733 = vunpack.c.l.b16 %v563
        %v734 = vunpack.c.h.b16 %v563
        %v735 = vunpack.c.l.b16 %v564
        %v736 = vunpack.c.h.b16 %v564
        %v737 = vunpack.c.l.b16 %v565
        %v738 = vunpack.c.h.b16 %v565
        %v739 = vunpack.c.l.b16 %v566
        %v740 = vunpack.c.h.b16 %v566
        %v741 = vunpack.c.l.b16 %v567
        %v742 = vunpack.c.h.b16 %v567
        %v743 = vunpack.c.l.b16 %v568
        %v744 = vunpack.c.h.b16 %v568
        %v745 = vunpack.c.l.b16 %v569
        %v746 = vunpack.c.h.b16 %v569
        %v747 = vunpack.c.l.b16 %v570
        %v748 = vunpack.c.h.b16 %v570
        %v749 = vunpack.c.l.b16 %v571
        %v750 = vunpack.c.h.b16 %v571
        %v751 = vunpack.c.l.b16 %v572
        %v752 = vunpack.c.h.b16 %v572
        %v753 = vunpack.c.l.b16 %v573
        %v754 = vunpack.c.h.b16 %v573
        %v755 = vunpack.c.l.b16 %v574
        %v756 = vunpack.c.h.b16 %v574
        %v757 = vunpack.c.l.b16 %v575
        %v758 = vunpack.c.h.b16 %v575
        %v759 = vunpack.c.l.b16 %v576
        %v760 = vunpack.c.h.b16 %v576
        %v761 = vunpack.c.l.b16 %v577
        %v762 = vunpack.c.h.b16 %v577
        %v763 = vunpack.c.l.b16 %v578
        %v764 = vunpack.c.h.b16 %v578
        %v765 = vunpack.c.l.b16 %v579
        %v766 = vunpack.c.h.b16 %v579
        %v767 = vunpack.c.l.b16 %v580
        %v768 = vunpack.c.h.b16 %v580
        %v769 = vunpack.c.l.b16 %v581
        %v770 = vunpack.c.h.b16 %v581
        %v771 = vunpack.c.l.b16 %v582
        %v772 = vunpack.c.h.b16 %v582
        %v773 = vunpack.c.l.b16 %v583
        %v774 = vunpack.c.h.b16 %v583
        %v775 = vunpack.c.l.b16 %v584
        %v776 = vunpack.c.h.b16 %v584
        %v777 = vpack.c.b16 %v657, %v649
        %v778 = vpack.c.b16 %v658, %v650
        %v779 = vpack.c.b16 %v659, %v651
        %v780 = vpack.c.b16 %v660, %v652
        %v781 = vpack.c.b16 %v661, %v653
        %v782 = vpack.c.b16 %v662, %v654
        %v783 = vpack.c.b16 %v663, %v655
        %v784 = vpack.c.b16 %v664, %v656
        %v785 = vpack.c.b16 %v673, %v665
        %v786 = vpack.c.b16 %v674, %v666
        %v787 = vpack.c.b16 %v675, %v667
        %v788 = vpack.c.b16 %v676, %v668
        %v789 = vpack.c.b16 %v677, %v669
        %v790 = vpack.c.b16 %v678, %v670
        %v791 = vpack.c.b16 %v679, %v671
        %v792 = vpack.c.b16 %v680, %v672
        %v793 = vpack.c.b16 %v689, %v681
        %v794 = vpack.c.b16 %v690, %v682
        %v795 = vpack.c.b16 %v691, %v683
        %v796 = vpack.c.b16 %v692, %v684
        %v797 = vpack.c.b16 %v693, %v685
        %v798 = vpack.c.b16 %v694, %v686
        %v799 = vpack.c.b16 %v695, %v687
        %v800 = vpack.c.b16 %v696, %v688
        %v801 = vpack.c.b16 %v705, %v697
        %v802 = vpack.c.b16 %v706, %v698
        %v803 = vpack.c.b16 %v707, %v699
        %v804 = vpack.c.b16 %v708, %v700
        %v805 = vpack.c.b16 %v709, %v701
        %v806 = vpack.c.b16 %v710, %v702
        %v807 = vpack.c.b16 %v711, %v703
        %v808 = vpack.c.b16 %v712, %v704
        %v809 = vpack.c.b16 %v721, %v713
        %v810 = vpack.c.b16 %v722, %v714
        %v811 = vpack.c.b16 %v723, %v715
        %v812 = vpack.c.b16 %v724, %v716
        %v813 = vpack.c.b16 %v725, %v717
        %v814 = vpack.c.b16 %v726, %v718
        %v815 = vpack.c.b16 %v727, %v719
        %v816 = vpack.c.b16 %v728, %v720
        %v817 = vpack.c.b16 %v737, %v729
        %v818 = vpack.c.b16 %v738, %v730
        %v819 = vpack.c.b16 %v739, %v731
        %v820 = vpack.c.b16 %v740, %v732
        %v821 = vpack.c.b16 %v741, %v733
        %v822 = vpack.c.b16 %v742, %v734
        %v823 = vpack.c.b16 %v743, %v735
        %v824 = vpack.c.b16 %v744, %v736
        %v825 = vpack.c.b16 %v753, %v745
        %v826 = vpack.c.b16 %v754, %v746
        %v827 = vpack.c.b16 %v755, %v747
        %v828 = vpack.c.b16 %v756, %v748
        %v829 = vpack.c.b16 %v757, %v749
        %v830 = vpack.c.b16 %v758, %v750
        %v831 = vpack.c.b16 %v759, %v751
        %v832 = vpack.c.b16 %v760, %v752
        %v833 = vpack.c.b16 %v769, %v761
        %v834 = vpack.c.b16 %v770, %v762
        %v835 = vpack.c.b16 %v771, %v763
        %v836 = vpack.c.b16 %v772, %v764
        %v837 = vpack.c.b16 %v773, %v765
        %v838 = vpack.c.b16 %v774, %v766
        %v839 = vpack.c.b16 %v775, %v767
        %v840 = vpack.c.b16 %v776, %v768
        %905 = vmatprep.subr.bf16.mxu0 %v834
        %906 = vmatpush1.bf16.msra.mxu0 %v833
        %907 = vmatprep.subr.bf16.mxu0 %v826
        %908 = vmatpush1.bf16.msra.mxu0 %v825
        %909 = vmatprep.subr.bf16.mxu0 %v818
        %910 = vmatpush1.bf16.msra.mxu0 %v817
        %911 = vmatprep.subr.bf16.mxu0 %v810
        %912 = vmatpush1.bf16.msra.mxu0 %v809
        %913 = vmatprep.subr.bf16.mxu0 %v802
        %914 = vmatpush1.bf16.msra.mxu0 %v801
        %915 = vmatprep.subr.bf16.mxu0 %v794
        %916 = vmatpush1.bf16.msra.mxu0 %v793
        %917 = vmatprep.subr.bf16.mxu0 %v786
        %918 = vmatpush1.bf16.msra.mxu0 %v785
        %919 = vmatprep.subr.bf16.mxu0 %v778
        %920 = vmatpush1.bf16.msra.mxu0 %v777
        %921 = vmatprep.subr.bf16.mxu0 0
        %922 = vmatpush2.bf16.msra.mxu0 0
        %923 = vmatprep.subr.bf16.mxu0 0
        %924 = vmatpush2.bf16.msra.mxu0 0
        %925 = vmatprep.subr.bf16.mxu0 0
        %926 = vmatpush2.bf16.msra.mxu0 0
        %927 = vmatprep.subr.bf16.mxu0 0
        %928 = vmatpush2.bf16.msra.mxu0 0
        %929 = vmatprep.subr.bf16.mxu0 0
        %930 = vmatpush2.bf16.msra.mxu0 0
        %931 = vmatprep.subr.bf16.mxu0 0
        %932 = vmatpush2.bf16.msra.mxu0 0
        %933 = vmatprep.subr.bf16.mxu0 0
        %934 = vmatpush2.bf16.msra.mxu0 0
        %935 = vmatprep.subr.bf16.mxu0 0
        %936 = vmatpush2.bf16.msra.mxu0 0
        %937 = vmatprep.mubr.bf16.mxu0 0
        %938 = vmatmul.mubr.bf16.gmra.mxu0 %v520
        %v939 = vpop.f32.mrf.mxu0
        %v940 = vadd.f32 0.0, %v939
        %v941 = vpop.f32.mrf.mxu0
        %v942 = vadd.f32 0.0, %v941
        %v943 = vpop.f32.mrf.mxu0
        %v944 = vpop.f32.mrf.mxu0
        %945 = vdwg.mxu0
        %946 = vmatprep.subr.bf16.mxu0 %v836
        %947 = vmatpush1.bf16.msra.mxu0 %v835
        %948 = vmatprep.subr.bf16.mxu0 %v828
        %949 = vmatpush1.bf16.msra.mxu0 %v827
        %950 = vmatprep.subr.bf16.mxu0 %v820
        %951 = vmatpush1.bf16.msra.mxu0 %v819
        %952 = vmatprep.subr.bf16.mxu0 %v812
        %953 = vmatpush1.bf16.msra.mxu0 %v811
        %954 = vmatprep.subr.bf16.mxu0 %v804
        %955 = vmatpush1.bf16.msra.mxu0 %v803
        %956 = vmatprep.subr.bf16.mxu0 %v796
        %957 = vmatpush1.bf16.msra.mxu0 %v795
        %958 = vmatprep.subr.bf16.mxu0 %v788
        %959 = vmatpush1.bf16.msra.mxu0 %v787
        %960 = vmatprep.subr.bf16.mxu0 %v780
        %961 = vmatpush1.bf16.msra.mxu0 %v779
        %962 = vmatprep.subr.bf16.mxu0 0
        %963 = vmatpush2.bf16.msra.mxu0 0
        %964 = vmatprep.subr.bf16.mxu0 0
        %965 = vmatpush2.bf16.msra.mxu0 0
        %966 = vmatprep.subr.bf16.mxu0 0
        %967 = vmatpush2.bf16.msra.mxu0 0
        %968 = vmatprep.subr.bf16.mxu0 0
        %969 = vmatpush2.bf16.msra.mxu0 0
        %970 = vmatprep.subr.bf16.mxu0 0
        %971 = vmatpush2.bf16.msra.mxu0 0
        %972 = vmatprep.subr.bf16.mxu0 0
        %973 = vmatpush2.bf16.msra.mxu0 0
        %974 = vmatprep.subr.bf16.mxu0 0
        %975 = vmatpush2.bf16.msra.mxu0 0
        %976 = vmatprep.subr.bf16.mxu0 0
        %977 = vmatpush2.bf16.msra.mxu0 0
        %978 = vmatprep.mubr.bf16.mxu0 0
        %979 = vmatmul.mubr.bf16.gmra.mxu0 %v520
        %v980 = vpop.f32.mrf.mxu0
        %v981 = vadd.f32 0.0, %v980
        %v982 = vpop.f32.mrf.mxu0
        %v983 = vadd.f32 0.0, %v982
        %v984 = vpop.f32.mrf.mxu0
        %v985 = vpop.f32.mrf.mxu0
        %986 = vdwg.mxu0
        %987 = vmatprep.subr.bf16.mxu0 %v838
        %988 = vmatpush1.bf16.msra.mxu0 %v837
        %989 = vmatprep.subr.bf16.mxu0 %v830
        %990 = vmatpush1.bf16.msra.mxu0 %v829
        %991 = vmatprep.subr.bf16.mxu0 %v822
        %992 = vmatpush1.bf16.msra.mxu0 %v821
        %993 = vmatprep.subr.bf16.mxu0 %v814
        %994 = vmatpush1.bf16.msra.mxu0 %v813
        %995 = vmatprep.subr.bf16.mxu0 %v806
        %996 = vmatpush1.bf16.msra.mxu0 %v805
        %997 = vmatprep.subr.bf16.mxu0 %v798
        %998 = vmatpush1.bf16.msra.mxu0 %v797
        %999 = vmatprep.subr.bf16.mxu0 %v790
        %1000 = vmatpush1.bf16.msra.mxu0 %v789
        %1001 = vmatprep.subr.bf16.mxu0 %v782
        %1002 = vmatpush1.bf16.msra.mxu0 %v781
        %1003 = vmatprep.subr.bf16.mxu0 0
        %1004 = vmatpush2.bf16.msra.mxu0 0
        %1005 = vmatprep.subr.bf16.mxu0 0
        %1006 = vmatpush2.bf16.msra.mxu0 0
        %1007 = vmatprep.subr.bf16.mxu0 0
        %1008 = vmatpush2.bf16.msra.mxu0 0
        %1009 = vmatprep.subr.bf16.mxu0 0
        %1010 = vmatpush2.bf16.msra.mxu0 0
        %1011 = vmatprep.subr.bf16.mxu0 0
        %1012 = vmatpush2.bf16.msra.mxu0 0
        %1013 = vmatprep.subr.bf16.mxu0 0
        %1014 = vmatpush2.bf16.msra.mxu0 0
        %1015 = vmatprep.subr.bf16.mxu0 0
        %1016 = vmatpush2.bf16.msra.mxu0 0
        %1017 = vmatprep.subr.bf16.mxu0 0
        %1018 = vmatpush2.bf16.msra.mxu0 0
        %1019 = vmatprep.mubr.bf16.mxu0 0
        %1020 = vmatmul.mubr.bf16.gmra.mxu0 %v520
        %v1021 = vpop.f32.mrf.mxu0
        %v1022 = vadd.f32 0.0, %v1021
        %v1023 = vpop.f32.mrf.mxu0
        %v1024 = vadd.f32 0.0, %v1023
        %v1025 = vpop.f32.mrf.mxu0
        %v1026 = vpop.f32.mrf.mxu0
        %1027 = vdwg.mxu0
        %1028 = vmatprep.subr.bf16.mxu0 %v840
        %1029 = vmatpush1.bf16.msra.mxu0 %v839
        %1030 = vmatprep.subr.bf16.mxu0 %v832
        %1031 = vmatpush1.bf16.msra.mxu0 %v831
        %1032 = vmatprep.subr.bf16.mxu0 %v824
        %1033 = vmatpush1.bf16.msra.mxu0 %v823
        %1034 = vmatprep.subr.bf16.mxu0 %v816
        %1035 = vmatpush1.bf16.msra.mxu0 %v815
        %1036 = vmatprep.subr.bf16.mxu0 %v808
        %1037 = vmatpush1.bf16.msra.mxu0 %v807
        %1038 = vmatprep.subr.bf16.mxu0 %v800
        %1039 = vmatpush1.bf16.msra.mxu0 %v799
        %1040 = vmatprep.subr.bf16.mxu0 %v792
        %1041 = vmatpush1.bf16.msra.mxu0 %v791
        %1042 = vmatprep.subr.bf16.mxu0 %v784
        %1043 = vmatpush1.bf16.msra.mxu0 %v783
        %1044 = vmatprep.subr.bf16.mxu0 0
        %1045 = vmatpush2.bf16.msra.mxu0 0
        %1046 = vmatprep.subr.bf16.mxu0 0
        %1047 = vmatpush2.bf16.msra.mxu0 0
        %1048 = vmatprep.subr.bf16.mxu0 0
        %1049 = vmatpush2.bf16.msra.mxu0 0
        %1050 = vmatprep.subr.bf16.mxu0 0
        %1051 = vmatpush2.bf16.msra.mxu0 0
        %1052 = vmatprep.subr.bf16.mxu0 0
        %1053 = vmatpush2.bf16.msra.mxu0 0
        %1054 = vmatprep.subr.bf16.mxu0 0
        %1055 = vmatpush2.bf16.msra.mxu0 0
        %1056 = vmatprep.subr.bf16.mxu0 0
        %1057 = vmatpush2.bf16.msra.mxu0 0
        %1058 = vmatprep.subr.bf16.mxu0 0
        %1059 = vmatpush2.bf16.msra.mxu0 0
        %1060 = vmatprep.mubr.bf16.mxu0 0
        %1061 = vmatmul.mubr.bf16.gmra.mxu0 %v520
        %v1062 = vpop.f32.mrf.mxu0
        %v1063 = vadd.f32 0.0, %v1062
        %v1064 = vpop.f32.mrf.mxu0
        %v1065 = vadd.f32 0.0, %v1064
        %v1066 = vpop.f32.mrf.mxu0
        %v1067 = vpop.f32.mrf.mxu0
        %1068 = vdwg.mxu0
        %v1069 = vld [vmem:[#allocation2] sm:$0xff]
        %v1070 = vld [vmem:[#allocation2 + $0x8] sm:$0xff]
        %v1071 = vld [vmem:[#allocation2 + $0x10] sm:$0xff]
        %v1072 = vld [vmem:[#allocation2 + $0x18] sm:$0xff]
        %v1073 = vld [vmem:[#allocation2 + $0x20] sm:$0xff]
        %v1074 = vld [vmem:[#allocation2 + $0x28] sm:$0xff]
        %v1075 = vld [vmem:[#allocation2 + $0x30] sm:$0xff]
        %v1076 = vld [vmem:[#allocation2 + $0x38] sm:$0xff]
        %v1077 = vmax.f32 %v1069, %v940
        %v1078 = vmax.f32 %v1070, %v942
        %v1079 = vmax.f32 %v1071, %v981
        %v1080 = vmax.f32 %v1072, %v983
        %v1081 = vmax.f32 %v1073, %v1022
        %v1082 = vmax.f32 %v1074, %v1024
        %v1083 = vmax.f32 %v1075, %v1063
        %v1084 = vmax.f32 %v1076, %v1065
        %1085 = vst [vmem:[#allocation2] sm:$0xff] %v1077
        %1086 = vst [vmem:[#allocation2 + $0x8] sm:$0xff] %v1078
        %1087 = vst [vmem:[#allocation2 + $0x10] sm:$0xff] %v1079
        %1088 = vst [vmem:[#allocation2 + $0x18] sm:$0xff] %v1080
        %1089 = vst [vmem:[#allocation2 + $0x20] sm:$0xff] %v1081
        %1090 = vst [vmem:[#allocation2 + $0x28] sm:$0xff] %v1082
        %1091 = vst [vmem:[#allocation2 + $0x30] sm:$0xff] %v1083
        %1092 = vst [vmem:[#allocation2 + $0x38] sm:$0xff] %v1084
        %p1093 = scmp.eq.s32.totalorder %s29, 2
        // Predicated region
        $region69: #{tpu_custom_call.1} parent=47 // pred_check
          %p1094 = pneg %p1093
        $region70: #{tpu_custom_call.1} parent=47 // pred_check_branch
          %1096 = sbr.rel (%p1094) target = $region72
        $region71: #{tpu_custom_call.1} parent=47 // pred_region
          %v1097 = vld [vmem:[#allocation2] sm:$0xff]
          %v1098 = vld [vmem:[#allocation2 + $0x8] sm:$0xff]
          %v1099 = vld [vmem:[#allocation2 + $0x10] sm:$0xff]
          %v1100 = vld [vmem:[#allocation2 + $0x18] sm:$0xff]
          %v1101 = vld [vmem:[#allocation2 + $0x20] sm:$0xff]
          %v1102 = vld [vmem:[#allocation2 + $0x28] sm:$0xff]
          %v1103 = vld [vmem:[#allocation2 + $0x30] sm:$0xff]
          %v1104 = vld [vmem:[#allocation2 + $0x38] sm:$0xff]
          %v1105 = vrot.slane %v1097, 4
          %v1106 = vmax.f32 %v1097, %v1105
          %v1107 = vrot.slane %v1106, 2
          %v1108 = vmax.f32 %v1106, %v1107
          %v1109 = vrot.slane %v1108, 1
          %v1110 = vmax.f32 %v1108, %v1109
          %v1111 = vrot.slane %v1098, 4
          %v1112 = vmax.f32 %v1098, %v1111
          %v1113 = vrot.slane %v1112, 2
          %v1114 = vmax.f32 %v1112, %v1113
          %v1115 = vrot.slane %v1114, 1
          %v1116 = vmax.f32 %v1114, %v1115
          %v1117 = vrot.slane %v1099, 4
          %v1118 = vmax.f32 %v1099, %v1117
          %v1119 = vrot.slane %v1118, 2
          %v1120 = vmax.f32 %v1118, %v1119
          %v1121 = vrot.slane %v1120, 1
          %v1122 = vmax.f32 %v1120, %v1121
          %v1123 = vrot.slane %v1100, 4
          %v1124 = vmax.f32 %v1100, %v1123
          %v1125 = vrot.slane %v1124, 2
          %v1126 = vmax.f32 %v1124, %v1125
          %v1127 = vrot.slane %v1126, 1
          %v1128 = vmax.f32 %v1126, %v1127
          %v1129 = vrot.slane %v1101, 4
          %v1130 = vmax.f32 %v1101, %v1129
          %v1131 = vrot.slane %v1130, 2
          %v1132 = vmax.f32 %v1130, %v1131
          %v1133 = vrot.slane %v1132, 1
          %v1134 = vmax.f32 %v1132, %v1133
          %v1135 = vrot.slane %v1102, 4
          %v1136 = vmax.f32 %v1102, %v1135
          %v1137 = vrot.slane %v1136, 2
          %v1138 = vmax.f32 %v1136, %v1137
          %v1139 = vrot.slane %v1138, 1
          %v1140 = vmax.f32 %v1138, %v1139
          %v1141 = vrot.slane %v1103, 4
          %v1142 = vmax.f32 %v1103, %v1141
          %v1143 = vrot.slane %v1142, 2
          %v1144 = vmax.f32 %v1142, %v1143
          %v1145 = vrot.slane %v1144, 1
          %v1146 = vmax.f32 %v1144, %v1145
          %v1147 = vrot.slane %v1104, 4
          %v1148 = vmax.f32 %v1104, %v1147
          %v1149 = vrot.slane %v1148, 2
          %v1150 = vmax.f32 %v1148, %v1149
          %v1151 = vrot.slane %v1150, 1
          %v1152 = vmax.f32 %v1150, %v1151
          %v1153 = vld [vmem:[%s6] sm:$0xff]
          %v1155 = vlaneseq
          %v1156 = vshrl.u32 %v1155, 7
          %v1157 = vsub.s32 0, %v1156
          %v1158 = vrot.slane %v1153, %v1157
          %v1159 = vlaneseq
          %v1160 = vshrl.u32 %v1159, 7
          %v1161 = vsub.s32 1, %v1160
          %v1162 = vrot.slane %v1153, %v1161
          %v1163 = vlaneseq
          %v1164 = vshrl.u32 %v1163, 7
          %v1165 = vsub.s32 2, %v1164
          %v1166 = vrot.slane %v1153, %v1165
          %v1167 = vlaneseq
          %v1168 = vshrl.u32 %v1167, 7
          %v1169 = vsub.s32 3, %v1168
          %v1170 = vrot.slane %v1153, %v1169
          %v1171 = vlaneseq
          %v1172 = vshrl.u32 %v1171, 7
          %v1173 = vsub.s32 4, %v1172
          %v1174 = vrot.slane %v1153, %v1173
          %v1175 = vlaneseq
          %v1176 = vshrl.u32 %v1175, 7
          %v1177 = vsub.s32 5, %v1176
          %v1178 = vrot.slane %v1153, %v1177
          %v1179 = vlaneseq
          %v1180 = vshrl.u32 %v1179, 7
          %v1181 = vsub.s32 6, %v1180
          %v1182 = vrot.slane %v1153, %v1181
          %v1183 = vlaneseq
          %v1184 = vshrl.u32 %v1183, 7
          %v1185 = vsub.s32 7, %v1184
          %v1186 = vrot.slane %v1153, %v1185
          %v1195 = vadd.f32 %v1110, %v1158
          %v1196 = vadd.f32 %v1116, %v1162
          %v1197 = vadd.f32 %v1122, %v1166
          %v1198 = vadd.f32 %v1128, %v1170
          %v1199 = vadd.f32 %v1134, %v1174
          %v1200 = vadd.f32 %v1140, %v1178
          %v1201 = vadd.f32 %v1146, %v1182
          %v1202 = vadd.f32 %v1152, %v1186
          %v1203 = vmax.f32 %v1195, 0.0
          %v1204 = vmax.f32 %v1196, 0.0
          %v1205 = vmax.f32 %v1197, 0.0
          %v1206 = vmax.f32 %v1198, 0.0
          %v1207 = vmax.f32 %v1199, 0.0
          %v1208 = vmax.f32 %v1200, 0.0
          %v1209 = vmax.f32 %v1201, 0.0
          %v1210 = vmax.f32 %v1202, 0.0
          %v1219 = vcombine.low %v1203, %v1204
          %v1220 = vcombine.low %v1205, %v1206
          %v1221 = vcombine.low %v1207, %v1208
          %v1222 = vcombine.low %v1209, %v1210
          %v1224 = vunpack.c.l.s4 1966171168
          %v1225 = vunpack.c.0.s8 %v1224
          %v1226 = vlaneseq
          %v1227 = vshrl.u32 %v1226, 7
          %v1228 = vsub.s32 %v1225, %v1227
          %v1229 = vrot.slane %v1219, %v1228
          %v1231 = vunpack.c.l.s4 1966171168
          %v1232 = vunpack.c.0.s8 %v1231
          %v1233 = vlaneseq
          %v1234 = vshrl.u32 %v1233, 7
          %v1235 = vsub.s32 %v1232, %v1234
          %v1236 = vrot.slane %v1220, %v1235
          %v1238 = vunpack.c.l.s4 1966171168
          %v1239 = vunpack.c.0.s8 %v1238
          %v1240 = vlaneseq
          %v1241 = vshrl.u32 %v1240, 7
          %v1242 = vsub.s32 %v1239, %v1241
          %v1243 = vrot.slane %v1221, %v1242
          %v1245 = vunpack.c.l.s4 1966171168
          %v1246 = vunpack.c.0.s8 %v1245
          %v1247 = vlaneseq
          %v1248 = vshrl.u32 %v1247, 7
          %v1249 = vsub.s32 %v1246, %v1248
          %v1250 = vrot.slane %v1222, %v1249
          %v1251 = vcombine.low %v1229, %v1236
          %v1252 = vcombine.low %v1243, %v1250
          %v1254 = vunpack.c.l.s4 1966171168
          %v1255 = vunpack.c.0.s8 %v1254
          %v1256 = vlaneseq
          %v1257 = vshrl.u32 %v1256, 7
          %v1258 = vsub.s32 %v1255, %v1257
          %v1259 = vrot.slane %v1251, %v1258
          %v1261 = vunpack.c.l.s4 1966171168
          %v1262 = vunpack.c.0.s8 %v1261
          %v1263 = vlaneseq
          %v1264 = vshrl.u32 %v1263, 7
          %v1265 = vsub.s32 %v1262, %v1264
          %v1266 = vrot.slane %v1252, %v1265
          %v1267 = vcombine.low %v1259, %v1266
          %1269 = vst [vmem:[%s346] sm:$0xff] %v1267
        $region72: #{tpu_custom_call.1} parent=47 // pred_fallthru
          _
        %s1270 = sand.u32 %s198, 1
        %s1271 = scalar_lea.sflag [#allocation5], %s1270
        %s1272 = sand.u32 %s198, 1
        %s1273 = smul.addr %s1272, 8
        %s1274 = scalar_lea.vmem [#allocation11], %s1273
        // Predicated region
        $region73: #{tpu_custom_call.1} parent=47 // pred_check
          %p1275 = pneg %p208
        $region74: #{tpu_custom_call.1} parent=47 // pred_check_branch
          %1277 = sbr.rel (%p1275) target = $region76
        $region75: #{tpu_custom_call.1} parent=47 // pred_region
          %s1279 = ssub.s32 128, 128
          %1280 = vsyncadd %s1271, %s1279
          %s1281 = smul.addr %s28, 8
          %s1282 = smul.addr %s1281, 16
          %s1283 = scalar_lea.hbm %s7, %s1282
          %s1285 = sshll.u32 %s1274, 4
          %s1286 = int_to_ptr.vmem [resolvable:$true] %s1285
          %1288 = dma.vmem_to_hbm [thread:$0]  %s1286, 128, %s1283, %s1271
        $region76: #{tpu_custom_call.1} parent=47 // pred_fallthru
          _
      $region48: #{tpu_custom_call.1} parent=5 // pred_fallthru
        _
      %p1289 = scmp.le.s32.totalorder 2, %s19
      // Predicated region
      $region77: #{tpu_custom_call.1} parent=5 // pred_check
        %p1290 = pneg %p1289
      $region78: #{tpu_custom_call.1} parent=5 // pred_check_branch
        %1292 = sbr.rel (%p1290) target = $region80
      $region79: #{tpu_custom_call.1} parent=5 // pred_region
        %s1293 = ssub.s32 %s19, 2
        // Predicated region
        $region81: #{tpu_custom_call.1} parent=79 // pred_check
          %p1294 = pneg %p214
        $region82: #{tpu_custom_call.1} parent=79 // pred_check_branch
          %1296 = sbr.rel (%p1294) target = $region84
        $region83: #{tpu_custom_call.1} parent=79 // pred_region
          %s1297 = sand.u32 %s199, 1
          %s1298 = scalar_lea.sflag [#allocation5], %s1297
          %s1299 = sand.u32 %s199, 1
          %s1300 = smul.addr %s1299, 8
          %s1301 = scalar_lea.vmem [#allocation11], %s1300
          %1302 = dma.done %s1298, 128
        $region84: #{tpu_custom_call.1} parent=79 // pred_fallthru
          _
      $region80: #{tpu_custom_call.1} parent=5 // pred_fallthru
        _
    $region6: #{tpu_custom_call.1} parent=1 // loop_footer
      %s23 = sadd.s32 1, %s19
    $region7: #{tpu_custom_call.1} parent=1 // loop_footer_branch
      %18 = sbr.rel target = $region3
    $region8: #{tpu_custom_call.1} parent=1 // loop_exit
      _
    %1303 = vsyncpa [#allocation4], 1
    %s1304 = scalar_lea.sflag [#allocation4], 1
    %1305 = vsyncpa %s1304, 1
    %1306 = vsyncpa [#allocation7], 1
    %1307 = vsyncpa [#allocation10], 1
    %1308 = vsyncpa [#allocation5], 1
    %s1309 = scalar_lea.sflag [#allocation5], 1
    %1310 = vsyncpa %s1309, 1

// kernel: tpu_custom_call.1
$region0: #{tpu_custom_call.1}
  #allocation0 [shape = 'u32[]', space=smem, size = 0x4, offset = 0x4, fixed_abs, tag = 'smem constant byte address 0x4 - core index']
  #allocation1 [shape = 'u32[144,128]{1,0:T(1,128)}', space=vmem, size = 0x12000, scoped, tag = 'internal scratch']
  #allocation2 [shape = 'f32[8,1024]{1,0:T(8,128)}', space=vmem, size = 0x8000, scoped, tag = 'scratch operand']
  %s0 = inlined_call_operand.vmem [shape: bf16[2,24,9], index: 0, kind: input, shape index: {}]
  %s1 = inlined_call_operand.hbm [shape: bf16[9,64], index: 1, kind: input, shape index: {}]
  %s2 = inlined_call_operand.hbm [shape: f32[1,64], index: 2, kind: input, shape index: {}]
  %s3 = inlined_call_operand.vmem [shape: bf16[64,128], index: 3, kind: input, shape index: {}]
  %s4 = inlined_call_operand.hbm [shape: f32[1,128], index: 4, kind: input, shape index: {}]
  %s5 = inlined_call_operand.hbm [shape: bf16[128,1024], index: 5, kind: input, shape index: {}]
  %s6 = inlined_call_operand.vmem [shape: f32[1,1024], index: 6, kind: input, shape index: {}]
  %s7 = inlined_call_operand.hbm [shape: f32[2,1,1024], index: 7, kind: output, shape index: {}]
  %s8 = sld [smem:[#allocation0]]
  $region85: #{tpu_custom_call.1} parent=0
    _
  %s10 = ssub.s32 1, %s8
  %s11 = scalar_select 0, %s10, %s8
  $region1: #{tpu_custom_call.1} parent=0
    #allocation3 [shape = 'u8[4096]{0}', space=vmem, size = 0x1000, scoped, tag = 'input window, operand 1, single buffered']
    #allocation4 [shape = 's32[2]{0}', space=sflag, size = 0x8, scoped, tag = 'scoped memory for tpu_custom_call.1']
    #allocation5 [shape = 's32[2]{0}', space=sflag, size = 0x8, scoped, tag = 'scoped memory for tpu_custom_call.1']
    #allocation6 [shape = 'u8[512]{0}', space=vmem, size = 0x400, scoped, tag = 'input window, operand 2, single buffered']
    #allocation7 [shape = 's32[1]{0}', space=sflag, size = 0x4, scoped, tag = 'scoped memory for tpu_custom_call.1']
    #allocation8 [shape = 'u8[512]{0}', space=vmem, size = 0x400, scoped, tag = 'input window, operand 4, single buffered']
    #allocation9 [shape = 'u8[262144]{0}', space=vmem, size = 0x40000, scoped, tag = 'input window, operand 5, single buffered']
    #allocation10 [shape = 's32[1]{0}', space=sflag, size = 0x4, scoped, tag = 'scoped memory for tpu_custom_call.1']
    #allocation11 [shape = 'u8[8192]{0}', space=vmem, size = 0x2000, scoped, tag = 'output window, operand 0']
    %12 = vsyncpa [#allocation4], 0
    %13 = vsyncpa [#allocation7], 0
    %14 = vsyncpa [#allocation10], 0
    %15 = vsyncpa [#allocation5], 0
    %s16 = scalar_lea.sflag [#allocation5], 1
    %17 = vsyncpa %s16, 0
    loop: start=0, step=1, limit=8
    $region2: #{tpu_custom_call.1} parent=1 // loop_pre_header
      _
    $region3: #{tpu_custom_call.1} parent=1 // loop_header
      %s19 = sphi 0, %s23
      %p20 = scmp.ge.s32.totalorder %s19, 8
      %s26 = sphi 0, %s38
      %s27 = sphi 0, %s34
      %s28 = sphi 0, %s26
      %s29 = sphi 0, %s27
      %s30 = sphi 0, %s28
      %s31 = sphi 0, %s29
      %s43 = sphi 0, %s45
      %s46 = sphi 0, %s43
      %s47 = sphi 0, %s46
      %s63 = sphi 0, %s47
      %s67 = sphi 0, %s67
      %s69 = sphi 0, %s67
      %s70 = sphi 0, %s69
      %s84 = sphi 0, %s70
      %s88 = sphi 0, %s88
      %s90 = sphi 0, %s88
      %s91 = sphi 0, %s90
      %s105 = sphi 0, %s91
      %s109 = sphi 0, %s109
      %s111 = sphi 0, %s109
      %s112 = sphi 0, %s111
      %s126 = sphi 0, %s112
      %s130 = sphi 0, %s130
      %s132 = sphi 0, %s130
      %s133 = sphi 0, %s132
      %s147 = sphi 0, %s133
      %s151 = sphi 0, %s151
      %s153 = sphi 0, %s151
      %s154 = sphi 0, %s153
      %s168 = sphi 0, %s154
      %s172 = sphi 0, %s172
      %s174 = sphi 0, %s172
      %s175 = sphi 0, %s174
      %s189 = sphi 0, %s175
      %s195 = sphi 0, %s197
      %s198 = sphi 0, %s195
      %s199 = sphi 0, %s198
      %s215 = sphi 0, %s199
    $region4: #{tpu_custom_call.1} parent=1 // loop_header_branch
      %22 = sbr.rel (%p20) target = $region8
    $region5: #{tpu_custom_call.1} parent=1 // loop_body
      %s24 = ssub.s32 %s19, 1
      %s25 = ssub.s32 %s19, 2
      %s32 = sadd.s32 1, %s27
      %p33 = scmp.ge.s32.totalorder %s32, 3
      %s34 = scalar_select %p33, 0, %s32
      %s35 = sadd.s32 1, %s26
      %s36 = scalar_select %p33, %s35, %s26
      %p37 = scmp.ge.s32.totalorder %s36, 2
      %s38 = scalar_select %p37, 0, %s36
      %s39 = ssub.s32 %s26, %s38
      %s40 = ssub.s32 %s27, %s34
      %s41 = sor.u32 %s39, %s40
      %p42 = scmp.eq.s32.totalorder %s41, 0
      %s44 = sadd.s32 %s43, 1
      %s45 = scalar_select %p42, %s43, %s44
      %p48 = pneg %p42
      %p49 = scmp.eq.s32.totalorder %s19, 5
      %p50 = por %p48, %p49
      %p51 = scmp.ne.s32.totalorder %s43, %s46
      %p52 = scmp.eq.s32.totalorder %s19, 0
      %p53 = por %p51, %p52
      %p54 = scmp.ne.s32.totalorder %s43, %s46
      %p55 = scmp.eq.s32.totalorder %s24, 5
      %p56 = por %p54, %p55
      %p57 = scmp.ne.s32.totalorder %s46, %s47
      %p58 = scmp.eq.s32.totalorder %s24, 0
      %p59 = por %p57, %p58
      %p60 = scmp.ne.s32.totalorder %s46, %s47
      %p61 = scmp.eq.s32.totalorder %s25, 5
      %p62 = por %p60, %p61
      %p64 = scmp.ne.s32.totalorder %s47, %s63
      %p65 = scmp.eq.s32.totalorder %s25, 0
      %p66 = por %p64, %p65
      %s68 = sadd.s32 %s67, 1
      %p71 = scmp.eq.s32.totalorder %s19, 5
      %p72 = scmp.ne.s32.totalorder %s67, %s69
      %p73 = scmp.eq.s32.totalorder %s19, 0
      %p74 = por %p72, %p73
      %p75 = scmp.ne.s32.totalorder %s67, %s69
      %p76 = scmp.eq.s32.totalorder %s24, 5
      %p77 = por %p75, %p76
      %p78 = scmp.ne.s32.totalorder %s69, %s70
      %p79 = scmp.eq.s32.totalorder %s24, 0
      %p80 = por %p78, %p79
      %p81 = scmp.ne.s32.totalorder %s69, %s70
      %p82 = scmp.eq.s32.totalorder %s25, 5
      %p83 = por %p81, %p82
      %p85 = scmp.ne.s32.totalorder %s70, %s84
      %p86 = scmp.eq.s32.totalorder %s25, 0
      %p87 = por %p85, %p86
      %s89 = sadd.s32 %s88, 1
      %p92 = scmp.eq.s32.totalorder %s19, 5
      %p93 = scmp.ne.s32.totalorder %s88, %s90
      %p94 = scmp.eq.s32.totalorder %s19, 0
      %p95 = por %p93, %p94
      %p96 = scmp.ne.s32.totalorder %s88, %s90
      %p97 = scmp.eq.s32.totalorder %s24, 5
      %p98 = por %p96, %p97
      %p99 = scmp.ne.s32.totalorder %s90, %s91
      %p100 = scmp.eq.s32.totalorder %s24, 0
      %p101 = por %p99, %p100
      %p102 = scmp.ne.s32.totalorder %s90, %s91
      %p103 = scmp.eq.s32.totalorder %s25, 5
      %p104 = por %p102, %p103
      %p106 = scmp.ne.s32.totalorder %s91, %s105
      %p107 = scmp.eq.s32.totalorder %s25, 0
      %p108 = por %p106, %p107
      %s110 = sadd.s32 %s109, 1
      %p113 = scmp.eq.s32.totalorder %s19, 5
      %p114 = scmp.ne.s32.totalorder %s109, %s111
      %p115 = scmp.eq.s32.totalorder %s19, 0
      %p116 = por %p114, %p115
      %p117 = scmp.ne.s32.totalorder %s109, %s111
      %p118 = scmp.eq.s32.totalorder %s24, 5
      %p119 = por %p117, %p118
      %p120 = scmp.ne.s32.totalorder %s111, %s112
      %p121 = scmp.eq.s32.totalorder %s24, 0
      %p122 = por %p120, %p121
      %p123 = scmp.ne.s32.totalorder %s111, %s112
      %p124 = scmp.eq.s32.totalorder %s25, 5
      %p125 = por %p123, %p124
      %p127 = scmp.ne.s32.totalorder %s112, %s126
      %p128 = scmp.eq.s32.totalorder %s25, 0
      %p129 = por %p127, %p128
      %s131 = sadd.s32 %s130, 1
      %p134 = scmp.eq.s32.totalorder %s19, 5
      %p135 = scmp.ne.s32.totalorder %s130, %s132
      %p136 = scmp.eq.s32.totalorder %s19, 0
      %p137 = por %p135, %p136
      %p138 = scmp.ne.s32.totalorder %s130, %s132
      %p139 = scmp.eq.s32.totalorder %s24, 5
      %p140 = por %p138, %p139
      %p141 = scmp.ne.s32.totalorder %s132, %s133
      %p142 = scmp.eq.s32.totalorder %s24, 0
      %p143 = por %p141, %p142
      %p144 = scmp.ne.s32.totalorder %s132, %s133
      %p145 = scmp.eq.s32.totalorder %s25, 5
      %p146 = por %p144, %p145
      %p148 = scmp.ne.s32.totalorder %s133, %s147
      %p149 = scmp.eq.s32.totalorder %s25, 0
      %p150 = por %p148, %p149
      %s152 = sadd.s32 %s151, 1
      %p155 = scmp.eq.s32.totalorder %s19, 5
      %p156 = scmp.ne.s32.totalorder %s151, %s153
      %p157 = scmp.eq.s32.totalorder %s19, 0
      %p158 = por %p156, %p157
      %p159 = scmp.ne.s32.totalorder %s151, %s153
      %p160 = scmp.eq.s32.totalorder %s24, 5
      %p161 = por %p159, %p160
      %p162 = scmp.ne.s32.totalorder %s153, %s154
      %p163 = scmp.eq.s32.totalorder %s24, 0
      %p164 = por %p162, %p163
      %p165 = scmp.ne.s32.totalorder %s153, %s154
      %p166 = scmp.eq.s32.totalorder %s25, 5
      %p167 = por %p165, %p166
      %p169 = scmp.ne.s32.totalorder %s154, %s168
      %p170 = scmp.eq.s32.totalorder %s25, 0
      %p171 = por %p169, %p170
      %s173 = sadd.s32 %s172, 1
      %p176 = scmp.eq.s32.totalorder %s19, 5
      %p177 = scmp.ne.s32.totalorder %s172, %s174
      %p178 = scmp.eq.s32.totalorder %s19, 0
      %p179 = por %p177, %p178
      %p180 = scmp.ne.s32.totalorder %s172, %s174
      %p181 = scmp.eq.s32.totalorder %s24, 5
      %p182 = por %p180, %p181
      %p183 = scmp.ne.s32.totalorder %s174, %s175
      %p184 = scmp.eq.s32.totalorder %s24, 0
      %p185 = por %p183, %p184
      %p186 = scmp.ne.s32.totalorder %s174, %s175
      %p187 = scmp.eq.s32.totalorder %s25, 5
      %p188 = por %p186, %p187
      %p190 = scmp.ne.s32.totalorder %s175, %s189
      %p191 = scmp.eq.s32.totalorder %s25, 0
      %p192 = por %p190, %p191
      %s193 = ssub.s32 %s26, %s38
      %p194 = scmp.eq.s32.totalorder %s193, 0
      %s196 = sadd.s32 %s195, 1
      %s197 = scalar_select %p194, %s195, %s196
      %p200 = pneg %p194
      %p201 = scmp.eq.s32.totalorder %s19, 5
      %p202 = por %p200, %p201
      %p203 = scmp.ne.s32.totalorder %s195, %s198
      %p204 = scmp.eq.s32.totalorder %s19, 0
      %p205 = por %p203, %p204
      %p206 = scmp.ne.s32.totalorder %s195, %s198
      %p207 = scmp.eq.s32.totalorder %s24, 5
      %p208 = por %p206, %p207
      %p209 = scmp.ne.s32.totalorder %s198, %s199
      %p210 = scmp.eq.s32.totalorder %s24, 0
      %p211 = por %p209, %p210
      %p212 = scmp.ne.s32.totalorder %s198, %s199
      %p213 = scmp.eq.s32.totalorder %s25, 5
      %p214 = por %p212, %p213
      %p216 = scmp.ne.s32.totalorder %s199, %s215
      %p217 = scmp.eq.s32.totalorder %s25, 0
      %p218 = por %p216, %p217
      %p219 = scmp.le.s32.totalorder 1, %s19
      %p220 = scmp.lt.s32.totalorder %s19, 7
      %p221 = pnand %p219, %p220
      %p222 = pneg %p221
      // Predicated region
      $region9: #{tpu_custom_call.1} parent=5 // pred_check
        _
      $region10: #{tpu_custom_call.1} parent=5 // pred_check_branch
        %224 = sbr.rel (%p221) target = $region12
      $region11: #{tpu_custom_call.1} parent=5 // pred_region
        %s225 = ssub.s32 %s19, 1
        // Predicated region
        $region13: #{tpu_custom_call.1} parent=11 // pred_check
          %p226 = pneg %p80
        $region14: #{tpu_custom_call.1} parent=11 // pred_check_branch
          %228 = sbr.rel (%p226) target = $region16
        $region15: #{tpu_custom_call.1} parent=11 // pred_region
          %s230 = ssub.s32 128, 128
          %231 = vsyncadd [#allocation4], %s230
          %s232 = sshll.u32 [#allocation3], 4
          %s233 = int_to_ptr.vmem [resolvable:$true] %s232
          %238 = dma.hbm_to_vmem [thread:$0]  %s1, 128, %s233, [#allocation4], 64, 64, 4
        $region16: #{tpu_custom_call.1} parent=11 // pred_fallthru
          _
        // Predicated region
        $region17: #{tpu_custom_call.1} parent=11 // pred_check
          %p239 = pneg %p101
        $region18: #{tpu_custom_call.1} parent=11 // pred_check_branch
          %241 = sbr.rel (%p239) target = $region20
        $region19: #{tpu_custom_call.1} parent=11 // pred_region
          %s243 = ssub.s32 16, 16
          %244 = vsyncadd [#allocation7], %s243
          %s246 = sshll.u32 [#allocation6], 4
          %s247 = int_to_ptr.vmem [resolvable:$true] %s246
          %249 = dma.hbm_to_vmem [thread:$0]  %s2, 16, %s247, [#allocation7]
        $region20: #{tpu_custom_call.1} parent=11 // pred_fallthru
          _
        // Predicated region
        $region21: #{tpu_custom_call.1} parent=11 // pred_check
          %p250 = pneg %p122
        $region22: #{tpu_custom_call.1} parent=11 // pred_check_branch
          %252 = sbr.rel (%p250) target = $region24
        $region23: #{tpu_custom_call.1} parent=11 // pred_region
          _
        $region24: #{tpu_custom_call.1} parent=11 // pred_fallthru
          _
        // Predicated region
        $region25: #{tpu_custom_call.1} parent=11 // pred_check
          %p253 = pneg %p143
        $region26: #{tpu_custom_call.1} parent=11 // pred_check_branch
          %255 = sbr.rel (%p253) target = $region28
        $region27: #{tpu_custom_call.1} parent=11 // pred_region
          %s257 = ssub.s32 16, 16
          %258 = vsyncadd [#allocation7], %s257
          %s260 = sshll.u32 [#allocation8], 4
          %s261 = int_to_ptr.vmem [resolvable:$true] %s260
          %263 = dma.hbm_to_vmem [thread:$0]  %s4, 16, %s261, [#allocation7]
        $region28: #{tpu_custom_call.1} parent=11 // pred_fallthru
          _
        // Predicated region
        $region29: #{tpu_custom_call.1} parent=11 // pred_check
          %p264 = pneg %p164
        $region30: #{tpu_custom_call.1} parent=11 // pred_check_branch
          %266 = sbr.rel (%p264) target = $region32
        $region31: #{tpu_custom_call.1} parent=11 // pred_region
          %s268 = ssub.s32 8192, 8192
          %269 = vsyncadd [#allocation10], %s268
          %s270 = sshll.u32 [#allocation9], 4
          %s271 = int_to_ptr.vmem [resolvable:$true] %s270
          %276 = dma.hbm_to_vmem [thread:$0]  %s5, 8192, %s271, [#allocation10], 512, 512, 32
        $region32: #{tpu_custom_call.1} parent=11 // pred_fallthru
          _
        // Predicated region
        $region33: #{tpu_custom_call.1} parent=11 // pred_check
          %p277 = pneg %p185
        $region34: #{tpu_custom_call.1} parent=11 // pred_check_branch
          %279 = sbr.rel (%p277) target = $region36
        $region35: #{tpu_custom_call.1} parent=11 // pred_region
          _
        $region36: #{tpu_custom_call.1} parent=11 // pred_fallthru
          _
      $region12: #{tpu_custom_call.1} parent=5 // pred_fallthru
        _
      %p280 = scmp.lt.s32.totalorder %s19, 6
      // Predicated region
      $region37: #{tpu_custom_call.1} parent=5 // pred_check
        %p281 = pneg %p280
      $region38: #{tpu_custom_call.1} parent=5 // pred_check_branch
        %283 = sbr.rel (%p281) target = $region40
      $region39: #{tpu_custom_call.1} parent=5 // pred_region
        // Predicated region
        $region41: #{tpu_custom_call.1} parent=39 // pred_check
          %p284 = pneg %p53
        $region42: #{tpu_custom_call.1} parent=39 // pred_check_branch
          %286 = sbr.rel (%p284) target = $region44
        $region43: #{tpu_custom_call.1} parent=39 // pred_region
          %p287 = scmp.lt.s32.totalorder %s26, 1
          %s288 = scalar_select %p287, %s26, 1
          %p289 = scmp.lt.s32.totalorder %s27, 2
          %s290 = scalar_select %p289, %s27, 2
          %s291 = smul.addr %s288, 3
          %s292 = sadd.s32 %s290, %s291
          %s293 = smul.addr %s292, 4
          %s294 = scalar_lea.vmem %s0, %s293
        $region44: #{tpu_custom_call.1} parent=39 // pred_fallthru
          _
      $region40: #{tpu_custom_call.1} parent=5 // pred_fallthru
        _
      %p295 = scmp.le.s32.totalorder 1, %s19
      %p296 = scmp.lt.s32.totalorder %s19, 7
      %p297 = pnand %p295, %p296
      %p298 = pneg %p297
      // Predicated region
      $region45: #{tpu_custom_call.1} parent=5 // pred_check
        _
      $region46: #{tpu_custom_call.1} parent=5 // pred_check_branch
        %300 = sbr.rel (%p297) target = $region48
      $region47: #{tpu_custom_call.1} parent=5 // pred_region
        %s301 = ssub.s32 %s19, 1
        // Predicated region
        $region49: #{tpu_custom_call.1} parent=47 // pred_check
          %p302 = pneg %p80
        $region50: #{tpu_custom_call.1} parent=47 // pred_check_branch
          %304 = sbr.rel (%p302) target = $region52
        $region51: #{tpu_custom_call.1} parent=47 // pred_region
          %305 = dma.done [#allocation4], 128
        $region52: #{tpu_custom_call.1} parent=47 // pred_fallthru
          _
        // Predicated region
        $region53: #{tpu_custom_call.1} parent=47 // pred_check
          %p306 = pneg %p101
        $region54: #{tpu_custom_call.1} parent=47 // pred_check_branch
          %308 = sbr.rel (%p306) target = $region56
        $region55: #{tpu_custom_call.1} parent=47 // pred_region
          %309 = dma.done [#allocation7], 16
        $region56: #{tpu_custom_call.1} parent=47 // pred_fallthru
          _
        // Predicated region
        $region57: #{tpu_custom_call.1} parent=47 // pred_check
          %p310 = pneg %p143
        $region58: #{tpu_custom_call.1} parent=47 // pred_check_branch
          %312 = sbr.rel (%p310) target = $region60
        $region59: #{tpu_custom_call.1} parent=47 // pred_region
          %313 = dma.done [#allocation7], 16
        $region60: #{tpu_custom_call.1} parent=47 // pred_fallthru
          _
        // Predicated region
        $region61: #{tpu_custom_call.1} parent=47 // pred_check
          %p314 = pneg %p164
        $region62: #{tpu_custom_call.1} parent=47 // pred_check_branch
          %316 = sbr.rel (%p314) target = $region64
        $region63: #{tpu_custom_call.1} parent=47 // pred_region
          %317 = dma.done [#allocation10], 8192
        $region64: #{tpu_custom_call.1} parent=47 // pred_fallthru
          _
        %p318 = scmp.lt.s32.totalorder %s28, 1
        %s319 = scalar_select %p318, %s28, 1
        %p320 = scmp.lt.s32.totalorder %s29, 2
        %s321 = scalar_select %p320, %s29, 2
        %s322 = smul.addr %s319, 3
        %s323 = sadd.s32 %s321, %s322
        %s324 = smul.addr %s323, 4
        %s325 = scalar_lea.vmem %s0, %s324
        %p326 = pneg %p59
        %p327 = pneg %p56
        %p328 = pneg %p80
        %p329 = pneg %p77
        %p330 = pneg %p101
        %p331 = pneg %p98
        %p332 = pneg %p122
        %p333 = pneg %p119
        %p334 = pneg %p143
        %p335 = pneg %p140
        %p336 = pneg %p164
        %p337 = pneg %p161
        %p338 = pneg %p185
        %p339 = pneg %p182
        %p340 = pneg %p211
        %p341 = pneg %p208
        %s342 = sand.u32 %s198, 1
        %s343 = scalar_lea.sflag [#allocation5], %s342
        %s344 = sand.u32 %s198, 1
        %s345 = smul.addr %s344, 8
        %s346 = scalar_lea.vmem [#allocation11], %s345
        %p347 = scmp.lt.s32.totalorder %s28, 1
        %s348 = scalar_select %p347, %s28, 1
        %p349 = scmp.lt.s32.totalorder %s29, 2
        %s350 = scalar_select %p349, %s29, 2
        %s351 = smul.addr %s348, 3
        %s352 = sadd.s32 %s350, %s351
        %s353 = smul.addr %s352, 4
        %s354 = scalar_lea.vmem %s0, %s353
        %p356 = scmp.eq.s32.totalorder %s29, 0
        // Predicated region
        $region65: #{tpu_custom_call.1} parent=47 // pred_check
          %p357 = pneg %p356
        $region66: #{tpu_custom_call.1} parent=47 // pred_check_branch
          %359 = sbr.rel (%p357) target = $region68
        $region67: #{tpu_custom_call.1} parent=47 // pred_region
          %360 = vst [vmem:[#allocation2] sm:$0xff] -inf
          %361 = vst [vmem:[#allocation2 + $0x8] sm:$0xff] -inf
          %362 = vst [vmem:[#allocation2 + $0x10] sm:$0xff] -inf
          %363 = vst [vmem:[#allocation2 + $0x18] sm:$0xff] -inf
          %364 = vst [vmem:[#allocation2 + $0x20] sm:$0xff] -inf
          %365 = vst [vmem:[#allocation2 + $0x28] sm:$0xff] -inf
          %366 = vst [vmem:[#allocation2 + $0x30] sm:$0xff] -inf
          %367 = vst [vmem:[#allocation2 + $0x38] sm:$0xff] -inf
        $region68: #{tpu_custom_call.1} parent=47 // pred_fallthru
          _
        %v368 = vld [vmem:[%s354] sm:$0xf]
        %v369 = vld [vmem:[#allocation3] sm:$0xf]
        %v370 = vld [vmem:[#allocation3 + $0x4] sm:$0x1]
        %v371 = vld [vmem:[#allocation6] sm:$0x1]
        %v373 = vlaneseq
        %v374 = vshrl.u32 %v373, 7
        %v375 = vsub.s32 0, %v374
        %v376 = vrot.slane %v371, %v375
        %v380 = vunpack.c.l.b16 %v369
        %v381 = vunpack.c.l.b16 %v370
        %v382 = vpack.c.b16 %v381, %v380
        %vm383 = vcmask 72704
        %v385 = vsel %vm383, %v368, 0
        %vm387 = vcmask 1043456
        %vm388 = vcmask 1044480
        %v389 = vsel %vm387, 4294967295, 65535
        %v390 = vsel %vm388, %v389, 0
        %v392 = vand.u32 %v382, %v390
        %394 = vmatprep.subr.bf16.mxu0 0
        %395 = vmatpush1.bf16.msra.mxu0 0
        %396 = vmatprep.subr.bf16.mxu0 0
        %397 = vmatpush1.bf16.msra.mxu0 0
        %398 = vmatprep.subr.bf16.mxu0 0
        %399 = vmatpush1.bf16.msra.mxu0 0
        %400 = vmatprep.subr.bf16.mxu0 0
        %401 = vmatpush1.bf16.msra.mxu0 0
        %402 = vmatprep.subr.bf16.mxu0 0
        %403 = vmatpush1.bf16.msra.mxu0 0
        %404 = vmatprep.subr.bf16.mxu0 0
        %405 = vmatpush1.bf16.msra.mxu0 0
        %406 = vmatprep.subr.bf16.mxu0 0
        %407 = vmatpush1.bf16.msra.mxu0 0
        %408 = vmatprep.subr.bf16.mxu0 0
        %409 = vmatpush1.bf16.msra.mxu0 %v392
        %410 = vmatprep.subr.bf16.mxu0 0
        %411 = vmatpush2.bf16.msra.mxu0 0
        %412 = vmatprep.subr.bf16.mxu0 0
        %413 = vmatpush2.bf16.msra.mxu0 0
        %414 = vmatprep.subr.bf16.mxu0 0
        %415 = vmatpush2.bf16.msra.mxu0 0
        %416 = vmatprep.subr.bf16.mxu0 0
        %417 = vmatpush2.bf16.msra.mxu0 0
        %418 = vmatprep.subr.bf16.mxu0 0
        %419 = vmatpush2.bf16.msra.mxu0 0
        %420 = vmatprep.subr.bf16.mxu0 0
        %421 = vmatpush2.bf16.msra.mxu0 0
        %422 = vmatprep.subr.bf16.mxu0 0
        %423 = vmatpush2.bf16.msra.mxu0 0
        %424 = vmatprep.subr.bf16.mxu0 0
        %425 = vmatpush2.bf16.msra.mxu0 0
        %426 = vmatprep.mubr.bf16.mxu0 0
        %427 = vmatmul.mubr.bf16.gmra.mxu0 %v385
        %v428 = vpop.f32.mrf.mxu0
        %v429 = vadd.f32 %v376, %v428
        %v430 = vpop.f32.mrf.mxu0
        %v431 = vpop.f32.mrf.mxu0
        %v432 = vpop.f32.mrf.mxu0
        %433 = vdwg.mxu0
        %v434 = vmax.f32 %v429, 0.0
        %v435 = vpack.c.bf16 %v434, %v434
        %v436 = vld [vmem:[%s3] sm:$0xf]
        %v437 = vld [vmem:[%s3 + $0x4] sm:$0xf]
        %v438 = vld [vmem:[%s3 + $0x8] sm:$0xf]
        %v439 = vld [vmem:[%s3 + $0xc] sm:$0xf]
        %v440 = vld [vmem:[%s3 + $0x10] sm:$0xf]
        %v441 = vld [vmem:[%s3 + $0x14] sm:$0xf]
        %v442 = vld [vmem:[%s3 + $0x18] sm:$0xf]
        %v443 = vld [vmem:[%s3 + $0x1c] sm:$0xf]
        %v444 = vld [vmem:[#allocation8] sm:$0x1]
        %v446 = vlaneseq
        %v447 = vshrl.u32 %v446, 7
        %v448 = vsub.s32 0, %v447
        %v449 = vrot.slane %v444, %v448
        %v459 = vunpack.c.l.b16 %v436
        %v460 = vunpack.c.l.b16 %v437
        %v461 = vunpack.c.l.b16 %v438
        %v462 = vunpack.c.l.b16 %v439
        %v463 = vunpack.c.l.b16 %v440
        %v464 = vunpack.c.l.b16 %v441
        %v465 = vunpack.c.l.b16 %v442
        %v466 = vunpack.c.l.b16 %v443
        %v467 = vpack.c.b16 %v460, %v459
        %v468 = vpack.c.b16 %v462, %v461
        %v469 = vpack.c.b16 %v464, %v463
        %v470 = vpack.c.b16 %v466, %v465
        %vm475 = vcmask 523264
        %v477 = vsel %vm475, %v435, 0
        %479 = vmatprep.subr.bf16.mxu0 0
        %480 = vmatpush1.bf16.msra.mxu0 0
        %481 = vmatprep.subr.bf16.mxu0 0
        %482 = vmatpush1.bf16.msra.mxu0 0
        %483 = vmatprep.subr.bf16.mxu0 0
        %484 = vmatpush1.bf16.msra.mxu0 0
        %485 = vmatprep.subr.bf16.mxu0 0
        %486 = vmatpush1.bf16.msra.mxu0 0
        %487 = vmatprep.subr.bf16.mxu0 0
        %488 = vmatpush1.bf16.msra.mxu0 %v470
        %489 = vmatprep.subr.bf16.mxu0 0
        %490 = vmatpush1.bf16.msra.mxu0 %v469
        %491 = vmatprep.subr.bf16.mxu0 0
        %492 = vmatpush1.bf16.msra.mxu0 %v468
        %493 = vmatprep.subr.bf16.mxu0 0
        %494 = vmatpush1.bf16.msra.mxu0 %v467
        %495 = vmatprep.subr.bf16.mxu0 0
        %496 = vmatpush2.bf16.msra.mxu0 0
        %497 = vmatprep.subr.bf16.mxu0 0
        %498 = vmatpush2.bf16.msra.mxu0 0
        %499 = vmatprep.subr.bf16.mxu0 0
        %500 = vmatpush2.bf16.msra.mxu0 0
        %501 = vmatprep.subr.bf16.mxu0 0
        %502 = vmatpush2.bf16.msra.mxu0 0
        %503 = vmatprep.subr.bf16.mxu0 0
        %504 = vmatpush2.bf16.msra.mxu0 0
        %505 = vmatprep.subr.bf16.mxu0 0
        %506 = vmatpush2.bf16.msra.mxu0 0
        %507 = vmatprep.subr.bf16.mxu0 0
        %508 = vmatpush2.bf16.msra.mxu0 0
        %509 = vmatprep.subr.bf16.mxu0 0
        %510 = vmatpush2.bf16.msra.mxu0 0
        %511 = vmatprep.mubr.bf16.mxu0 0
        %512 = vmatmul.mubr.bf16.gmra.mxu0 %v477
        %v513 = vpop.f32.mrf.mxu0
        %v514 = vadd.f32 %v449, %v513
        %v515 = vpop.f32.mrf.mxu0
        %v516 = vpop.f32.mrf.mxu0
        %v517 = vpop.f32.mrf.mxu0
        %518 = vdwg.mxu0
        %v519 = vmax.f32 %v514, 0.0
        %v520 = vpack.c.bf16 %v519, %v519
        %v521 = vld [vmem:[#allocation9] sm:$0xff]
        %v522 = vld [vmem:[#allocation9 + $0x8] sm:$0xff]
        %v523 = vld [vmem:[#allocation9 + $0x10] sm:$0xff]
        %v524 = vld [vmem:[#allocation9 + $0x18] sm:$0xff]
        %v525 = vld [vmem:[#allocation9 + $0x20] sm:$0xff]
        %v526 = vld [vmem:[#allocation9 + $0x28] sm:$0xff]
        %v527 = vld [vmem:[#allocation9 + $0x30] sm:$0xff]
        %v528 = vld [vmem:[#allocation9 + $0x38] sm:$0xff]
        %v529 = vld [vmem:[#allocation9 + $0x40] sm:$0xff]
        %v530 = vld [vmem:[#allocation9 + $0x48] sm:$0xff]
        %v531 = vld [vmem:[#allocation9 + $0x50] sm:$0xff]
        %v532 = vld [vmem:[#allocation9 + $0x58] sm:$0xff]
        %v533 = vld [vmem:[#allocation9 + $0x60] sm:$0xff]
        %v534 = vld [vmem:[#allocation9 + $0x68] sm:$0xff]
        %v535 = vld [vmem:[#allocation9 + $0x70] sm:$0xff]
        %v536 = vld [vmem:[#allocation9 + $0x78] sm:$0xff]
        %v537 = vld [vmem:[#allocation9 + $0x80] sm:$0xff]
        %v538 = vld [vmem:[#allocation9 + $0x88] sm:$0xff]
        %v539 = vld [vmem:[#allocation9 + $0x90] sm:$0xff]
        %v540 = vld [vmem:[#allocation9 + $0x98] sm:$0xff]
        %v541 = vld [vmem:[#allocation9 + $0xa0] sm:$0xff]
        %v542 = vld [vmem:[#allocation9 + $0xa8] sm:$0xff]
        %v543 = vld [vmem:[#allocation9 + $0xb0] sm:$0xff]
        %v544 = vld [vmem:[#allocation9 + $0xb8] sm:$0xff]
        %v545 = vld [vmem:[#allocation9 + $0xc0] sm:$0xff]
        %v546 = vld [vmem:[#allocation9 + $0xc8] sm:$0xff]
        %v547 = vld [vmem:[#allocation9 + $0xd0] sm:$0xff]
        %v548 = vld [vmem:[#allocation9 + $0xd8] sm:$0xff]
        %v549 = vld [vmem:[#allocation9 + $0xe0] sm:$0xff]
        %v550 = vld [vmem:[#allocation9 + $0xe8] sm:$0xff]
        %v551 = vld [vmem:[#allocation9 + $0xf0] sm:$0xff]
        %v552 = vld [vmem:[#allocation9 + $0xf8] sm:$0xff]
        %v553 = vld [vmem:[#allocation9 + $0x100] sm:$0xff]
        %v554 = vld [vmem:[#allocation9 + $0x108] sm:$0xff]
        %v555 = vld [vmem:[#allocation9 + $0x110] sm:$0xff]
        %v556 = vld [vmem:[#allocation9 + $0x118] sm:$0xff]
        %v557 = vld [vmem:[#allocation9 + $0x120] sm:$0xff]
        %v558 = vld [vmem:[#allocation9 + $0x128] sm:$0xff]
        %v559 = vld [vmem:[#allocation9 + $0x130] sm:$0xff]
        %v560 = vld [vmem:[#allocation9 + $0x138] sm:$0xff]
        %v561 = vld [vmem:[#allocation9 + $0x140] sm:$0xff]
        %v562 = vld [vmem:[#allocation9 + $0x148] sm:$0xff]
        %v563 = vld [vmem:[#allocation9 + $0x150] sm:$0xff]
        %v564 = vld [vmem:[#allocation9 + $0x158] sm:$0xff]
        %v565 = vld [vmem:[#allocation9 + $0x160] sm:$0xff]
        %v566 = vld [vmem:[#allocation9 + $0x168] sm:$0xff]
        %v567 = vld [vmem:[#allocation9 + $0x170] sm:$0xff]
        %v568 = vld [vmem:[#allocation9 + $0x178] sm:$0xff]
        %v569 = vld [vmem:[#allocation9 + $0x180] sm:$0xff]
        %v570 = vld [vmem:[#allocation9 + $0x188] sm:$0xff]
        %v571 = vld [vmem:[#allocation9 + $0x190] sm:$0xff]
        %v572 = vld [vmem:[#allocation9 + $0x198] sm:$0xff]
        %v573 = vld [vmem:[#allocation9 + $0x1a0] sm:$0xff]
        %v574 = vld [vmem:[#allocation9 + $0x1a8] sm:$0xff]
        %v575 = vld [vmem:[#allocation9 + $0x1b0] sm:$0xff]
        %v576 = vld [vmem:[#allocation9 + $0x1b8] sm:$0xff]
        %v577 = vld [vmem:[#allocation9 + $0x1c0] sm:$0xff]
        %v578 = vld [vmem:[#allocation9 + $0x1c8] sm:$0xff]
        %v579 = vld [vmem:[#allocation9 + $0x1d0] sm:$0xff]
        %v580 = vld [vmem:[#allocation9 + $0x1d8] sm:$0xff]
        %v581 = vld [vmem:[#allocation9 + $0x1e0] sm:$0xff]
        %v582 = vld [vmem:[#allocation9 + $0x1e8] sm:$0xff]
        %v583 = vld [vmem:[#allocation9 + $0x1f0] sm:$0xff]
        %v584 = vld [vmem:[#allocation9 + $0x1f8] sm:$0xff]
        %v649 = vunpack.c.l.b16 %v521
        %v650 = vunpack.c.h.b16 %v521
        %v651 = vunpack.c.l.b16 %v522
        %v652 = vunpack.c.h.b16 %v522
        %v653 = vunpack.c.l.b16 %v523
        %v654 = vunpack.c.h.b16 %v523
        %v655 = vunpack.c.l.b16 %v524
        %v656 = vunpack.c.h.b16 %v524
        %v657 = vunpack.c.l.b16 %v525
        %v658 = vunpack.c.h.b16 %v525
        %v659 = vunpack.c.l.b16 %v526
        %v660 = vunpack.c.h.b16 %v526
        %v661 = vunpack.c.l.b16 %v527
        %v662 = vunpack.c.h.b16 %v527
        %v663 = vunpack.c.l.b16 %v528
        %v664 = vunpack.c.h.b16 %v528
        %v665 = vunpack.c.l.b16 %v529
        %v666 = vunpack.c.h.b16 %v529
        %v667 = vunpack.c.l.b16 %v530
        %v668 = vunpack.c.h.b16 %v530
        %v669 = vunpack.c.l.b16 %v531
        %v670 = vunpack.c.h.b16 %v531
        %v671 = vunpack.c.l.b16 %v532
        %v672 = vunpack.c.h.b16 %v532
        %v673 = vunpack.c.l.b16 %v533
        %v674 = vunpack.c.h.b16 %v533
        %v675 = vunpack.c.l.b16 %v534
        %v676 = vunpack.c.h.b16 %v534
        %v677 = vunpack.c.l.b16 %v535
        %v678 = vunpack.c.h.b16 %v535
        %v679 = vunpack.c.l.b16 %v536
        %v680 = vunpack.c.h.b16 %v536
        %v681 = vunpack.c.l.b16 %v537
        %v682 = vunpack.c.h.b16 %v537
        %v683 = vunpack.c.l.b16 %v538
        %v684 = vunpack.c.h.b16 %v538
        %v685 = vunpack.c.l.b16 %v539
        %v686 = vunpack.c.h.b16 %v539
        %v687 = vunpack.c.l.b16 %v540
        %v688 = vunpack.c.h.b16 %v540
        %v689 = vunpack.c.l.b16 %v541
        %v690 = vunpack.c.h.b16 %v541
        %v691 = vunpack.c.l.b16 %v542
        %v692 = vunpack.c.h.b16 %v542
        %v693 = vunpack.c.l.b16 %v543
        %v694 = vunpack.c.h.b16 %v543
        %v695 = vunpack.c.l.b16 %v544
        %v696 = vunpack.c.h.b16 %v544
        %v697 = vunpack.c.l.b16 %v545
        %v698 = vunpack.c.h.b16 %v545
        %v699 = vunpack.c.l.b16 %v546
        %v700 = vunpack.c.h.b16 %v546
        %v701 = vunpack.c.l.b16 %v547
        %v702 = vunpack.c.h.b16 %v547
        %v703 = vunpack.c.l.b16 %v548
        %v704 = vunpack.c.h.b16 %v548
        %v705 = vunpack.c.l.b16 %v549
        %v706 = vunpack.c.h.b16 %v549
        %v707 = vunpack.c.l.b16 %v550
        %v708 = vunpack.c.h.b16 %v550
        %v709 = vunpack.c.l.b16 %v551
        %v710 = vunpack.c.h.b16 %v551
        %v711 = vunpack.c.l.b16 %v552
        %v712 = vunpack.c.h.b16 %v552
        %v713 = vunpack.c.l.b16 %v553
        %v714 = vunpack.c.h.b16 %v553
        %v715 = vunpack.c.l.b16 %v554
        %v716 = vunpack.c.h.b16 %v554
        %v717 = vunpack.c.l.b16 %v555
        %v718 = vunpack.c.h.b16 %v555
        %v719 = vunpack.c.l.b16 %v556
        %v720 = vunpack.c.h.b16 %v556
        %v721 = vunpack.c.l.b16 %v557
        %v722 = vunpack.c.h.b16 %v557
        %v723 = vunpack.c.l.b16 %v558
        %v724 = vunpack.c.h.b16 %v558
        %v725 = vunpack.c.l.b16 %v559
        %v726 = vunpack.c.h.b16 %v559
        %v727 = vunpack.c.l.b16 %v560
        %v728 = vunpack.c.h.b16 %v560
        %v729 = vunpack.c.l.b16 %v561
        %v730 = vunpack.c.h.b16 %v561
        %v731 = vunpack.c.l.b16 %v562
        %v732 = vunpack.c.h.b16 %v562
        %v733 = vunpack.c.l.b16 %v563
        %v734 = vunpack.c.h.b16 %v563
        %v735 = vunpack.c.l.b16 %v564
        %v736 = vunpack.c.h.b16 %v564
        %v737 = vunpack.c.l.b16 %v565
        %v738 = vunpack.c.h.b16 %v565
        %v739 = vunpack.c.l.b16 %v566
        %v740 = vunpack.c.h.b16 %v566
        %v741 = vunpack.c.l.b16 %v567
        %v742 = vunpack.c.h.b16 %v567
        %v743 = vunpack.c.l.b16 %v568
        %v744 = vunpack.c.h.b16 %v568
        %v745 = vunpack.c.l.b16 %v569
        %v746 = vunpack.c.h.b16 %v569
        %v747 = vunpack.c.l.b16 %v570
        %v748 = vunpack.c.h.b16 %v570
        %v749 = vunpack.c.l.b16 %v571
        %v750 = vunpack.c.h.b16 %v571
        %v751 = vunpack.c.l.b16 %v572
        %v752 = vunpack.c.h.b16 %v572
        %v753 = vunpack.c.l.b16 %v573
        %v754 = vunpack.c.h.b16 %v573
        %v755 = vunpack.c.l.b16 %v574
        %v756 = vunpack.c.h.b16 %v574
        %v757 = vunpack.c.l.b16 %v575
        %v758 = vunpack.c.h.b16 %v575
        %v759 = vunpack.c.l.b16 %v576
        %v760 = vunpack.c.h.b16 %v576
        %v761 = vunpack.c.l.b16 %v577
        %v762 = vunpack.c.h.b16 %v577
        %v763 = vunpack.c.l.b16 %v578
        %v764 = vunpack.c.h.b16 %v578
        %v765 = vunpack.c.l.b16 %v579
        %v766 = vunpack.c.h.b16 %v579
        %v767 = vunpack.c.l.b16 %v580
        %v768 = vunpack.c.h.b16 %v580
        %v769 = vunpack.c.l.b16 %v581
        %v770 = vunpack.c.h.b16 %v581
        %v771 = vunpack.c.l.b16 %v582
        %v772 = vunpack.c.h.b16 %v582
        %v773 = vunpack.c.l.b16 %v583
        %v774 = vunpack.c.h.b16 %v583
        %v775 = vunpack.c.l.b16 %v584
        %v776 = vunpack.c.h.b16 %v584
        %v777 = vpack.c.b16 %v657, %v649
        %v778 = vpack.c.b16 %v658, %v650
        %v779 = vpack.c.b16 %v659, %v651
        %v780 = vpack.c.b16 %v660, %v652
        %v781 = vpack.c.b16 %v661, %v653
        %v782 = vpack.c.b16 %v662, %v654
        %v783 = vpack.c.b16 %v663, %v655
        %v784 = vpack.c.b16 %v664, %v656
        %v785 = vpack.c.b16 %v673, %v665
        %v786 = vpack.c.b16 %v674, %v666
        %v787 = vpack.c.b16 %v675, %v667
        %v788 = vpack.c.b16 %v676, %v668
        %v789 = vpack.c.b16 %v677, %v669
        %v790 = vpack.c.b16 %v678, %v670
        %v791 = vpack.c.b16 %v679, %v671
        %v792 = vpack.c.b16 %v680, %v672
        %v793 = vpack.c.b16 %v689, %v681
        %v794 = vpack.c.b16 %v690, %v682
        %v795 = vpack.c.b16 %v691, %v683
        %v796 = vpack.c.b16 %v692, %v684
        %v797 = vpack.c.b16 %v693, %v685
        %v798 = vpack.c.b16 %v694, %v686
        %v799 = vpack.c.b16 %v695, %v687
        %v800 = vpack.c.b16 %v696, %v688
        %v801 = vpack.c.b16 %v705, %v697
        %v802 = vpack.c.b16 %v706, %v698
        %v803 = vpack.c.b16 %v707, %v699
        %v804 = vpack.c.b16 %v708, %v700
        %v805 = vpack.c.b16 %v709, %v701
        %v806 = vpack.c.b16 %v710, %v702
        %v807 = vpack.c.b16 %v711, %v703
        %v808 = vpack.c.b16 %v712, %v704
        %v809 = vpack.c.b16 %v721, %v713
        %v810 = vpack.c.b16 %v722, %v714
        %v811 = vpack.c.b16 %v723, %v715
        %v812 = vpack.c.b16 %v724, %v716
        %v813 = vpack.c.b16 %v725, %v717
        %v814 = vpack.c.b16 %v726, %v718
        %v815 = vpack.c.b16 %v727, %v719
        %v816 = vpack.c.b16 %v728, %v720
        %v817 = vpack.c.b16 %v737, %v729
        %v818 = vpack.c.b16 %v738, %v730
        %v819 = vpack.c.b16 %v739, %v731
        %v820 = vpack.c.b16 %v740, %v732
        %v821 = vpack.c.b16 %v741, %v733
        %v822 = vpack.c.b16 %v742, %v734
        %v823 = vpack.c.b16 %v743, %v735
        %v824 = vpack.c.b16 %v744, %v736
        %v825 = vpack.c.b16 %v753, %v745
        %v826 = vpack.c.b16 %v754, %v746
        %v827 = vpack.c.b16 %v755, %v747
        %v828 = vpack.c.b16 %v756, %v748
        %v829 = vpack.c.b16 %v757, %v749
        %v830 = vpack.c.b16 %v758, %v750
        %v831 = vpack.c.b16 %v759, %v751
        %v832 = vpack.c.b16 %v760, %v752
        %v833 = vpack.c.b16 %v769, %v761
        %v834 = vpack.c.b16 %v770, %v762
        %v835 = vpack.c.b16 %v771, %v763
        %v836 = vpack.c.b16 %v772, %v764
        %v837 = vpack.c.b16 %v773, %v765
        %v838 = vpack.c.b16 %v774, %v766
        %v839 = vpack.c.b16 %v775, %v767
        %v840 = vpack.c.b16 %v776, %v768
        %905 = vmatprep.subr.bf16.mxu0 %v834
        %906 = vmatpush1.bf16.msra.mxu0 %v833
        %907 = vmatprep.subr.bf16.mxu0 %v826
        %908 = vmatpush1.bf16.msra.mxu0 %v825
        %909 = vmatprep.subr.bf16.mxu0 %v818
        %910 = vmatpush1.bf16.msra.mxu0 %v817
        %911 = vmatprep.subr.bf16.mxu0 %v810
        %912 = vmatpush1.bf16.msra.mxu0 %v809
        %913 = vmatprep.subr.bf16.mxu0 %v802
        %914 = vmatpush1.bf16.msra.mxu0 %v801
        %915 = vmatprep.subr.bf16.mxu0 %v794
        %916 = vmatpush1.bf16.msra.mxu0 %v793
        %917 = vmatprep.subr.bf16.mxu0 %v786
        %918 = vmatpush1.bf16.msra.mxu0 %v785
        %919 = vmatprep.subr.bf16.mxu0 %v778
        %920 = vmatpush1.bf16.msra.mxu0 %v777
        %921 = vmatprep.subr.bf16.mxu0 0
        %922 = vmatpush2.bf16.msra.mxu0 0
        %923 = vmatprep.subr.bf16.mxu0 0
        %924 = vmatpush2.bf16.msra.mxu0 0
        %925 = vmatprep.subr.bf16.mxu0 0
        %926 = vmatpush2.bf16.msra.mxu0 0
        %927 = vmatprep.subr.bf16.mxu0 0
        %928 = vmatpush2.bf16.msra.mxu0 0
        %929 = vmatprep.subr.bf16.mxu0 0
        %930 = vmatpush2.bf16.msra.mxu0 0
        %931 = vmatprep.subr.bf16.mxu0 0
        %932 = vmatpush2.bf16.msra.mxu0 0
        %933 = vmatprep.subr.bf16.mxu0 0
        %934 = vmatpush2.bf16.msra.mxu0 0
        %935 = vmatprep.subr.bf16.mxu0 0
        %936 = vmatpush2.bf16.msra.mxu0 0
        %937 = vmatprep.mubr.bf16.mxu0 0
        %938 = vmatmul.mubr.bf16.gmra.mxu0 %v520
        %v939 = vpop.f32.mrf.mxu0
        %v940 = vadd.f32 0.0, %v939
        %v941 = vpop.f32.mrf.mxu0
        %v942 = vadd.f32 0.0, %v941
        %v943 = vpop.f32.mrf.mxu0
        %v944 = vpop.f32.mrf.mxu0
        %945 = vdwg.mxu0
        %946 = vmatprep.subr.bf16.mxu0 %v836
        %947 = vmatpush1.bf16.msra.mxu0 %v835
        %948 = vmatprep.subr.bf16.mxu0 %v828
        %949 = vmatpush1.bf16.msra.mxu0 %v827
        %950 = vmatprep.subr.bf16.mxu0 %v820
        %951 = vmatpush1.bf16.msra.mxu0 %v819
        %952 = vmatprep.subr.bf16.mxu0 %v812
        %953 = vmatpush1.bf16.msra.mxu0 %v811
        %954 = vmatprep.subr.bf16.mxu0 %v804
        %955 = vmatpush1.bf16.msra.mxu0 %v803
        %956 = vmatprep.subr.bf16.mxu0 %v796
        %957 = vmatpush1.bf16.msra.mxu0 %v795
        %958 = vmatprep.subr.bf16.mxu0 %v788
        %959 = vmatpush1.bf16.msra.mxu0 %v787
        %960 = vmatprep.subr.bf16.mxu0 %v780
        %961 = vmatpush1.bf16.msra.mxu0 %v779
        %962 = vmatprep.subr.bf16.mxu0 0
        %963 = vmatpush2.bf16.msra.mxu0 0
        %964 = vmatprep.subr.bf16.mxu0 0
        %965 = vmatpush2.bf16.msra.mxu0 0
        %966 = vmatprep.subr.bf16.mxu0 0
        %967 = vmatpush2.bf16.msra.mxu0 0
        %968 = vmatprep.subr.bf16.mxu0 0
        %969 = vmatpush2.bf16.msra.mxu0 0
        %970 = vmatprep.subr.bf16.mxu0 0
        %971 = vmatpush2.bf16.msra.mxu0 0
        %972 = vmatprep.subr.bf16.mxu0 0
        %973 = vmatpush2.bf16.msra.mxu0 0
        %974 = vmatprep.subr.bf16.mxu0 0
        %975 = vmatpush2.bf16.msra.mxu0 0
        %976 = vmatprep.subr.bf16.mxu0 0
        %977 = vmatpush2.bf16.msra.mxu0 0
        %978 = vmatprep.mubr.bf16.mxu0 0
        %979 = vmatmul.mubr.bf16.gmra.mxu0 %v520
        %v980 = vpop.f32.mrf.mxu0
        %v981 = vadd.f32 0.0, %v980
        %v982 = vpop.f32.mrf.mxu0
        %v983 = vadd.f32 0.0, %v982
        %v984 = vpop.f32.mrf.mxu0
        %v985 = vpop.f32.mrf.mxu0
        %986 = vdwg.mxu0
        %987 = vmatprep.subr.bf16.mxu0 %v838
        %988 = vmatpush1.bf16.msra.mxu0 %v837
        %989 = vmatprep.subr.bf16.mxu0 %v830
        %990 = vmatpush1.bf16.msra.mxu0 %v829
        %991 = vmatprep.subr.bf16.mxu0 %v822
        %992 = vmatpush1.bf16.msra.mxu0 %v821
        %993 = vmatprep.subr.bf16.mxu0 %v814
        %994 = vmatpush1.bf16.msra.mxu0 %v813
        %995 = vmatprep.subr.bf16.mxu0 %v806
        %996 = vmatpush1.bf16.msra.mxu0 %v805
        %997 = vmatprep.subr.bf16.mxu0 %v798
        %998 = vmatpush1.bf16.msra.mxu0 %v797
        %999 = vmatprep.subr.bf16.mxu0 %v790
        %1000 = vmatpush1.bf16.msra.mxu0 %v789
        %1001 = vmatprep.subr.bf16.mxu0 %v782
        %1002 = vmatpush1.bf16.msra.mxu0 %v781
        %1003 = vmatprep.subr.bf16.mxu0 0
        %1004 = vmatpush2.bf16.msra.mxu0 0
        %1005 = vmatprep.subr.bf16.mxu0 0
        %1006 = vmatpush2.bf16.msra.mxu0 0
        %1007 = vmatprep.subr.bf16.mxu0 0
        %1008 = vmatpush2.bf16.msra.mxu0 0
        %1009 = vmatprep.subr.bf16.mxu0 0
        %1010 = vmatpush2.bf16.msra.mxu0 0
        %1011 = vmatprep.subr.bf16.mxu0 0
        %1012 = vmatpush2.bf16.msra.mxu0 0
        %1013 = vmatprep.subr.bf16.mxu0 0
        %1014 = vmatpush2.bf16.msra.mxu0 0
        %1015 = vmatprep.subr.bf16.mxu0 0
        %1016 = vmatpush2.bf16.msra.mxu0 0
        %1017 = vmatprep.subr.bf16.mxu0 0
        %1018 = vmatpush2.bf16.msra.mxu0 0
        %1019 = vmatprep.mubr.bf16.mxu0 0
        %1020 = vmatmul.mubr.bf16.gmra.mxu0 %v520
        %v1021 = vpop.f32.mrf.mxu0
        %v1022 = vadd.f32 0.0, %v1021
        %v1023 = vpop.f32.mrf.mxu0
        %v1024 = vadd.f32 0.0, %v1023
        %v1025 = vpop.f32.mrf.mxu0
        %v1026 = vpop.f32.mrf.mxu0
        %1027 = vdwg.mxu0
        %1028 = vmatprep.subr.bf16.mxu0 %v840
        %1029 = vmatpush1.bf16.msra.mxu0 %v839
        %1030 = vmatprep.subr.bf16.mxu0 %v832
        %1031 = vmatpush1.bf16.msra.mxu0 %v831
        %1032 = vmatprep.subr.bf16.mxu0 %v824
        %1033 = vmatpush1.bf16.msra.mxu0 %v823
        %1034 = vmatprep.subr.bf16.mxu0 %v816
        %1035 = vmatpush1.bf16.msra.mxu0 %v815
        %1036 = vmatprep.subr.bf16.mxu0 %v808
        %1037 = vmatpush1.bf16.msra.mxu0 %v807
        %1038 = vmatprep.subr.bf16.mxu0 %v800
        %1039 = vmatpush1.bf16.msra.mxu0 %v799
        %1040 = vmatprep.subr.bf16.mxu0 %v792
        %1041 = vmatpush1.bf16.msra.mxu0 %v791
        %1042 = vmatprep.subr.bf16.mxu0 %v784
        %1043 = vmatpush1.bf16.msra.mxu0 %v783
        %1044 = vmatprep.subr.bf16.mxu0 0
        %1045 = vmatpush2.bf16.msra.mxu0 0
        %1046 = vmatprep.subr.bf16.mxu0 0
        %1047 = vmatpush2.bf16.msra.mxu0 0
        %1048 = vmatprep.subr.bf16.mxu0 0
        %1049 = vmatpush2.bf16.msra.mxu0 0
        %1050 = vmatprep.subr.bf16.mxu0 0
        %1051 = vmatpush2.bf16.msra.mxu0 0
        %1052 = vmatprep.subr.bf16.mxu0 0
        %1053 = vmatpush2.bf16.msra.mxu0 0
        %1054 = vmatprep.subr.bf16.mxu0 0
        %1055 = vmatpush2.bf16.msra.mxu0 0
        %1056 = vmatprep.subr.bf16.mxu0 0
        %1057 = vmatpush2.bf16.msra.mxu0 0
        %1058 = vmatprep.subr.bf16.mxu0 0
        %1059 = vmatpush2.bf16.msra.mxu0 0
        %1060 = vmatprep.mubr.bf16.mxu0 0
        %1061 = vmatmul.mubr.bf16.gmra.mxu0 %v520
        %v1062 = vpop.f32.mrf.mxu0
        %v1063 = vadd.f32 0.0, %v1062
        %v1064 = vpop.f32.mrf.mxu0
        %v1065 = vadd.f32 0.0, %v1064
        %v1066 = vpop.f32.mrf.mxu0
        %v1067 = vpop.f32.mrf.mxu0
        %1068 = vdwg.mxu0
        %v1069 = vld [vmem:[#allocation2] sm:$0xff]
        %v1070 = vld [vmem:[#allocation2 + $0x8] sm:$0xff]
        %v1071 = vld [vmem:[#allocation2 + $0x10] sm:$0xff]
        %v1072 = vld [vmem:[#allocation2 + $0x18] sm:$0xff]
        %v1073 = vld [vmem:[#allocation2 + $0x20] sm:$0xff]
        %v1074 = vld [vmem:[#allocation2 + $0x28] sm:$0xff]
        %v1075 = vld [vmem:[#allocation2 + $0x30] sm:$0xff]
        %v1076 = vld [vmem:[#allocation2 + $0x38] sm:$0xff]
        %v1077 = vmax.f32 %v1069, %v940
        %v1078 = vmax.f32 %v1070, %v942
        %v1079 = vmax.f32 %v1071, %v981
        %v1080 = vmax.f32 %v1072, %v983
        %v1081 = vmax.f32 %v1073, %v1022
        %v1082 = vmax.f32 %v1074, %v1024
        %v1083 = vmax.f32 %v1075, %v1063
        %v1084 = vmax.f32 %v1076, %v1065
        %1085 = vst [vmem:[#allocation2] sm:$0xff] %v1077
        %1086 = vst [vmem:[#allocation2 + $0x8] sm:$0xff] %v1078
        %1087 = vst [vmem:[#allocation2 + $0x10] sm:$0xff] %v1079
        %1088 = vst [vmem:[#allocation2 + $0x18] sm:$0xff] %v1080
        %1089 = vst [vmem:[#allocation2 + $0x20] sm:$0xff] %v1081
        %1090 = vst [vmem:[#allocation2 + $0x28] sm:$0xff] %v1082
        %1091 = vst [vmem:[#allocation2 + $0x30] sm:$0xff] %v1083
        %1092 = vst [vmem:[#allocation2 + $0x38] sm:$0xff] %v1084
        %p1093 = scmp.eq.s32.totalorder %s29, 2
        // Predicated region
        $region69: #{tpu_custom_call.1} parent=47 // pred_check
          %p1094 = pneg %p1093
        $region70: #{tpu_custom_call.1} parent=47 // pred_check_branch
          %1096 = sbr.rel (%p1094) target = $region72
        $region71: #{tpu_custom_call.1} parent=47 // pred_region
          %v1097 = vld [vmem:[#allocation2] sm:$0xff]
          %v1098 = vld [vmem:[#allocation2 + $0x8] sm:$0xff]
          %v1099 = vld [vmem:[#allocation2 + $0x10] sm:$0xff]
          %v1100 = vld [vmem:[#allocation2 + $0x18] sm:$0xff]
          %v1101 = vld [vmem:[#allocation2 + $0x20] sm:$0xff]
          %v1102 = vld [vmem:[#allocation2 + $0x28] sm:$0xff]
          %v1103 = vld [vmem:[#allocation2 + $0x30] sm:$0xff]
          %v1104 = vld [vmem:[#allocation2 + $0x38] sm:$0xff]
          %v1105 = vrot.slane %v1097, 4
          %v1106 = vmax.f32 %v1097, %v1105
          %v1107 = vrot.slane %v1106, 2
          %v1108 = vmax.f32 %v1106, %v1107
          %v1109 = vrot.slane %v1108, 1
          %v1110 = vmax.f32 %v1108, %v1109
          %v1111 = vrot.slane %v1098, 4
          %v1112 = vmax.f32 %v1098, %v1111
          %v1113 = vrot.slane %v1112, 2
          %v1114 = vmax.f32 %v1112, %v1113
          %v1115 = vrot.slane %v1114, 1
          %v1116 = vmax.f32 %v1114, %v1115
          %v1117 = vrot.slane %v1099, 4
          %v1118 = vmax.f32 %v1099, %v1117
          %v1119 = vrot.slane %v1118, 2
          %v1120 = vmax.f32 %v1118, %v1119
          %v1121 = vrot.slane %v1120, 1
          %v1122 = vmax.f32 %v1120, %v1121
          %v1123 = vrot.slane %v1100, 4
          %v1124 = vmax.f32 %v1100, %v1123
          %v1125 = vrot.slane %v1124, 2
          %v1126 = vmax.f32 %v1124, %v1125
          %v1127 = vrot.slane %v1126, 1
          %v1128 = vmax.f32 %v1126, %v1127
          %v1129 = vrot.slane %v1101, 4
          %v1130 = vmax.f32 %v1101, %v1129
          %v1131 = vrot.slane %v1130, 2
          %v1132 = vmax.f32 %v1130, %v1131
          %v1133 = vrot.slane %v1132, 1
          %v1134 = vmax.f32 %v1132, %v1133
          %v1135 = vrot.slane %v1102, 4
          %v1136 = vmax.f32 %v1102, %v1135
          %v1137 = vrot.slane %v1136, 2
          %v1138 = vmax.f32 %v1136, %v1137
          %v1139 = vrot.slane %v1138, 1
          %v1140 = vmax.f32 %v1138, %v1139
          %v1141 = vrot.slane %v1103, 4
          %v1142 = vmax.f32 %v1103, %v1141
          %v1143 = vrot.slane %v1142, 2
          %v1144 = vmax.f32 %v1142, %v1143
          %v1145 = vrot.slane %v1144, 1
          %v1146 = vmax.f32 %v1144, %v1145
          %v1147 = vrot.slane %v1104, 4
          %v1148 = vmax.f32 %v1104, %v1147
          %v1149 = vrot.slane %v1148, 2
          %v1150 = vmax.f32 %v1148, %v1149
          %v1151 = vrot.slane %v1150, 1
          %v1152 = vmax.f32 %v1150, %v1151
          %v1153 = vld [vmem:[%s6] sm:$0xff]
          %v1155 = vlaneseq
          %v1156 = vshrl.u32 %v1155, 7
          %v1157 = vsub.s32 0, %v1156
          %v1158 = vrot.slane %v1153, %v1157
          %v1159 = vlaneseq
          %v1160 = vshrl.u32 %v1159, 7
          %v1161 = vsub.s32 1, %v1160
          %v1162 = vrot.slane %v1153, %v1161
          %v1163 = vlaneseq
          %v1164 = vshrl.u32 %v1163, 7
          %v1165 = vsub.s32 2, %v1164
          %v1166 = vrot.slane %v1153, %v1165
          %v1167 = vlaneseq
          %v1168 = vshrl.u32 %v1167, 7
          %v1169 = vsub.s32 3, %v1168
          %v1170 = vrot.slane %v1153, %v1169
          %v1171 = vlaneseq
          %v1172 = vshrl.u32 %v1171, 7
          %v1173 = vsub.s32 4, %v1172
          %v1174 = vrot.slane %v1153, %v1173
          %v1175 = vlaneseq
          %v1176 = vshrl.u32 %v1175, 7
          %v1177 = vsub.s32 5, %v1176
          %v1178 = vrot.slane %v1153, %v1177
          %v1179 = vlaneseq
          %v1180 = vshrl.u32 %v1179, 7
          %v1181 = vsub.s32 6, %v1180
          %v1182 = vrot.slane %v1153, %v1181
          %v1183 = vlaneseq
          %v1184 = vshrl.u32 %v1183, 7
          %v1185 = vsub.s32 7, %v1184
          %v1186 = vrot.slane %v1153, %v1185
          %v1195 = vadd.f32 %v1110, %v1158
          %v1196 = vadd.f32 %v1116, %v1162
          %v1197 = vadd.f32 %v1122, %v1166
          %v1198 = vadd.f32 %v1128, %v1170
          %v1199 = vadd.f32 %v1134, %v1174
          %v1200 = vadd.f32 %v1140, %v1178
          %v1201 = vadd.f32 %v1146, %v1182
          %v1202 = vadd.f32 %v1152, %v1186
          %v1203 = vmax.f32 %v1195, 0.0
          %v1204 = vmax.f32 %v1196, 0.0
          %v1205 = vmax.f32 %v1197, 0.0
          %v1206 = vmax.f32 %v1198, 0.0
          %v1207 = vmax.f32 %v1199, 0.0
          %v1208 = vmax.f32 %v1200, 0.0
          %v1209 = vmax.f32 %v1201, 0.0
          %v1210 = vmax.f32 %v1202, 0.0
          %v1219 = vcombine.low %v1203, %v1204
          %v1220 = vcombine.low %v1205, %v1206
          %v1221 = vcombine.low %v1207, %v1208
          %v1222 = vcombine.low %v1209, %v1210
          %v1224 = vunpack.c.l.s4 1966171168
          %v1225 = vunpack.c.0.s8 %v1224
          %v1226 = vlaneseq
          %v1227 = vshrl.u32 %v1226, 7
          %v1228 = vsub.s32 %v1225, %v1227
          %v1229 = vrot.slane %v1219, %v1228
          %v1231 = vunpack.c.l.s4 1966171168
          %v1232 = vunpack.c.0.s8 %v1231
          %v1233 = vlaneseq
          %v1234 = vshrl.u32 %v1233, 7
          %v1235 = vsub.s32 %v1232, %v1234
          %v1236 = vrot.slane %v1220, %v1235
          %v1238 = vunpack.c.l.s4 1966171168
          %v1239 = vunpack.c.0.s8 %v1238
          %v1240 = vlaneseq
          %v1241 = vshrl.u32 %v1240, 7
          %v1242 = vsub.s32 %v1239, %v1241
          %v1243 = vrot.slane %v1221, %v1242
          %v1245 = vunpack.c.l.s4 1966171168
          %v1246 = vunpack.c.0.s8 %v1245
          %v1247 = vlaneseq
          %v1248 = vshrl.u32 %v1247, 7
          %v1249 = vsub.s32 %v1246, %v1248
          %v1250 = vrot.slane %v1222, %v1249
          %v1251 = vcombine.low %v1229, %v1236
          %v1252 = vcombine.low %v1243, %v1250
          %v1254 = vunpack.c.l.s4 1966171168
          %v1255 = vunpack.c.0.s8 %v1254
          %v1256 = vlaneseq
          %v1257 = vshrl.u32 %v1256, 7
          %v1258 = vsub.s32 %v1255, %v1257
          %v1259 = vrot.slane %v1251, %v1258
          %v1261 = vunpack.c.l.s4 1966171168
          %v1262 = vunpack.c.0.s8 %v1261
          %v1263 = vlaneseq
          %v1264 = vshrl.u32 %v1263, 7
          %v1265 = vsub.s32 %v1262, %v1264
          %v1266 = vrot.slane %v1252, %v1265
          %v1267 = vcombine.low %v1259, %v1266
          %1269 = vst [vmem:[%s346] sm:$0xff] %v1267
        $region72: #{tpu_custom_call.1} parent=47 // pred_fallthru
          _
        %s1270 = sand.u32 %s198, 1
        %s1271 = scalar_lea.sflag [#allocation5], %s1270
        %s1272 = sand.u32 %s198, 1
        %s1273 = smul.addr %s1272, 8
        %s1274 = scalar_lea.vmem [#allocation11], %s1273
        // Predicated region
        $region73: #{tpu_custom_call.1} parent=47 // pred_check
          %p1275 = pneg %p208
        $region74: #{tpu_custom_call.1} parent=47 // pred_check_branch
          %1277 = sbr.rel (%p1275) target = $region76
        $region75: #{tpu_custom_call.1} parent=47 // pred_region
          %s1279 = ssub.s32 128, 128
          %1280 = vsyncadd %s1271, %s1279
          %s1281 = smul.addr %s28, 8
          %s1282 = smul.addr %s1281, 16
          %s1283 = scalar_lea.hbm %s7, %s1282
          %s1285 = sshll.u32 %s1274, 4
          %s1286 = int_to_ptr.vmem [resolvable:$true] %s1285
          %1288 = dma.vmem_to_hbm [thread:$0]  %s1286, 128, %s1283, %s1271
        $region76: #{tpu_custom_call.1} parent=47 // pred_fallthru
          _
      $region48: #{tpu_custom_call.1} parent=5 // pred_fallthru
        _
      %p1289 = scmp.le.s32.totalorder 2, %s19
      // Predicated region
      $region77: #{tpu_custom_call.1} parent=5 // pred_check
        %p1290 = pneg %p1289
      $region78: #{tpu_custom_call.1} parent=5 // pred_check_branch
        %1292 = sbr.rel (%p1290) target = $region80
      $region79: #{tpu_custom_call.1} parent=5 // pred_region
        %s1293 = ssub.s32 %s19, 2
        // Predicated region
        $region81: #{tpu_custom_call.1} parent=79 // pred_check
          %p1294 = pneg %p214
        $region82: #{tpu_custom_call.1} parent=79 // pred_check_branch
          %1296 = sbr.rel (%p1294) target = $region84
        $region83: #{tpu_custom_call.1} parent=79 // pred_region
          %s1297 = sand.u32 %s199, 1
          %s1298 = scalar_lea.sflag [#allocation5], %s1297
          %s1299 = sand.u32 %s199, 1
          %s1300 = smul.addr %s1299, 8
          %s1301 = scalar_lea.vmem [#allocation11], %s1300
          %1302 = dma.done %s1298, 128
        $region84: #{tpu_custom_call.1} parent=79 // pred_fallthru
          _
      $region80: #{tpu_custom_call.1} parent=5 // pred_fallthru
        _
    $region6: #{tpu_custom_call.1} parent=1 // loop_footer
      %s23 = sadd.s32 1, %s19
    $region7: #{tpu_custom_call.1} parent=1 // loop_footer_branch
      %18 = sbr.rel target = $region3
    $region8: #{tpu_custom_call.1} parent=1 // loop_exit
      _
    %1303 = vsyncpa [#allocation4], 1
    %s1304 = scalar_lea.sflag [#allocation4], 1
    %1305 = vsyncpa %s1304, 1
    %1306 = vsyncpa [#allocation7], 1
    %1307 = vsyncpa [#allocation10], 1
    %1308 = vsyncpa [#allocation5], 1
    %s1309 = scalar_lea.sflag [#allocation5], 1
    %1310 = vsyncpa %s1309, 1

// kernel: tpu_custom_call.1
$region0: #{tpu_custom_call.1}
  #allocation0 [shape = 'u32[]', space=smem, size = 0x4, offset = 0x4, fixed_abs, tag = 'smem constant byte address 0x4 - core index']
  #allocation1 [shape = 'u32[144,128]{1,0:T(1,128)}', space=vmem, size = 0x12000, scoped, tag = 'internal scratch']
  #allocation2 [shape = 'f32[1,1024]{1,0:T(1,128)}', space=vmem, size = 0x1000, scoped, tag = 'scratch operand']
  %s0 = inlined_call_operand.vmem [shape: bf16[2,24,9], index: 0, kind: input, shape index: {}]
  %s1 = inlined_call_operand.hbm [shape: bf16[9,64], index: 1, kind: input, shape index: {}]
  %s2 = inlined_call_operand.hbm [shape: f32[1,64], index: 2, kind: input, shape index: {}]
  %s3 = inlined_call_operand.vmem [shape: bf16[64,128], index: 3, kind: input, shape index: {}]
  %s4 = inlined_call_operand.hbm [shape: f32[1,128], index: 4, kind: input, shape index: {}]
  %s5 = inlined_call_operand.hbm [shape: bf16[128,1024], index: 5, kind: input, shape index: {}]
  %s6 = inlined_call_operand.vmem [shape: f32[1,1024], index: 6, kind: input, shape index: {}]
  %s7 = inlined_call_operand.hbm [shape: f32[2,1,1024], index: 7, kind: output, shape index: {}]
  %s8 = sld [smem:[#allocation0]]
  $region85: #{tpu_custom_call.1} parent=0
    _
  %s10 = ssub.s32 1, %s8
  %s11 = scalar_select 0, %s10, %s8
  $region1: #{tpu_custom_call.1} parent=0
    #allocation3 [shape = 'u8[4096]{0}', space=vmem, size = 0x1000, scoped, tag = 'input window, operand 1, single buffered']
    #allocation4 [shape = 's32[2]{0}', space=sflag, size = 0x8, scoped, tag = 'scoped memory for tpu_custom_call.1']
    #allocation5 [shape = 's32[2]{0}', space=sflag, size = 0x8, scoped, tag = 'scoped memory for tpu_custom_call.1']
    #allocation6 [shape = 'u8[512]{0}', space=vmem, size = 0x400, scoped, tag = 'input window, operand 2, single buffered']
    #allocation7 [shape = 's32[1]{0}', space=sflag, size = 0x4, scoped, tag = 'scoped memory for tpu_custom_call.1']
    #allocation8 [shape = 'u8[512]{0}', space=vmem, size = 0x400, scoped, tag = 'input window, operand 4, single buffered']
    #allocation9 [shape = 'u8[262144]{0}', space=vmem, size = 0x40000, scoped, tag = 'input window, operand 5, single buffered']
    #allocation10 [shape = 's32[1]{0}', space=sflag, size = 0x4, scoped, tag = 'scoped memory for tpu_custom_call.1']
    #allocation11 [shape = 'u8[8192]{0}', space=vmem, size = 0x2000, scoped, tag = 'output window, operand 0']
    %12 = vsyncpa [#allocation4], 0
    %13 = vsyncpa [#allocation7], 0
    %14 = vsyncpa [#allocation10], 0
    %15 = vsyncpa [#allocation5], 0
    %s16 = scalar_lea.sflag [#allocation5], 1
    %17 = vsyncpa %s16, 0
    loop: start=0, step=1, limit=8
    $region2: #{tpu_custom_call.1} parent=1 // loop_pre_header
      _
    $region3: #{tpu_custom_call.1} parent=1 // loop_header
      %s19 = sphi 0, %s23
      %p20 = scmp.ge.s32.totalorder %s19, 8
      %s26 = sphi 0, %s38
      %s27 = sphi 0, %s34
      %s28 = sphi 0, %s26
      %s29 = sphi 0, %s27
      %s30 = sphi 0, %s28
      %s31 = sphi 0, %s29
      %s43 = sphi 0, %s45
      %s46 = sphi 0, %s43
      %s47 = sphi 0, %s46
      %s63 = sphi 0, %s47
      %s67 = sphi 0, %s67
      %s69 = sphi 0, %s67
      %s70 = sphi 0, %s69
      %s84 = sphi 0, %s70
      %s88 = sphi 0, %s88
      %s90 = sphi 0, %s88
      %s91 = sphi 0, %s90
      %s105 = sphi 0, %s91
      %s109 = sphi 0, %s109
      %s111 = sphi 0, %s109
      %s112 = sphi 0, %s111
      %s126 = sphi 0, %s112
      %s130 = sphi 0, %s130
      %s132 = sphi 0, %s130
      %s133 = sphi 0, %s132
      %s147 = sphi 0, %s133
      %s151 = sphi 0, %s151
      %s153 = sphi 0, %s151
      %s154 = sphi 0, %s153
      %s168 = sphi 0, %s154
      %s172 = sphi 0, %s172
      %s174 = sphi 0, %s172
      %s175 = sphi 0, %s174
      %s189 = sphi 0, %s175
      %s195 = sphi 0, %s197
      %s198 = sphi 0, %s195
      %s199 = sphi 0, %s198
      %s215 = sphi 0, %s199
    $region4: #{tpu_custom_call.1} parent=1 // loop_header_branch
      %22 = sbr.rel (%p20) target = $region8
    $region5: #{tpu_custom_call.1} parent=1 // loop_body
      %s24 = ssub.s32 %s19, 1
      %s25 = ssub.s32 %s19, 2
      %s32 = sadd.s32 1, %s27
      %p33 = scmp.ge.s32.totalorder %s32, 3
      %s34 = scalar_select %p33, 0, %s32
      %s35 = sadd.s32 1, %s26
      %s36 = scalar_select %p33, %s35, %s26
      %p37 = scmp.ge.s32.totalorder %s36, 2
      %s38 = scalar_select %p37, 0, %s36
      %s39 = ssub.s32 %s26, %s38
      %s40 = ssub.s32 %s27, %s34
      %s41 = sor.u32 %s39, %s40
      %p42 = scmp.eq.s32.totalorder %s41, 0
      %s44 = sadd.s32 %s43, 1
      %s45 = scalar_select %p42, %s43, %s44
      %p48 = pneg %p42
      %p49 = scmp.eq.s32.totalorder %s19, 5
      %p50 = por %p48, %p49
      %p51 = scmp.ne.s32.totalorder %s43, %s46
      %p52 = scmp.eq.s32.totalorder %s19, 0
      %p53 = por %p51, %p52
      %p54 = scmp.ne.s32.totalorder %s43, %s46
      %p55 = scmp.eq.s32.totalorder %s24, 5
      %p56 = por %p54, %p55
      %p57 = scmp.ne.s32.totalorder %s46, %s47
      %p58 = scmp.eq.s32.totalorder %s24, 0
      %p59 = por %p57, %p58
      %p60 = scmp.ne.s32.totalorder %s46, %s47
      %p61 = scmp.eq.s32.totalorder %s25, 5
      %p62 = por %p60, %p61
      %p64 = scmp.ne.s32.totalorder %s47, %s63
      %p65 = scmp.eq.s32.totalorder %s25, 0
      %p66 = por %p64, %p65
      %s68 = sadd.s32 %s67, 1
      %p71 = scmp.eq.s32.totalorder %s19, 5
      %p72 = scmp.ne.s32.totalorder %s67, %s69
      %p73 = scmp.eq.s32.totalorder %s19, 0
      %p74 = por %p72, %p73
      %p75 = scmp.ne.s32.totalorder %s67, %s69
      %p76 = scmp.eq.s32.totalorder %s24, 5
      %p77 = por %p75, %p76
      %p78 = scmp.ne.s32.totalorder %s69, %s70
      %p79 = scmp.eq.s32.totalorder %s24, 0
      %p80 = por %p78, %p79
      %p81 = scmp.ne.s32.totalorder %s69, %s70
      %p82 = scmp.eq.s32.totalorder %s25, 5
      %p83 = por %p81, %p82
      %p85 = scmp.ne.s32.totalorder %s70, %s84
      %p86 = scmp.eq.s32.totalorder %s25, 0
      %p87 = por %p85, %p86
      %s89 = sadd.s32 %s88, 1
      %p92 = scmp.eq.s32.totalorder %s19, 5
      %p93 = scmp.ne.s32.totalorder %s88, %s90
      %p94 = scmp.eq.s32.totalorder %s19, 0
      %p95 = por %p93, %p94
      %p96 = scmp.ne.s32.totalorder %s88, %s90
      %p97 = scmp.eq.s32.totalorder %s24, 5
      %p98 = por %p96, %p97
      %p99 = scmp.ne.s32.totalorder %s90, %s91
      %p100 = scmp.eq.s32.totalorder %s24, 0
      %p101 = por %p99, %p100
      %p102 = scmp.ne.s32.totalorder %s90, %s91
      %p103 = scmp.eq.s32.totalorder %s25, 5
      %p104 = por %p102, %p103
      %p106 = scmp.ne.s32.totalorder %s91, %s105
      %p107 = scmp.eq.s32.totalorder %s25, 0
      %p108 = por %p106, %p107
      %s110 = sadd.s32 %s109, 1
      %p113 = scmp.eq.s32.totalorder %s19, 5
      %p114 = scmp.ne.s32.totalorder %s109, %s111
      %p115 = scmp.eq.s32.totalorder %s19, 0
      %p116 = por %p114, %p115
      %p117 = scmp.ne.s32.totalorder %s109, %s111
      %p118 = scmp.eq.s32.totalorder %s24, 5
      %p119 = por %p117, %p118
      %p120 = scmp.ne.s32.totalorder %s111, %s112
      %p121 = scmp.eq.s32.totalorder %s24, 0
      %p122 = por %p120, %p121
      %p123 = scmp.ne.s32.totalorder %s111, %s112
      %p124 = scmp.eq.s32.totalorder %s25, 5
      %p125 = por %p123, %p124
      %p127 = scmp.ne.s32.totalorder %s112, %s126
      %p128 = scmp.eq.s32.totalorder %s25, 0
      %p129 = por %p127, %p128
      %s131 = sadd.s32 %s130, 1
      %p134 = scmp.eq.s32.totalorder %s19, 5
      %p135 = scmp.ne.s32.totalorder %s130, %s132
      %p136 = scmp.eq.s32.totalorder %s19, 0
      %p137 = por %p135, %p136
      %p138 = scmp.ne.s32.totalorder %s130, %s132
      %p139 = scmp.eq.s32.totalorder %s24, 5
      %p140 = por %p138, %p139
      %p141 = scmp.ne.s32.totalorder %s132, %s133
      %p142 = scmp.eq.s32.totalorder %s24, 0
      %p143 = por %p141, %p142
      %p144 = scmp.ne.s32.totalorder %s132, %s133
      %p145 = scmp.eq.s32.totalorder %s25, 5
      %p146 = por %p144, %p145
      %p148 = scmp.ne.s32.totalorder %s133, %s147
      %p149 = scmp.eq.s32.totalorder %s25, 0
      %p150 = por %p148, %p149
      %s152 = sadd.s32 %s151, 1
      %p155 = scmp.eq.s32.totalorder %s19, 5
      %p156 = scmp.ne.s32.totalorder %s151, %s153
      %p157 = scmp.eq.s32.totalorder %s19, 0
      %p158 = por %p156, %p157
      %p159 = scmp.ne.s32.totalorder %s151, %s153
      %p160 = scmp.eq.s32.totalorder %s24, 5
      %p161 = por %p159, %p160
      %p162 = scmp.ne.s32.totalorder %s153, %s154
      %p163 = scmp.eq.s32.totalorder %s24, 0
      %p164 = por %p162, %p163
      %p165 = scmp.ne.s32.totalorder %s153, %s154
      %p166 = scmp.eq.s32.totalorder %s25, 5
      %p167 = por %p165, %p166
      %p169 = scmp.ne.s32.totalorder %s154, %s168
      %p170 = scmp.eq.s32.totalorder %s25, 0
      %p171 = por %p169, %p170
      %s173 = sadd.s32 %s172, 1
      %p176 = scmp.eq.s32.totalorder %s19, 5
      %p177 = scmp.ne.s32.totalorder %s172, %s174
      %p178 = scmp.eq.s32.totalorder %s19, 0
      %p179 = por %p177, %p178
      %p180 = scmp.ne.s32.totalorder %s172, %s174
      %p181 = scmp.eq.s32.totalorder %s24, 5
      %p182 = por %p180, %p181
      %p183 = scmp.ne.s32.totalorder %s174, %s175
      %p184 = scmp.eq.s32.totalorder %s24, 0
      %p185 = por %p183, %p184
      %p186 = scmp.ne.s32.totalorder %s174, %s175
      %p187 = scmp.eq.s32.totalorder %s25, 5
      %p188 = por %p186, %p187
      %p190 = scmp.ne.s32.totalorder %s175, %s189
      %p191 = scmp.eq.s32.totalorder %s25, 0
      %p192 = por %p190, %p191
      %s193 = ssub.s32 %s26, %s38
      %p194 = scmp.eq.s32.totalorder %s193, 0
      %s196 = sadd.s32 %s195, 1
      %s197 = scalar_select %p194, %s195, %s196
      %p200 = pneg %p194
      %p201 = scmp.eq.s32.totalorder %s19, 5
      %p202 = por %p200, %p201
      %p203 = scmp.ne.s32.totalorder %s195, %s198
      %p204 = scmp.eq.s32.totalorder %s19, 0
      %p205 = por %p203, %p204
      %p206 = scmp.ne.s32.totalorder %s195, %s198
      %p207 = scmp.eq.s32.totalorder %s24, 5
      %p208 = por %p206, %p207
      %p209 = scmp.ne.s32.totalorder %s198, %s199
      %p210 = scmp.eq.s32.totalorder %s24, 0
      %p211 = por %p209, %p210
      %p212 = scmp.ne.s32.totalorder %s198, %s199
      %p213 = scmp.eq.s32.totalorder %s25, 5
      %p214 = por %p212, %p213
      %p216 = scmp.ne.s32.totalorder %s199, %s215
      %p217 = scmp.eq.s32.totalorder %s25, 0
      %p218 = por %p216, %p217
      %p219 = scmp.le.s32.totalorder 1, %s19
      %p220 = scmp.lt.s32.totalorder %s19, 7
      %p221 = pnand %p219, %p220
      %p222 = pneg %p221
      // Predicated region
      $region9: #{tpu_custom_call.1} parent=5 // pred_check
        _
      $region10: #{tpu_custom_call.1} parent=5 // pred_check_branch
        %224 = sbr.rel (%p221) target = $region12
      $region11: #{tpu_custom_call.1} parent=5 // pred_region
        %s225 = ssub.s32 %s19, 1
        // Predicated region
        $region13: #{tpu_custom_call.1} parent=11 // pred_check
          %p226 = pneg %p80
        $region14: #{tpu_custom_call.1} parent=11 // pred_check_branch
          %228 = sbr.rel (%p226) target = $region16
        $region15: #{tpu_custom_call.1} parent=11 // pred_region
          %s230 = ssub.s32 128, 128
          %231 = vsyncadd [#allocation4], %s230
          %s232 = sshll.u32 [#allocation3], 4
          %s233 = int_to_ptr.vmem [resolvable:$true] %s232
          %238 = dma.hbm_to_vmem [thread:$0]  %s1, 128, %s233, [#allocation4], 64, 64, 4
        $region16: #{tpu_custom_call.1} parent=11 // pred_fallthru
          _
        // Predicated region
        $region17: #{tpu_custom_call.1} parent=11 // pred_check
          %p239 = pneg %p101
        $region18: #{tpu_custom_call.1} parent=11 // pred_check_branch
          %241 = sbr.rel (%p239) target = $region20
        $region19: #{tpu_custom_call.1} parent=11 // pred_region
          %s243 = ssub.s32 16, 16
          %244 = vsyncadd [#allocation7], %s243
          %s246 = sshll.u32 [#allocation6], 4
          %s247 = int_to_ptr.vmem [resolvable:$true] %s246
          %249 = dma.hbm_to_vmem [thread:$0]  %s2, 16, %s247, [#allocation7]
        $region20: #{tpu_custom_call.1} parent=11 // pred_fallthru
          _
        // Predicated region
        $region21: #{tpu_custom_call.1} parent=11 // pred_check
          %p250 = pneg %p122
        $region22: #{tpu_custom_call.1} parent=11 // pred_check_branch
          %252 = sbr.rel (%p250) target = $region24
        $region23: #{tpu_custom_call.1} parent=11 // pred_region
          _
        $region24: #{tpu_custom_call.1} parent=11 // pred_fallthru
          _
        // Predicated region
        $region25: #{tpu_custom_call.1} parent=11 // pred_check
          %p253 = pneg %p143
        $region26: #{tpu_custom_call.1} parent=11 // pred_check_branch
          %255 = sbr.rel (%p253) target = $region28
        $region27: #{tpu_custom_call.1} parent=11 // pred_region
          %s257 = ssub.s32 16, 16
          %258 = vsyncadd [#allocation7], %s257
          %s260 = sshll.u32 [#allocation8], 4
          %s261 = int_to_ptr.vmem [resolvable:$true] %s260
          %263 = dma.hbm_to_vmem [thread:$0]  %s4, 16, %s261, [#allocation7]
        $region28: #{tpu_custom_call.1} parent=11 // pred_fallthru
          _
        // Predicated region
        $region29: #{tpu_custom_call.1} parent=11 // pred_check
          %p264 = pneg %p164
        $region30: #{tpu_custom_call.1} parent=11 // pred_check_branch
          %266 = sbr.rel (%p264) target = $region32
        $region31: #{tpu_custom_call.1} parent=11 // pred_region
          %s268 = ssub.s32 8192, 8192
          %269 = vsyncadd [#allocation10], %s268
          %s270 = sshll.u32 [#allocation9], 4
          %s271 = int_to_ptr.vmem [resolvable:$true] %s270
          %276 = dma.hbm_to_vmem [thread:$0]  %s5, 8192, %s271, [#allocation10], 512, 512, 32
        $region32: #{tpu_custom_call.1} parent=11 // pred_fallthru
          _
        // Predicated region
        $region33: #{tpu_custom_call.1} parent=11 // pred_check
          %p277 = pneg %p185
        $region34: #{tpu_custom_call.1} parent=11 // pred_check_branch
          %279 = sbr.rel (%p277) target = $region36
        $region35: #{tpu_custom_call.1} parent=11 // pred_region
          _
        $region36: #{tpu_custom_call.1} parent=11 // pred_fallthru
          _
      $region12: #{tpu_custom_call.1} parent=5 // pred_fallthru
        _
      %p280 = scmp.lt.s32.totalorder %s19, 6
      // Predicated region
      $region37: #{tpu_custom_call.1} parent=5 // pred_check
        %p281 = pneg %p280
      $region38: #{tpu_custom_call.1} parent=5 // pred_check_branch
        %283 = sbr.rel (%p281) target = $region40
      $region39: #{tpu_custom_call.1} parent=5 // pred_region
        // Predicated region
        $region41: #{tpu_custom_call.1} parent=39 // pred_check
          %p284 = pneg %p53
        $region42: #{tpu_custom_call.1} parent=39 // pred_check_branch
          %286 = sbr.rel (%p284) target = $region44
        $region43: #{tpu_custom_call.1} parent=39 // pred_region
          %p287 = scmp.lt.s32.totalorder %s26, 1
          %s288 = scalar_select %p287, %s26, 1
          %p289 = scmp.lt.s32.totalorder %s27, 2
          %s290 = scalar_select %p289, %s27, 2
          %s291 = smul.addr %s288, 3
          %s292 = sadd.s32 %s290, %s291
          %s293 = smul.addr %s292, 4
          %s294 = scalar_lea.vmem %s0, %s293
        $region44: #{tpu_custom_call.1} parent=39 // pred_fallthru
          _
      $region40: #{tpu_custom_call.1} parent=5 // pred_fallthru
        _
      %p295 = scmp.le.s32.totalorder 1, %s19
      %p296 = scmp.lt.s32.totalorder %s19, 7
      %p297 = pnand %p295, %p296
      %p298 = pneg %p297
      // Predicated region
      $region45: #{tpu_custom_call.1} parent=5 // pred_check
        _
      $region46: #{tpu_custom_call.1} parent=5 // pred_check_branch
        %300 = sbr.rel (%p297) target = $region48
      $region47: #{tpu_custom_call.1} parent=5 // pred_region
        %s301 = ssub.s32 %s19, 1
        // Predicated region
        $region49: #{tpu_custom_call.1} parent=47 // pred_check
          %p302 = pneg %p80
        $region50: #{tpu_custom_call.1} parent=47 // pred_check_branch
          %304 = sbr.rel (%p302) target = $region52
        $region51: #{tpu_custom_call.1} parent=47 // pred_region
          %305 = dma.done [#allocation4], 128
        $region52: #{tpu_custom_call.1} parent=47 // pred_fallthru
          _
        // Predicated region
        $region53: #{tpu_custom_call.1} parent=47 // pred_check
          %p306 = pneg %p101
        $region54: #{tpu_custom_call.1} parent=47 // pred_check_branch
          %308 = sbr.rel (%p306) target = $region56
        $region55: #{tpu_custom_call.1} parent=47 // pred_region
          %309 = dma.done [#allocation7], 16
        $region56: #{tpu_custom_call.1} parent=47 // pred_fallthru
          _
        // Predicated region
        $region57: #{tpu_custom_call.1} parent=47 // pred_check
          %p310 = pneg %p143
        $region58: #{tpu_custom_call.1} parent=47 // pred_check_branch
          %312 = sbr.rel (%p310) target = $region60
        $region59: #{tpu_custom_call.1} parent=47 // pred_region
          %313 = dma.done [#allocation7], 16
        $region60: #{tpu_custom_call.1} parent=47 // pred_fallthru
          _
        // Predicated region
        $region61: #{tpu_custom_call.1} parent=47 // pred_check
          %p314 = pneg %p164
        $region62: #{tpu_custom_call.1} parent=47 // pred_check_branch
          %316 = sbr.rel (%p314) target = $region64
        $region63: #{tpu_custom_call.1} parent=47 // pred_region
          %317 = dma.done [#allocation10], 8192
        $region64: #{tpu_custom_call.1} parent=47 // pred_fallthru
          _
        %p318 = scmp.lt.s32.totalorder %s28, 1
        %s319 = scalar_select %p318, %s28, 1
        %p320 = scmp.lt.s32.totalorder %s29, 2
        %s321 = scalar_select %p320, %s29, 2
        %s322 = smul.addr %s319, 3
        %s323 = sadd.s32 %s321, %s322
        %s324 = smul.addr %s323, 4
        %s325 = scalar_lea.vmem %s0, %s324
        %p326 = pneg %p59
        %p327 = pneg %p56
        %p328 = pneg %p80
        %p329 = pneg %p77
        %p330 = pneg %p101
        %p331 = pneg %p98
        %p332 = pneg %p122
        %p333 = pneg %p119
        %p334 = pneg %p143
        %p335 = pneg %p140
        %p336 = pneg %p164
        %p337 = pneg %p161
        %p338 = pneg %p185
        %p339 = pneg %p182
        %p340 = pneg %p211
        %p341 = pneg %p208
        %s342 = sand.u32 %s198, 1
        %s343 = scalar_lea.sflag [#allocation5], %s342
        %s344 = sand.u32 %s198, 1
        %s345 = smul.addr %s344, 8
        %s346 = scalar_lea.vmem [#allocation11], %s345
        %p347 = scmp.lt.s32.totalorder %s28, 1
        %s348 = scalar_select %p347, %s28, 1
        %p349 = scmp.lt.s32.totalorder %s29, 2
        %s350 = scalar_select %p349, %s29, 2
        %s351 = smul.addr %s348, 3
        %s352 = sadd.s32 %s350, %s351
        %s353 = smul.addr %s352, 4
        %s354 = scalar_lea.vmem %s0, %s353
        %p356 = scmp.eq.s32.totalorder %s29, 0
        // Predicated region
        $region65: #{tpu_custom_call.1} parent=47 // pred_check
          %p357 = pneg %p356
        $region66: #{tpu_custom_call.1} parent=47 // pred_check_branch
          %359 = sbr.rel (%p357) target = $region68
        $region67: #{tpu_custom_call.1} parent=47 // pred_region
          %360 = vst [vmem:[#allocation2] sm:$0xff] -inf
        $region68: #{tpu_custom_call.1} parent=47 // pred_fallthru
          _
        %v361 = vld [vmem:[%s354] sm:$0xf]
        %v362 = vld [vmem:[#allocation3] sm:$0xf]
        %v363 = vld [vmem:[#allocation3 + $0x4] sm:$0x1]
        %v364 = vld [vmem:[#allocation6] sm:$0x1]
        %v366 = vlaneseq
        %v367 = vshrl.u32 %v366, 7
        %v368 = vsub.s32 0, %v367
        %v369 = vrot.slane %v364, %v368
        %v373 = vunpack.c.l.b16 %v362
        %v374 = vunpack.c.l.b16 %v363
        %v375 = vpack.c.b16 %v374, %v373
        %vm376 = vcmask 72704
        %v378 = vsel %vm376, %v361, 0
        %vm380 = vcmask 1043456
        %vm381 = vcmask 1044480
        %v382 = vsel %vm380, 4294967295, 65535
        %v383 = vsel %vm381, %v382, 0
        %v385 = vand.u32 %v375, %v383
        %387 = vmatprep.subr.bf16.mxu0 0
        %388 = vmatpush1.bf16.msra.mxu0 0
        %389 = vmatprep.subr.bf16.mxu0 0
        %390 = vmatpush1.bf16.msra.mxu0 0
        %391 = vmatprep.subr.bf16.mxu0 0
        %392 = vmatpush1.bf16.msra.mxu0 0
        %393 = vmatprep.subr.bf16.mxu0 0
        %394 = vmatpush1.bf16.msra.mxu0 0
        %395 = vmatprep.subr.bf16.mxu0 0
        %396 = vmatpush1.bf16.msra.mxu0 0
        %397 = vmatprep.subr.bf16.mxu0 0
        %398 = vmatpush1.bf16.msra.mxu0 0
        %399 = vmatprep.subr.bf16.mxu0 0
        %400 = vmatpush1.bf16.msra.mxu0 0
        %401 = vmatprep.subr.bf16.mxu0 0
        %402 = vmatpush1.bf16.msra.mxu0 %v385
        %403 = vmatprep.subr.bf16.mxu0 0
        %404 = vmatpush2.bf16.msra.mxu0 0
        %405 = vmatprep.subr.bf16.mxu0 0
        %406 = vmatpush2.bf16.msra.mxu0 0
        %407 = vmatprep.subr.bf16.mxu0 0
        %408 = vmatpush2.bf16.msra.mxu0 0
        %409 = vmatprep.subr.bf16.mxu0 0
        %410 = vmatpush2.bf16.msra.mxu0 0
        %411 = vmatprep.subr.bf16.mxu0 0
        %412 = vmatpush2.bf16.msra.mxu0 0
        %413 = vmatprep.subr.bf16.mxu0 0
        %414 = vmatpush2.bf16.msra.mxu0 0
        %415 = vmatprep.subr.bf16.mxu0 0
        %416 = vmatpush2.bf16.msra.mxu0 0
        %417 = vmatprep.subr.bf16.mxu0 0
        %418 = vmatpush2.bf16.msra.mxu0 0
        %419 = vmatprep.mubr.bf16.mxu0 0
        %420 = vmatmul.mubr.bf16.gmra.mxu0 %v378
        %v421 = vpop.f32.mrf.mxu0
        %v422 = vadd.f32 %v369, %v421
        %v423 = vpop.f32.mrf.mxu0
        %v424 = vpop.f32.mrf.mxu0
        %v425 = vpop.f32.mrf.mxu0
        %426 = vdwg.mxu0
        %v427 = vmax.f32 %v422, 0.0
        %v428 = vpack.c.bf16 %v427, %v427
        %v429 = vld [vmem:[%s3] sm:$0xf]
        %v430 = vld [vmem:[%s3 + $0x4] sm:$0xf]
        %v431 = vld [vmem:[%s3 + $0x8] sm:$0xf]
        %v432 = vld [vmem:[%s3 + $0xc] sm:$0xf]
        %v433 = vld [vmem:[%s3 + $0x10] sm:$0xf]
        %v434 = vld [vmem:[%s3 + $0x14] sm:$0xf]
        %v435 = vld [vmem:[%s3 + $0x18] sm:$0xf]
        %v436 = vld [vmem:[%s3 + $0x1c] sm:$0xf]
        %v437 = vld [vmem:[#allocation8] sm:$0x1]
        %v439 = vlaneseq
        %v440 = vshrl.u32 %v439, 7
        %v441 = vsub.s32 0, %v440
        %v442 = vrot.slane %v437, %v441
        %v452 = vunpack.c.l.b16 %v429
        %v453 = vunpack.c.l.b16 %v430
        %v454 = vunpack.c.l.b16 %v431
        %v455 = vunpack.c.l.b16 %v432
        %v456 = vunpack.c.l.b16 %v433
        %v457 = vunpack.c.l.b16 %v434
        %v458 = vunpack.c.l.b16 %v435
        %v459 = vunpack.c.l.b16 %v436
        %v460 = vpack.c.b16 %v453, %v452
        %v461 = vpack.c.b16 %v455, %v454
        %v462 = vpack.c.b16 %v457, %v456
        %v463 = vpack.c.b16 %v459, %v458
        %vm468 = vcmask 523264
        %v470 = vsel %vm468, %v428, 0
        %472 = vmatprep.subr.bf16.mxu0 0
        %473 = vmatpush1.bf16.msra.mxu0 0
        %474 = vmatprep.subr.bf16.mxu0 0
        %475 = vmatpush1.bf16.msra.mxu0 0
        %476 = vmatprep.subr.bf16.mxu0 0
        %477 = vmatpush1.bf16.msra.mxu0 0
        %478 = vmatprep.subr.bf16.mxu0 0
        %479 = vmatpush1.bf16.msra.mxu0 0
        %480 = vmatprep.subr.bf16.mxu0 0
        %481 = vmatpush1.bf16.msra.mxu0 %v463
        %482 = vmatprep.subr.bf16.mxu0 0
        %483 = vmatpush1.bf16.msra.mxu0 %v462
        %484 = vmatprep.subr.bf16.mxu0 0
        %485 = vmatpush1.bf16.msra.mxu0 %v461
        %486 = vmatprep.subr.bf16.mxu0 0
        %487 = vmatpush1.bf16.msra.mxu0 %v460
        %488 = vmatprep.subr.bf16.mxu0 0
        %489 = vmatpush2.bf16.msra.mxu0 0
        %490 = vmatprep.subr.bf16.mxu0 0
        %491 = vmatpush2.bf16.msra.mxu0 0
        %492 = vmatprep.subr.bf16.mxu0 0
        %493 = vmatpush2.bf16.msra.mxu0 0
        %494 = vmatprep.subr.bf16.mxu0 0
        %495 = vmatpush2.bf16.msra.mxu0 0
        %496 = vmatprep.subr.bf16.mxu0 0
        %497 = vmatpush2.bf16.msra.mxu0 0
        %498 = vmatprep.subr.bf16.mxu0 0
        %499 = vmatpush2.bf16.msra.mxu0 0
        %500 = vmatprep.subr.bf16.mxu0 0
        %501 = vmatpush2.bf16.msra.mxu0 0
        %502 = vmatprep.subr.bf16.mxu0 0
        %503 = vmatpush2.bf16.msra.mxu0 0
        %504 = vmatprep.mubr.bf16.mxu0 0
        %505 = vmatmul.mubr.bf16.gmra.mxu0 %v470
        %v506 = vpop.f32.mrf.mxu0
        %v507 = vadd.f32 %v442, %v506
        %v508 = vpop.f32.mrf.mxu0
        %v509 = vpop.f32.mrf.mxu0
        %v510 = vpop.f32.mrf.mxu0
        %511 = vdwg.mxu0
        %v512 = vmax.f32 %v507, 0.0
        %v513 = vpack.c.bf16 %v512, %v512
        %v514 = vld [vmem:[#allocation9] sm:$0xff]
        %v515 = vld [vmem:[#allocation9 + $0x8] sm:$0xff]
        %v516 = vld [vmem:[#allocation9 + $0x10] sm:$0xff]
        %v517 = vld [vmem:[#allocation9 + $0x18] sm:$0xff]
        %v518 = vld [vmem:[#allocation9 + $0x20] sm:$0xff]
        %v519 = vld [vmem:[#allocation9 + $0x28] sm:$0xff]
        %v520 = vld [vmem:[#allocation9 + $0x30] sm:$0xff]
        %v521 = vld [vmem:[#allocation9 + $0x38] sm:$0xff]
        %v522 = vld [vmem:[#allocation9 + $0x40] sm:$0xff]
        %v523 = vld [vmem:[#allocation9 + $0x48] sm:$0xff]
        %v524 = vld [vmem:[#allocation9 + $0x50] sm:$0xff]
        %v525 = vld [vmem:[#allocation9 + $0x58] sm:$0xff]
        %v526 = vld [vmem:[#allocation9 + $0x60] sm:$0xff]
        %v527 = vld [vmem:[#allocation9 + $0x68] sm:$0xff]
        %v528 = vld [vmem:[#allocation9 + $0x70] sm:$0xff]
        %v529 = vld [vmem:[#allocation9 + $0x78] sm:$0xff]
        %v530 = vld [vmem:[#allocation9 + $0x80] sm:$0xff]
        %v531 = vld [vmem:[#allocation9 + $0x88] sm:$0xff]
        %v532 = vld [vmem:[#allocation9 + $0x90] sm:$0xff]
        %v533 = vld [vmem:[#allocation9 + $0x98] sm:$0xff]
        %v534 = vld [vmem:[#allocation9 + $0xa0] sm:$0xff]
        %v535 = vld [vmem:[#allocation9 + $0xa8] sm:$0xff]
        %v536 = vld [vmem:[#allocation9 + $0xb0] sm:$0xff]
        %v537 = vld [vmem:[#allocation9 + $0xb8] sm:$0xff]
        %v538 = vld [vmem:[#allocation9 + $0xc0] sm:$0xff]
        %v539 = vld [vmem:[#allocation9 + $0xc8] sm:$0xff]
        %v540 = vld [vmem:[#allocation9 + $0xd0] sm:$0xff]
        %v541 = vld [vmem:[#allocation9 + $0xd8] sm:$0xff]
        %v542 = vld [vmem:[#allocation9 + $0xe0] sm:$0xff]
        %v543 = vld [vmem:[#allocation9 + $0xe8] sm:$0xff]
        %v544 = vld [vmem:[#allocation9 + $0xf0] sm:$0xff]
        %v545 = vld [vmem:[#allocation9 + $0xf8] sm:$0xff]
        %v546 = vld [vmem:[#allocation9 + $0x100] sm:$0xff]
        %v547 = vld [vmem:[#allocation9 + $0x108] sm:$0xff]
        %v548 = vld [vmem:[#allocation9 + $0x110] sm:$0xff]
        %v549 = vld [vmem:[#allocation9 + $0x118] sm:$0xff]
        %v550 = vld [vmem:[#allocation9 + $0x120] sm:$0xff]
        %v551 = vld [vmem:[#allocation9 + $0x128] sm:$0xff]
        %v552 = vld [vmem:[#allocation9 + $0x130] sm:$0xff]
        %v553 = vld [vmem:[#allocation9 + $0x138] sm:$0xff]
        %v554 = vld [vmem:[#allocation9 + $0x140] sm:$0xff]
        %v555 = vld [vmem:[#allocation9 + $0x148] sm:$0xff]
        %v556 = vld [vmem:[#allocation9 + $0x150] sm:$0xff]
        %v557 = vld [vmem:[#allocation9 + $0x158] sm:$0xff]
        %v558 = vld [vmem:[#allocation9 + $0x160] sm:$0xff]
        %v559 = vld [vmem:[#allocation9 + $0x168] sm:$0xff]
        %v560 = vld [vmem:[#allocation9 + $0x170] sm:$0xff]
        %v561 = vld [vmem:[#allocation9 + $0x178] sm:$0xff]
        %v562 = vld [vmem:[#allocation9 + $0x180] sm:$0xff]
        %v563 = vld [vmem:[#allocation9 + $0x188] sm:$0xff]
        %v564 = vld [vmem:[#allocation9 + $0x190] sm:$0xff]
        %v565 = vld [vmem:[#allocation9 + $0x198] sm:$0xff]
        %v566 = vld [vmem:[#allocation9 + $0x1a0] sm:$0xff]
        %v567 = vld [vmem:[#allocation9 + $0x1a8] sm:$0xff]
        %v568 = vld [vmem:[#allocation9 + $0x1b0] sm:$0xff]
        %v569 = vld [vmem:[#allocation9 + $0x1b8] sm:$0xff]
        %v570 = vld [vmem:[#allocation9 + $0x1c0] sm:$0xff]
        %v571 = vld [vmem:[#allocation9 + $0x1c8] sm:$0xff]
        %v572 = vld [vmem:[#allocation9 + $0x1d0] sm:$0xff]
        %v573 = vld [vmem:[#allocation9 + $0x1d8] sm:$0xff]
        %v574 = vld [vmem:[#allocation9 + $0x1e0] sm:$0xff]
        %v575 = vld [vmem:[#allocation9 + $0x1e8] sm:$0xff]
        %v576 = vld [vmem:[#allocation9 + $0x1f0] sm:$0xff]
        %v577 = vld [vmem:[#allocation9 + $0x1f8] sm:$0xff]
        %v642 = vunpack.c.l.b16 %v514
        %v643 = vunpack.c.h.b16 %v514
        %v644 = vunpack.c.l.b16 %v515
        %v645 = vunpack.c.h.b16 %v515
        %v646 = vunpack.c.l.b16 %v516
        %v647 = vunpack.c.h.b16 %v516
        %v648 = vunpack.c.l.b16 %v517
        %v649 = vunpack.c.h.b16 %v517
        %v650 = vunpack.c.l.b16 %v518
        %v651 = vunpack.c.h.b16 %v518
        %v652 = vunpack.c.l.b16 %v519
        %v653 = vunpack.c.h.b16 %v519
        %v654 = vunpack.c.l.b16 %v520
        %v655 = vunpack.c.h.b16 %v520
        %v656 = vunpack.c.l.b16 %v521
        %v657 = vunpack.c.h.b16 %v521
        %v658 = vunpack.c.l.b16 %v522
        %v659 = vunpack.c.h.b16 %v522
        %v660 = vunpack.c.l.b16 %v523
        %v661 = vunpack.c.h.b16 %v523
        %v662 = vunpack.c.l.b16 %v524
        %v663 = vunpack.c.h.b16 %v524
        %v664 = vunpack.c.l.b16 %v525
        %v665 = vunpack.c.h.b16 %v525
        %v666 = vunpack.c.l.b16 %v526
        %v667 = vunpack.c.h.b16 %v526
        %v668 = vunpack.c.l.b16 %v527
        %v669 = vunpack.c.h.b16 %v527
        %v670 = vunpack.c.l.b16 %v528
        %v671 = vunpack.c.h.b16 %v528
        %v672 = vunpack.c.l.b16 %v529
        %v673 = vunpack.c.h.b16 %v529
        %v674 = vunpack.c.l.b16 %v530
        %v675 = vunpack.c.h.b16 %v530
        %v676 = vunpack.c.l.b16 %v531
        %v677 = vunpack.c.h.b16 %v531
        %v678 = vunpack.c.l.b16 %v532
        %v679 = vunpack.c.h.b16 %v532
        %v680 = vunpack.c.l.b16 %v533
        %v681 = vunpack.c.h.b16 %v533
        %v682 = vunpack.c.l.b16 %v534
        %v683 = vunpack.c.h.b16 %v534
        %v684 = vunpack.c.l.b16 %v535
        %v685 = vunpack.c.h.b16 %v535
        %v686 = vunpack.c.l.b16 %v536
        %v687 = vunpack.c.h.b16 %v536
        %v688 = vunpack.c.l.b16 %v537
        %v689 = vunpack.c.h.b16 %v537
        %v690 = vunpack.c.l.b16 %v538
        %v691 = vunpack.c.h.b16 %v538
        %v692 = vunpack.c.l.b16 %v539
        %v693 = vunpack.c.h.b16 %v539
        %v694 = vunpack.c.l.b16 %v540
        %v695 = vunpack.c.h.b16 %v540
        %v696 = vunpack.c.l.b16 %v541
        %v697 = vunpack.c.h.b16 %v541
        %v698 = vunpack.c.l.b16 %v542
        %v699 = vunpack.c.h.b16 %v542
        %v700 = vunpack.c.l.b16 %v543
        %v701 = vunpack.c.h.b16 %v543
        %v702 = vunpack.c.l.b16 %v544
        %v703 = vunpack.c.h.b16 %v544
        %v704 = vunpack.c.l.b16 %v545
        %v705 = vunpack.c.h.b16 %v545
        %v706 = vunpack.c.l.b16 %v546
        %v707 = vunpack.c.h.b16 %v546
        %v708 = vunpack.c.l.b16 %v547
        %v709 = vunpack.c.h.b16 %v547
        %v710 = vunpack.c.l.b16 %v548
        %v711 = vunpack.c.h.b16 %v548
        %v712 = vunpack.c.l.b16 %v549
        %v713 = vunpack.c.h.b16 %v549
        %v714 = vunpack.c.l.b16 %v550
        %v715 = vunpack.c.h.b16 %v550
        %v716 = vunpack.c.l.b16 %v551
        %v717 = vunpack.c.h.b16 %v551
        %v718 = vunpack.c.l.b16 %v552
        %v719 = vunpack.c.h.b16 %v552
        %v720 = vunpack.c.l.b16 %v553
        %v721 = vunpack.c.h.b16 %v553
        %v722 = vunpack.c.l.b16 %v554
        %v723 = vunpack.c.h.b16 %v554
        %v724 = vunpack.c.l.b16 %v555
        %v725 = vunpack.c.h.b16 %v555
        %v726 = vunpack.c.l.b16 %v556
        %v727 = vunpack.c.h.b16 %v556
        %v728 = vunpack.c.l.b16 %v557
        %v729 = vunpack.c.h.b16 %v557
        %v730 = vunpack.c.l.b16 %v558
        %v731 = vunpack.c.h.b16 %v558
        %v732 = vunpack.c.l.b16 %v559
        %v733 = vunpack.c.h.b16 %v559
        %v734 = vunpack.c.l.b16 %v560
        %v735 = vunpack.c.h.b16 %v560
        %v736 = vunpack.c.l.b16 %v561
        %v737 = vunpack.c.h.b16 %v561
        %v738 = vunpack.c.l.b16 %v562
        %v739 = vunpack.c.h.b16 %v562
        %v740 = vunpack.c.l.b16 %v563
        %v741 = vunpack.c.h.b16 %v563
        %v742 = vunpack.c.l.b16 %v564
        %v743 = vunpack.c.h.b16 %v564
        %v744 = vunpack.c.l.b16 %v565
        %v745 = vunpack.c.h.b16 %v565
        %v746 = vunpack.c.l.b16 %v566
        %v747 = vunpack.c.h.b16 %v566
        %v748 = vunpack.c.l.b16 %v567
        %v749 = vunpack.c.h.b16 %v567
        %v750 = vunpack.c.l.b16 %v568
        %v751 = vunpack.c.h.b16 %v568
        %v752 = vunpack.c.l.b16 %v569
        %v753 = vunpack.c.h.b16 %v569
        %v754 = vunpack.c.l.b16 %v570
        %v755 = vunpack.c.h.b16 %v570
        %v756 = vunpack.c.l.b16 %v571
        %v757 = vunpack.c.h.b16 %v571
        %v758 = vunpack.c.l.b16 %v572
        %v759 = vunpack.c.h.b16 %v572
        %v760 = vunpack.c.l.b16 %v573
        %v761 = vunpack.c.h.b16 %v573
        %v762 = vunpack.c.l.b16 %v574
        %v763 = vunpack.c.h.b16 %v574
        %v764 = vunpack.c.l.b16 %v575
        %v765 = vunpack.c.h.b16 %v575
        %v766 = vunpack.c.l.b16 %v576
        %v767 = vunpack.c.h.b16 %v576
        %v768 = vunpack.c.l.b16 %v577
        %v769 = vunpack.c.h.b16 %v577
        %v770 = vpack.c.b16 %v650, %v642
        %v771 = vpack.c.b16 %v651, %v643
        %v772 = vpack.c.b16 %v652, %v644
        %v773 = vpack.c.b16 %v653, %v645
        %v774 = vpack.c.b16 %v654, %v646
        %v775 = vpack.c.b16 %v655, %v647
        %v776 = vpack.c.b16 %v656, %v648
        %v777 = vpack.c.b16 %v657, %v649
        %v778 = vpack.c.b16 %v666, %v658
        %v779 = vpack.c.b16 %v667, %v659
        %v780 = vpack.c.b16 %v668, %v660
        %v781 = vpack.c.b16 %v669, %v661
        %v782 = vpack.c.b16 %v670, %v662
        %v783 = vpack.c.b16 %v671, %v663
        %v784 = vpack.c.b16 %v672, %v664
        %v785 = vpack.c.b16 %v673, %v665
        %v786 = vpack.c.b16 %v682, %v674
        %v787 = vpack.c.b16 %v683, %v675
        %v788 = vpack.c.b16 %v684, %v676
        %v789 = vpack.c.b16 %v685, %v677
        %v790 = vpack.c.b16 %v686, %v678
        %v791 = vpack.c.b16 %v687, %v679
        %v792 = vpack.c.b16 %v688, %v680
        %v793 = vpack.c.b16 %v689, %v681
        %v794 = vpack.c.b16 %v698, %v690
        %v795 = vpack.c.b16 %v699, %v691
        %v796 = vpack.c.b16 %v700, %v692
        %v797 = vpack.c.b16 %v701, %v693
        %v798 = vpack.c.b16 %v702, %v694
        %v799 = vpack.c.b16 %v703, %v695
        %v800 = vpack.c.b16 %v704, %v696
        %v801 = vpack.c.b16 %v705, %v697
        %v802 = vpack.c.b16 %v714, %v706
        %v803 = vpack.c.b16 %v715, %v707
        %v804 = vpack.c.b16 %v716, %v708
        %v805 = vpack.c.b16 %v717, %v709
        %v806 = vpack.c.b16 %v718, %v710
        %v807 = vpack.c.b16 %v719, %v711
        %v808 = vpack.c.b16 %v720, %v712
        %v809 = vpack.c.b16 %v721, %v713
        %v810 = vpack.c.b16 %v730, %v722
        %v811 = vpack.c.b16 %v731, %v723
        %v812 = vpack.c.b16 %v732, %v724
        %v813 = vpack.c.b16 %v733, %v725
        %v814 = vpack.c.b16 %v734, %v726
        %v815 = vpack.c.b16 %v735, %v727
        %v816 = vpack.c.b16 %v736, %v728
        %v817 = vpack.c.b16 %v737, %v729
        %v818 = vpack.c.b16 %v746, %v738
        %v819 = vpack.c.b16 %v747, %v739
        %v820 = vpack.c.b16 %v748, %v740
        %v821 = vpack.c.b16 %v749, %v741
        %v822 = vpack.c.b16 %v750, %v742
        %v823 = vpack.c.b16 %v751, %v743
        %v824 = vpack.c.b16 %v752, %v744
        %v825 = vpack.c.b16 %v753, %v745
        %v826 = vpack.c.b16 %v762, %v754
        %v827 = vpack.c.b16 %v763, %v755
        %v828 = vpack.c.b16 %v764, %v756
        %v829 = vpack.c.b16 %v765, %v757
        %v830 = vpack.c.b16 %v766, %v758
        %v831 = vpack.c.b16 %v767, %v759
        %v832 = vpack.c.b16 %v768, %v760
        %v833 = vpack.c.b16 %v769, %v761
        %898 = vmatprep.subr.bf16.mxu0 %v827
        %899 = vmatpush1.bf16.msra.mxu0 %v826
        %900 = vmatprep.subr.bf16.mxu0 %v819
        %901 = vmatpush1.bf16.msra.mxu0 %v818
        %902 = vmatprep.subr.bf16.mxu0 %v811
        %903 = vmatpush1.bf16.msra.mxu0 %v810
        %904 = vmatprep.subr.bf16.mxu0 %v803
        %905 = vmatpush1.bf16.msra.mxu0 %v802
        %906 = vmatprep.subr.bf16.mxu0 %v795
        %907 = vmatpush1.bf16.msra.mxu0 %v794
        %908 = vmatprep.subr.bf16.mxu0 %v787
        %909 = vmatpush1.bf16.msra.mxu0 %v786
        %910 = vmatprep.subr.bf16.mxu0 %v779
        %911 = vmatpush1.bf16.msra.mxu0 %v778
        %912 = vmatprep.subr.bf16.mxu0 %v771
        %913 = vmatpush1.bf16.msra.mxu0 %v770
        %914 = vmatprep.subr.bf16.mxu0 0
        %915 = vmatpush2.bf16.msra.mxu0 0
        %916 = vmatprep.subr.bf16.mxu0 0
        %917 = vmatpush2.bf16.msra.mxu0 0
        %918 = vmatprep.subr.bf16.mxu0 0
        %919 = vmatpush2.bf16.msra.mxu0 0
        %920 = vmatprep.subr.bf16.mxu0 0
        %921 = vmatpush2.bf16.msra.mxu0 0
        %922 = vmatprep.subr.bf16.mxu0 0
        %923 = vmatpush2.bf16.msra.mxu0 0
        %924 = vmatprep.subr.bf16.mxu0 0
        %925 = vmatpush2.bf16.msra.mxu0 0
        %926 = vmatprep.subr.bf16.mxu0 0
        %927 = vmatpush2.bf16.msra.mxu0 0
        %928 = vmatprep.subr.bf16.mxu0 0
        %929 = vmatpush2.bf16.msra.mxu0 0
        %930 = vmatprep.mubr.bf16.mxu0 0
        %931 = vmatmul.mubr.bf16.gmra.mxu0 %v513
        %v932 = vpop.f32.mrf.mxu0
        %v933 = vadd.f32 0.0, %v932
        %v934 = vpop.f32.mrf.mxu0
        %v935 = vadd.f32 0.0, %v934
        %v936 = vpop.f32.mrf.mxu0
        %v937 = vpop.f32.mrf.mxu0
        %938 = vdwg.mxu0
        %939 = vmatprep.subr.bf16.mxu0 %v829
        %940 = vmatpush1.bf16.msra.mxu0 %v828
        %941 = vmatprep.subr.bf16.mxu0 %v821
        %942 = vmatpush1.bf16.msra.mxu0 %v820
        %943 = vmatprep.subr.bf16.mxu0 %v813
        %944 = vmatpush1.bf16.msra.mxu0 %v812
        %945 = vmatprep.subr.bf16.mxu0 %v805
        %946 = vmatpush1.bf16.msra.mxu0 %v804
        %947 = vmatprep.subr.bf16.mxu0 %v797
        %948 = vmatpush1.bf16.msra.mxu0 %v796
        %949 = vmatprep.subr.bf16.mxu0 %v789
        %950 = vmatpush1.bf16.msra.mxu0 %v788
        %951 = vmatprep.subr.bf16.mxu0 %v781
        %952 = vmatpush1.bf16.msra.mxu0 %v780
        %953 = vmatprep.subr.bf16.mxu0 %v773
        %954 = vmatpush1.bf16.msra.mxu0 %v772
        %955 = vmatprep.subr.bf16.mxu0 0
        %956 = vmatpush2.bf16.msra.mxu0 0
        %957 = vmatprep.subr.bf16.mxu0 0
        %958 = vmatpush2.bf16.msra.mxu0 0
        %959 = vmatprep.subr.bf16.mxu0 0
        %960 = vmatpush2.bf16.msra.mxu0 0
        %961 = vmatprep.subr.bf16.mxu0 0
        %962 = vmatpush2.bf16.msra.mxu0 0
        %963 = vmatprep.subr.bf16.mxu0 0
        %964 = vmatpush2.bf16.msra.mxu0 0
        %965 = vmatprep.subr.bf16.mxu0 0
        %966 = vmatpush2.bf16.msra.mxu0 0
        %967 = vmatprep.subr.bf16.mxu0 0
        %968 = vmatpush2.bf16.msra.mxu0 0
        %969 = vmatprep.subr.bf16.mxu0 0
        %970 = vmatpush2.bf16.msra.mxu0 0
        %971 = vmatprep.mubr.bf16.mxu0 0
        %972 = vmatmul.mubr.bf16.gmra.mxu0 %v513
        %v973 = vpop.f32.mrf.mxu0
        %v974 = vadd.f32 0.0, %v973
        %v975 = vpop.f32.mrf.mxu0
        %v976 = vadd.f32 0.0, %v975
        %v977 = vpop.f32.mrf.mxu0
        %v978 = vpop.f32.mrf.mxu0
        %979 = vdwg.mxu0
        %980 = vmatprep.subr.bf16.mxu0 %v831
        %981 = vmatpush1.bf16.msra.mxu0 %v830
        %982 = vmatprep.subr.bf16.mxu0 %v823
        %983 = vmatpush1.bf16.msra.mxu0 %v822
        %984 = vmatprep.subr.bf16.mxu0 %v815
        %985 = vmatpush1.bf16.msra.mxu0 %v814
        %986 = vmatprep.subr.bf16.mxu0 %v807
        %987 = vmatpush1.bf16.msra.mxu0 %v806
        %988 = vmatprep.subr.bf16.mxu0 %v799
        %989 = vmatpush1.bf16.msra.mxu0 %v798
        %990 = vmatprep.subr.bf16.mxu0 %v791
        %991 = vmatpush1.bf16.msra.mxu0 %v790
        %992 = vmatprep.subr.bf16.mxu0 %v783
        %993 = vmatpush1.bf16.msra.mxu0 %v782
        %994 = vmatprep.subr.bf16.mxu0 %v775
        %995 = vmatpush1.bf16.msra.mxu0 %v774
        %996 = vmatprep.subr.bf16.mxu0 0
        %997 = vmatpush2.bf16.msra.mxu0 0
        %998 = vmatprep.subr.bf16.mxu0 0
        %999 = vmatpush2.bf16.msra.mxu0 0
        %1000 = vmatprep.subr.bf16.mxu0 0
        %1001 = vmatpush2.bf16.msra.mxu0 0
        %1002 = vmatprep.subr.bf16.mxu0 0
        %1003 = vmatpush2.bf16.msra.mxu0 0
        %1004 = vmatprep.subr.bf16.mxu0 0
        %1005 = vmatpush2.bf16.msra.mxu0 0
        %1006 = vmatprep.subr.bf16.mxu0 0
        %1007 = vmatpush2.bf16.msra.mxu0 0
        %1008 = vmatprep.subr.bf16.mxu0 0
        %1009 = vmatpush2.bf16.msra.mxu0 0
        %1010 = vmatprep.subr.bf16.mxu0 0
        %1011 = vmatpush2.bf16.msra.mxu0 0
        %1012 = vmatprep.mubr.bf16.mxu0 0
        %1013 = vmatmul.mubr.bf16.gmra.mxu0 %v513
        %v1014 = vpop.f32.mrf.mxu0
        %v1015 = vadd.f32 0.0, %v1014
        %v1016 = vpop.f32.mrf.mxu0
        %v1017 = vadd.f32 0.0, %v1016
        %v1018 = vpop.f32.mrf.mxu0
        %v1019 = vpop.f32.mrf.mxu0
        %1020 = vdwg.mxu0
        %1021 = vmatprep.subr.bf16.mxu0 %v833
        %1022 = vmatpush1.bf16.msra.mxu0 %v832
        %1023 = vmatprep.subr.bf16.mxu0 %v825
        %1024 = vmatpush1.bf16.msra.mxu0 %v824
        %1025 = vmatprep.subr.bf16.mxu0 %v817
        %1026 = vmatpush1.bf16.msra.mxu0 %v816
        %1027 = vmatprep.subr.bf16.mxu0 %v809
        %1028 = vmatpush1.bf16.msra.mxu0 %v808
        %1029 = vmatprep.subr.bf16.mxu0 %v801
        %1030 = vmatpush1.bf16.msra.mxu0 %v800
        %1031 = vmatprep.subr.bf16.mxu0 %v793
        %1032 = vmatpush1.bf16.msra.mxu0 %v792
        %1033 = vmatprep.subr.bf16.mxu0 %v785
        %1034 = vmatpush1.bf16.msra.mxu0 %v784
        %1035 = vmatprep.subr.bf16.mxu0 %v777
        %1036 = vmatpush1.bf16.msra.mxu0 %v776
        %1037 = vmatprep.subr.bf16.mxu0 0
        %1038 = vmatpush2.bf16.msra.mxu0 0
        %1039 = vmatprep.subr.bf16.mxu0 0
        %1040 = vmatpush2.bf16.msra.mxu0 0
        %1041 = vmatprep.subr.bf16.mxu0 0
        %1042 = vmatpush2.bf16.msra.mxu0 0
        %1043 = vmatprep.subr.bf16.mxu0 0
        %1044 = vmatpush2.bf16.msra.mxu0 0
        %1045 = vmatprep.subr.bf16.mxu0 0
        %1046 = vmatpush2.bf16.msra.mxu0 0
        %1047 = vmatprep.subr.bf16.mxu0 0
        %1048 = vmatpush2.bf16.msra.mxu0 0
        %1049 = vmatprep.subr.bf16.mxu0 0
        %1050 = vmatpush2.bf16.msra.mxu0 0
        %1051 = vmatprep.subr.bf16.mxu0 0
        %1052 = vmatpush2.bf16.msra.mxu0 0
        %1053 = vmatprep.mubr.bf16.mxu0 0
        %1054 = vmatmul.mubr.bf16.gmra.mxu0 %v513
        %v1055 = vpop.f32.mrf.mxu0
        %v1056 = vadd.f32 0.0, %v1055
        %v1057 = vpop.f32.mrf.mxu0
        %v1058 = vadd.f32 0.0, %v1057
        %v1059 = vpop.f32.mrf.mxu0
        %v1060 = vpop.f32.mrf.mxu0
        %1061 = vdwg.mxu0
        %v1062 = vld [vmem:[#allocation2] sm:$0xff]
        %v1063 = vrot.slane %v933, 4
        %v1064 = vmax.f32 %v933, %v1063
        %v1065 = vrot.slane %v1064, 2
        %v1066 = vmax.f32 %v1064, %v1065
        %v1067 = vrot.slane %v1066, 1
        %v1068 = vmax.f32 %v1066, %v1067
        %v1069 = vrot.slane %v935, 4
        %v1070 = vmax.f32 %v935, %v1069
        %v1071 = vrot.slane %v1070, 2
        %v1072 = vmax.f32 %v1070, %v1071
        %v1073 = vrot.slane %v1072, 1
        %v1074 = vmax.f32 %v1072, %v1073
        %v1075 = vrot.slane %v974, 4
        %v1076 = vmax.f32 %v974, %v1075
        %v1077 = vrot.slane %v1076, 2
        %v1078 = vmax.f32 %v1076, %v1077
        %v1079 = vrot.slane %v1078, 1
        %v1080 = vmax.f32 %v1078, %v1079
        %v1081 = vrot.slane %v976, 4
        %v1082 = vmax.f32 %v976, %v1081
        %v1083 = vrot.slane %v1082, 2
        %v1084 = vmax.f32 %v1082, %v1083
        %v1085 = vrot.slane %v1084, 1
        %v1086 = vmax.f32 %v1084, %v1085
        %v1087 = vrot.slane %v1015, 4
        %v1088 = vmax.f32 %v1015, %v1087
        %v1089 = vrot.slane %v1088, 2
        %v1090 = vmax.f32 %v1088, %v1089
        %v1091 = vrot.slane %v1090, 1
        %v1092 = vmax.f32 %v1090, %v1091
        %v1093 = vrot.slane %v1017, 4
        %v1094 = vmax.f32 %v1017, %v1093
        %v1095 = vrot.slane %v1094, 2
        %v1096 = vmax.f32 %v1094, %v1095
        %v1097 = vrot.slane %v1096, 1
        %v1098 = vmax.f32 %v1096, %v1097
        %v1099 = vrot.slane %v1056, 4
        %v1100 = vmax.f32 %v1056, %v1099
        %v1101 = vrot.slane %v1100, 2
        %v1102 = vmax.f32 %v1100, %v1101
        %v1103 = vrot.slane %v1102, 1
        %v1104 = vmax.f32 %v1102, %v1103
        %v1105 = vrot.slane %v1058, 4
        %v1106 = vmax.f32 %v1058, %v1105
        %v1107 = vrot.slane %v1106, 2
        %v1108 = vmax.f32 %v1106, %v1107
        %v1109 = vrot.slane %v1108, 1
        %v1110 = vmax.f32 %v1108, %v1109
        %v1119 = vcombine.low %v1068, %v1074
        %v1120 = vcombine.low %v1080, %v1086
        %v1121 = vcombine.low %v1092, %v1098
        %v1122 = vcombine.low %v1104, %v1110
        %v1124 = vunpack.c.l.s4 1966171168
        %v1125 = vunpack.c.0.s8 %v1124
        %v1126 = vlaneseq
        %v1127 = vshrl.u32 %v1126, 7
        %v1128 = vsub.s32 %v1125, %v1127
        %v1129 = vrot.slane %v1119, %v1128
        %v1131 = vunpack.c.l.s4 1966171168
        %v1132 = vunpack.c.0.s8 %v1131
        %v1133 = vlaneseq
        %v1134 = vshrl.u32 %v1133, 7
        %v1135 = vsub.s32 %v1132, %v1134
        %v1136 = vrot.slane %v1120, %v1135
        %v1138 = vunpack.c.l.s4 1966171168
        %v1139 = vunpack.c.0.s8 %v1138
        %v1140 = vlaneseq
        %v1141 = vshrl.u32 %v1140, 7
        %v1142 = vsub.s32 %v1139, %v1141
        %v1143 = vrot.slane %v1121, %v1142
        %v1145 = vunpack.c.l.s4 1966171168
        %v1146 = vunpack.c.0.s8 %v1145
        %v1147 = vlaneseq
        %v1148 = vshrl.u32 %v1147, 7
        %v1149 = vsub.s32 %v1146, %v1148
        %v1150 = vrot.slane %v1122, %v1149
        %v1151 = vcombine.low %v1129, %v1136
        %v1152 = vcombine.low %v1143, %v1150
        %v1154 = vunpack.c.l.s4 1966171168
        %v1155 = vunpack.c.0.s8 %v1154
        %v1156 = vlaneseq
        %v1157 = vshrl.u32 %v1156, 7
        %v1158 = vsub.s32 %v1155, %v1157
        %v1159 = vrot.slane %v1151, %v1158
        %v1161 = vunpack.c.l.s4 1966171168
        %v1162 = vunpack.c.0.s8 %v1161
        %v1163 = vlaneseq
        %v1164 = vshrl.u32 %v1163, 7
        %v1165 = vsub.s32 %v1162, %v1164
        %v1166 = vrot.slane %v1152, %v1165
        %v1167 = vcombine.low %v1159, %v1166
        %v1169 = vmax.f32 %v1062, %v1167
        %1170 = vst [vmem:[#allocation2] sm:$0xff] %v1169
        %p1171 = scmp.eq.s32.totalorder %s29, 2
        // Predicated region
        $region69: #{tpu_custom_call.1} parent=47 // pred_check
          %p1172 = pneg %p1171
        $region70: #{tpu_custom_call.1} parent=47 // pred_check_branch
          %1174 = sbr.rel (%p1172) target = $region72
        $region71: #{tpu_custom_call.1} parent=47 // pred_region
          %v1175 = vld [vmem:[#allocation2] sm:$0xff]
          %v1176 = vld [vmem:[%s6] sm:$0xff]
          %v1177 = vadd.f32 %v1175, %v1176
          %v1178 = vmax.f32 %v1177, 0.0
          %1179 = vst [vmem:[%s346] sm:$0xff] %v1178
        $region72: #{tpu_custom_call.1} parent=47 // pred_fallthru
          _
        %s1180 = sand.u32 %s198, 1
        %s1181 = scalar_lea.sflag [#allocation5], %s1180
        %s1182 = sand.u32 %s198, 1
        %s1183 = smul.addr %s1182, 8
        %s1184 = scalar_lea.vmem [#allocation11], %s1183
        // Predicated region
        $region73: #{tpu_custom_call.1} parent=47 // pred_check
          %p1185 = pneg %p208
        $region74: #{tpu_custom_call.1} parent=47 // pred_check_branch
          %1187 = sbr.rel (%p1185) target = $region76
        $region75: #{tpu_custom_call.1} parent=47 // pred_region
          %s1189 = ssub.s32 128, 128
          %1190 = vsyncadd %s1181, %s1189
          %s1191 = smul.addr %s28, 8
          %s1192 = smul.addr %s1191, 16
          %s1193 = scalar_lea.hbm %s7, %s1192
          %s1195 = sshll.u32 %s1184, 4
          %s1196 = int_to_ptr.vmem [resolvable:$true] %s1195
          %1198 = dma.vmem_to_hbm [thread:$0]  %s1196, 128, %s1193, %s1181
        $region76: #{tpu_custom_call.1} parent=47 // pred_fallthru
          _
      $region48: #{tpu_custom_call.1} parent=5 // pred_fallthru
        _
      %p1199 = scmp.le.s32.totalorder 2, %s19
      // Predicated region
      $region77: #{tpu_custom_call.1} parent=5 // pred_check
        %p1200 = pneg %p1199
      $region78: #{tpu_custom_call.1} parent=5 // pred_check_branch
        %1202 = sbr.rel (%p1200) target = $region80
      $region79: #{tpu_custom_call.1} parent=5 // pred_region
        %s1203 = ssub.s32 %s19, 2
        // Predicated region
        $region81: #{tpu_custom_call.1} parent=79 // pred_check
          %p1204 = pneg %p214
        $region82: #{tpu_custom_call.1} parent=79 // pred_check_branch
          %1206 = sbr.rel (%p1204) target = $region84
        $region83: #{tpu_custom_call.1} parent=79 // pred_region
          %s1207 = sand.u32 %s199, 1
          %s1208 = scalar_lea.sflag [#allocation5], %s1207
          %s1209 = sand.u32 %s199, 1
          %s1210 = smul.addr %s1209, 8
          %s1211 = scalar_lea.vmem [#allocation11], %s1210
          %1212 = dma.done %s1208, 128
        $region84: #{tpu_custom_call.1} parent=79 // pred_fallthru
          _
      $region80: #{tpu_custom_call.1} parent=5 // pred_fallthru
        _
    $region6: #{tpu_custom_call.1} parent=1 // loop_footer
      %s23 = sadd.s32 1, %s19
    $region7: #{tpu_custom_call.1} parent=1 // loop_footer_branch
      %18 = sbr.rel target = $region3
    $region8: #{tpu_custom_call.1} parent=1 // loop_exit
      _
    %1213 = vsyncpa [#allocation4], 1
    %s1214 = scalar_lea.sflag [#allocation4], 1
    %1215 = vsyncpa %s1214, 1
    %1216 = vsyncpa [#allocation7], 1
    %1217 = vsyncpa [#allocation10], 1
    %1218 = vsyncpa [#allocation5], 1
    %s1219 = scalar_lea.sflag [#allocation5], 1
    %1220 = vsyncpa %s1219, 1

</llo_original>
